<compile_context>
chip_gen: v7x
topology: tpu7x:2x2x1
jax: 0.10.0
libtpu: 0.0.40
codegen_flags: <defaults>
</compile_context>

<pallas_src>
import functools

import jax
import jax.numpy as jnp
from jax import lax
from jax.experimental import pallas as pl
from jax.experimental.pallas import tpu as pltpu

_LANE = 128


def _round_up(x, m):
    return ((x + m - 1) // m) * m


def _largest_div_mult128(n, cap):
    """Largest multiple of 128 that divides n and is <= cap (n % 128 == 0)."""
    cap = max(_LANE, min(cap, n))
    d = (cap // _LANE) * _LANE
    while d > _LANE and n % d:
        d -= _LANE
    return d


def _pad2(x, rows, cols):
    x = jnp.asarray(x, jnp.float32)
    return jnp.pad(x, ((0, rows - x.shape[0]), (0, cols - x.shape[1])))


def _block_diag2(w):
    """[[w, 0], [0, w]] — lets the pos/neg passes share a single matmul."""
    z = jnp.zeros_like(w)
    return jnp.concatenate(
        [jnp.concatenate([w, z], axis=1), jnp.concatenate([z, w], axis=1)],
        axis=0)


def _device_config():
    """Generation-aware config: MXU-split (v5e), megacore (v7x), VMEM limit."""
    try:
        kind = jax.devices()[0].device_kind.lower()
    except Exception:
        kind = ""
    is_v7 = ("v7" in kind) or ("7x" in kind)
    is_v6 = "v6" in kind
    is_v5 = "v5" in kind
    vmem_phys = None
    try:
        vmem_phys = int(pltpu.get_tpu_info().vmem_capacity_bytes)
    except Exception:
        vmem_phys = None
    if vmem_phys is None:
        if is_v7:
            vmem_phys = 64 * 1024 * 1024          # 64 MiB / TensorCore
        elif is_v5 or is_v6 or ("v4" in kind):
            vmem_phys = 128 * 1024 * 1024         # 128 MiB physical
    vmem_limit = int(vmem_phys * 3 // 4) if vmem_phys else None
    return {
        "split_mxu": is_v5,      # v5e: 128x128 MXUs -> split block-diag matmul
        "two_cores": is_v7,      # v7x: 2 TensorCores share the row grid
        "vmem_limit": vmem_limit,
    }


# --------------------------------------------------------------------------- #
# Encoder layer:  H = relu((A @ V) @ W), K-tiled aggregation with f32 scratch. #
# --------------------------------------------------------------------------- #
def _sage_layer_kernel(a_ref, v_ref, w_ref, out_ref, z_acc, *, split, nh_pad):
    k = pl.program_id(1)

    @pl.when(k == 0)
    def _():
        z_acc[...] = jnp.zeros_like(z_acc)

    # mean aggregation (row-normalized A): partial sum over this K tile
    z_acc[...] += jnp.dot(a_ref[...], v_ref[...],
                          preferred_element_type=jnp.float32)

    @pl.when(k == pl.num_programs(1) - 1)
    def _():
        z = z_acc[...].astype(jnp.bfloat16)
        if split:
            # v5e (128x128 MXU): two 128-wide matmuls beat a 50%-zero 256-wide one
            d_half = z.shape[1] // 2
            hp = jnp.dot(z[:, :d_half], w_ref[...],
                         preferred_element_type=jnp.float32)
            hn = jnp.dot(z[:, d_half:], w_ref[...],
                         preferred_element_type=jnp.float32)
            out_ref[:, :nh_pad] = jnp.maximum(hp, 0.0).astype(out_ref.dtype)
            out_ref[:, nh_pad:] = jnp.maximum(hn, 0.0).astype(out_ref.dtype)
        else:
            # v6e/v7x: block-diagonal W -> one wide matmul (good 256-MXU fill)
            h = jnp.dot(z, w_ref[...], preferred_element_type=jnp.float32)
            out_ref[...] = jnp.maximum(h, 0.0).astype(out_ref.dtype)


def _sage_layer(a, v, w, *, nh_pad, split, vmem_limit, two_cores):
    n_pad = a.shape[0]
    d_v = v.shape[1]
    d_out = 2 * nh_pad
    w_bytes = w.shape[0] * w.shape[1] * 2

    budget = int((vmem_limit if vmem_limit else 32 * 1024 * 1024) * 0.7)
    tk = _largest_div_mult128(n_pad, 2048)

    def fits(tm):
        use = (2 * tm * tk * 2          # A panel, double buffered, bf16
               + 2 * tk * d_v * 2       # V tile, double buffered, bf16
               + w_bytes                # W, single buffered (Buffered(1))
               + tm * d_v * 4           # f32 z accumulator scratch
               + 2 * tm * d_out * 2)    # out tile, double buffered, bf16
        return use <= budget

    cands = [d for d in range(n_pad, 0, -_LANE) if n_pad % d == 0]
    tm = None
    if two_cores:
        # v7x: keep an even row-step count >= 2 so both TensorCores get work
        for c in cands:
            steps = n_pad // c
            if steps >= 2 and steps % 2 == 0 and fits(c):
                tm = c
                break
    if tm is None:
        # v5e/v6e (1 TC): largest 128-multiple divisor that fits (grid=1 if possible)
        for c in cands:
            if fits(c):
                tm = c
                break
    if tm is None:
        tm = _LANE

    kernel = functools.partial(_sage_layer_kernel, split=split, nh_pad=nh_pad)
    return pl.pallas_call(
        kernel,
        out_shape=jax.ShapeDtypeStruct((n_pad, d_out), jnp.bfloat16),
        grid_spec=pltpu.PrefetchScalarGridSpec(
            num_scalar_prefetch=0,
            grid=(n_pad // tm, n_pad // tk),
            in_specs=[
                pl.BlockSpec((tm, tk), lambda i, k: (i, k)),    # A panel (streamed)
                pl.BlockSpec((tk, d_v), lambda i, k: (k, 0)),   # features (streamed over k)
                pl.BlockSpec((w.shape[0], w.shape[1]), lambda i, k: (0, 0),
                             pipeline_mode=pl.Buffered(1)),     # weights (resident, 1 buf)
            ],
            out_specs=pl.BlockSpec((tm, d_out), lambda i, k: (i, 0)),
            scratch_shapes=[pltpu.VMEM((tm, d_v), jnp.float32)],
        ),
        compiler_params=pltpu.CompilerParams(
            dimension_semantics=("parallel", "arbitrary"),
            vmem_limit_bytes=vmem_limit),
    )(a, v, w)


# --------------------------------------------------------------------------- #
# Readout + sigmoid + bilinear discriminator (tiny, grid-less, bf16 h path).   #
# --------------------------------------------------------------------------- #
def _dgi_tail_kernel(h_ref, wread_ref, wb_ref, bb_ref, b1_ref, b2_ref,
                     logits_ref, *, nh_pad, n_pad):
    # bf16 slices — no materialized f32 copy of h
    h_pos = h_ref[:, :nh_pad]           # (N_pad, nh_pad) bf16
    h_neg = h_ref[:, nh_pad:]           # (N_pad, nh_pad) bf16

    # AvgReadout (msk-weighted mean over nodes): VPU multiply + sublane reduce,
    # f32 accumulation via dtype promotion (wread is f32).
    c_pre = jnp.sum(h_pos * wread_ref[...], axis=0, keepdims=True)  # (1, nh_pad) f32
    c = jax.nn.sigmoid(c_pre)

    # Bilinear discriminator: v = c @ Wb.T ; sc[i] = v . h[i]
    v = lax.dot_general(c, wb_ref[...], (((1,), (1,)), ((), ())),
                        preferred_element_type=jnp.float32)         # (1, nh_pad) f32
    v_bf = v.astype(jnp.bfloat16)
    sc1 = lax.dot_general(v_bf, h_pos, (((1,), (1,)), ((), ())),
                          preferred_element_type=jnp.float32)       # (1, N_pad)
    sc2 = lax.dot_general(v_bf, h_neg, (((1,), (1,)), ((), ())),
                          preferred_element_type=jnp.float32)       # (1, N_pad)

    bb = bb_ref[...]
    # direct 128-aligned sliced stores — no concatenate / relayout in the kernel
    logits_ref[:, 0:n_pad] = sc1 + bb + b1_ref[...]
    logits_ref[:, n_pad:2 * n_pad] = sc2 + bb + b2_ref[...]


def _dgi_tail(h2, wread_col, wb, bb, b1, b2, *, nh_pad, n_pad, vmem_limit):
    vspec = pl.BlockSpec(memory_space=pltpu.MemorySpace.VMEM)
    return pl.pallas_call(
        functools.partial(_dgi_tail_kernel, nh_pad=nh_pad, n_pad=n_pad),
        out_shape=jax.ShapeDtypeStruct((1, 2 * n_pad), jnp.float32),
        in_specs=[vspec] * 6,
        out_specs=vspec,
        compiler_params=pltpu.CompilerParams(vmem_limit_bytes=vmem_limit),
    )(h2, wread_col, wb, bb, b1, b2)


# --------------------------------------------------------------------------- #
# Full forward.                                                                #
# --------------------------------------------------------------------------- #
def dgi_ind_forward(A, X, Xneg, W1, W2, Wb, bb,
                    msk=None, samp_bias1=None, samp_bias2=None):
    """Pallas forward of DGI_ind (gcn=True, skip_connection=False).

    Returns logits of shape (1, 2N): [pos scores | neg scores].
    """
    cfg = _device_config()
    split = cfg["split_mxu"]
    two_cores = cfg["two_cores"]
    vmem_limit = cfg["vmem_limit"]

    N, ft = X.shape
    n_h = W1.shape[0]
    n_pad = _round_up(N, _LANE)
    ft_pad = _round_up(ft, _LANE)
    nh_pad = _round_up(n_h, _LANE)

    # bf16 operands for the encoder (f32 MXU accumulation inside the kernels)
    a_p = _pad2(A, n_pad, n_pad).astype(jnp.bfloat16)
    # fused pos/neg: lane-concatenated features -> A is streamed once per layer
    xcat = jnp.concatenate(
        [_pad2(X, n_pad, ft_pad), _pad2(Xneg, n_pad, ft_pad)],
        axis=1).astype(jnp.bfloat16)                                 # (Np, 2*ft_pad)

    w1 = _pad2(jnp.asarray(W1, jnp.float32).T, ft_pad, nh_pad)
    w2 = _pad2(jnp.asarray(W2, jnp.float32).T, nh_pad, nh_pad)
    if split:
        w1_k = w1.astype(jnp.bfloat16)                               # (ft_pad, nh_pad)
        w2_k = w2.astype(jnp.bfloat16)                               # (nh_pad, nh_pad)
    else:
        w1_k = _block_diag2(w1).astype(jnp.bfloat16)                 # (2ft_pad, 2nh_pad)
        w2_k = _block_diag2(w2).astype(jnp.bfloat16)                 # (2nh_pad, 2nh_pad)

    # readout weights as an (n_pad, 1) f32 column ((msk-)weighted mean)
    if msk is None:
        wread = jnp.full((N, 1), 1.0 / N, jnp.float32)
    else:
        m = jnp.asarray(msk, jnp.float32).reshape(N, 1)
        wread = m / jnp.sum(m)
    wread = jnp.pad(wread, ((0, n_pad - N), (0, 0)))

    def _bias(b):
        if b is None:
            return jnp.zeros((1, n_pad), jnp.float32)
        return jnp.pad(jnp.asarray(b, jnp.float32).reshape(1, N),
                       ((0, 0), (0, n_pad - N)))

    b1 = _bias(samp_bias1)
    b2 = _bias(samp_bias2)
    wb_p = _pad2(Wb, nh_pad, nh_pad)
    bb_r = jnp.reshape(jnp.asarray(bb, jnp.float32), (1, 1))

    # layer 1 + layer 2 (layer 2's aggregation needs the full H1 -> second call)
    h1 = _sage_layer(a_p, xcat, w1_k, nh_pad=nh_pad, split=split,
                     vmem_limit=vmem_limit, two_cores=two_cores)   # (Np, 2*nh_pad) bf16
    h2 = _sage_layer(a_p, h1, w2_k, nh_pad=nh_pad, split=split,
                     vmem_limit=vmem_limit, two_cores=two_cores)   # (Np, 2*nh_pad) bf16

    logits_p = _dgi_tail(h2, wread, wb_p, bb_r, b1, b2,
                         nh_pad=nh_pad, n_pad=n_pad,
                         vmem_limit=vmem_limit)                    # (1, 2*Np) f32

    if n_pad == N:
        return logits_p                    # lane-aligned N: no host-side concat
    return jnp.concatenate(
        [logits_p[:, :N], logits_p[:, n_pad:n_pad + N]], axis=1)


def _reference_forward(A, X, Xneg, W1, W2, Wb, bb, wread_row):
    """Plain-JAX reference mirroring the kernel's bf16/f32 mixed precision."""
    bf = jnp.bfloat16
    a_bf = A.astype(bf)

    def layer(v_bf, wT):
        z = jnp.dot(a_bf, v_bf, preferred_element_type=jnp.float32)
        h = jnp.maximum(
            jnp.dot(z.astype(bf), wT.astype(bf),
                    preferred_element_type=jnp.float32), 0.0)
        return h.astype(bf)

    def enc(x):
        h1 = layer(x.astype(bf), W1.T)
        h2 = layer(h1, W2.T)
        return h2

    hp, hn = enc(X), enc(Xneg)
    c = jax.nn.sigmoid(wread_row @ hp.astype(jnp.float32))
    v = (c @ Wb.T).astype(bf)                       # mirror the kernel's bf16 v
    sc1 = jnp.dot(v, hp.T, preferred_element_type=jnp.float32) + bb
    sc2 = jnp.dot(v, hn.T, preferred_element_type=jnp.float32) + bb
    return jnp.concatenate([sc1, sc2], axis=1)


if __name__ == "__main__":
    key = jax.random.PRNGKey(0)
    N, ft_size, n_h = 512, 32, 32
    k_x, k_perm, k_w1, k_w2, k_wb = jax.random.split(key, 5)

    # Node features + corrupted (negative) features via fixed row permutation.
    X = jax.random.normal(k_x, (N, ft_size), jnp.float32)
    perm = jax.random.permutation(k_perm, N)
    Xneg = X[perm]

    # Deterministic graph: ring with distance-1 and distance-2 edges + self-loops.
    rows = jnp.arange(N)
    A_mask = jnp.zeros((N, N), jnp.float32)
    for d in (1, 2):
        A_mask = A_mask.at[rows, (rows + d) % N].set(1.0)
        A_mask = A_mask.at[rows, (rows - d) % N].set(1.0)
    A_mask = A_mask.at[rows, rows].set(1.0)          # gcn=True self-loop
    A = A_mask / jnp.sum(A_mask, axis=1, keepdims=True)

    # Encoder weights (xavier_uniform as in Encoder.__init__), bilinear disc params.
    lim1 = (6.0 / (n_h + ft_size)) ** 0.5
    W1 = jax.random.uniform(k_w1, (n_h, ft_size), jnp.float32, -lim1, lim1)
    lim2 = (6.0 / (n_h + n_h)) ** 0.5
    W2 = jax.random.uniform(k_w2, (n_h, n_h), jnp.float32, -lim2, lim2)
    bnd = 1.0 / (n_h ** 0.5)
    Wb = jax.random.uniform(k_wb, (n_h, n_h), jnp.float32, -bnd, bnd)
    bb = jnp.zeros((), jnp.float32)

    # forward(nodes, msk=None, samp_bias1=None, samp_bias2=None)
    fwd = jax.jit(dgi_ind_forward)               # single launch, prep ops fused
    logits = fwd(A, X, Xneg, W1, W2, Wb, bb)
    logits = jax.block_until_ready(logits)

    # Sanity check against a plain-JAX reference with matching mixed precision.
    wread_row = jnp.full((1, N), 1.0 / N, jnp.float32)
    ref = _reference_forward(A, X, Xneg, W1, W2, Wb, bb, wread_row)
    assert logits.shape == (1, 2 * N)
    assert jnp.allclose(logits, ref, atol=2e-2, rtol=2e-2), \
        float(jnp.max(jnp.abs(logits - ref)))

    print("KERNEL_OK")
</pallas_src>

<mosaic_0001>
module attributes {stable_mosaic.version = 11 : i64} {
  func.func @_sage_layer_kernel(%arg0: i32, %arg1: i32, %arg2: memref<512x512xbf16, #tpu.memory_space<vmem>>, %arg3: memref<512x256xbf16, #tpu.memory_space<vmem>>, %arg4: memref<256x256xbf16, #tpu.memory_space<vmem>>, %arg5: memref<512x256xbf16, #tpu.memory_space<vmem>>, %arg6: memref<512x256xf32, #tpu.memory_space<vmem>>) attributes {dimension_semantics = [#tpu.dimension_semantics<parallel>, #tpu.dimension_semantics<arbitrary>], iteration_bounds = array<i64: 1, 1>, scalar_prefetch = 0 : i64, scratch_operands = 1 : i64, tpu.core_type = #tpu.core_type<tc>, window_params = [{transform_indices = @transform_0, window_bounds = array<i64: 512, 512>}, {transform_indices = @transform_1, window_bounds = array<i64: 512, 256>}, {pipeline_mode = #tpu.pipeline_mode<synchronous>, transform_indices = @transform_2, window_bounds = array<i64: 256, 256>}, {transform_indices = @transform_3, window_bounds = array<i64: 512, 256>}]} {
    %c0_i32 = arith.constant 0 : i32
    %0 = arith.cmpi eq, %arg1, %c0_i32 : i32
    %1 = arith.extui %0 : i1 to i32
    %c0_i32_0 = arith.constant 0 : i32
    %2 = arith.cmpi ne, %1, %c0_i32_0 : i32
    scf.if %2 {
      %cst_10 = arith.constant 0.000000e+00 : f32
      %12 = vector.broadcast %cst_10 : f32 to vector<512x256xf32>
      %c0_11 = arith.constant 0 : index
      %c0_12 = arith.constant 0 : index
      %13 = vector.load %arg6[%c0_11, %c0_12] : memref<512x256xf32, #tpu.memory_space<vmem>>, vector<512x256xf32>
      tpu.vector_store %arg6[%c0_11, %c0_12], %12 {strides = array<i32>} : memref<512x256xf32, #tpu.memory_space<vmem>>, vector<512x256xf32>,
    } else {
    }
    %c0 = arith.constant 0 : index
    %c0_1 = arith.constant 0 : index
    %3 = vector.load %arg6[%c0, %c0_1] : memref<512x256xf32, #tpu.memory_space<vmem>>, vector<512x256xf32>
    %c0_2 = arith.constant 0 : index
    %c0_3 = arith.constant 0 : index
    %4 = vector.load %arg2[%c0_2, %c0_3] : memref<512x512xbf16, #tpu.memory_space<vmem>>, vector<512x512xbf16>
    %c0_4 = arith.constant 0 : index
    %c0_5 = arith.constant 0 : index
    %5 = vector.load %arg3[%c0_4, %c0_5] : memref<512x256xbf16, #tpu.memory_space<vmem>>, vector<512x256xbf16>
    %cst = arith.constant dense<0.000000e+00> : vector<512x256xf32>
    %6 = tpu.matmul %4, %5, %cst {dimension_numbers = #tpu.dot_dimension_numbers<[1], [0], [0], [1], [0, 0, 1, 1], [], []>} : vector<512x512xbf16>, vector<512x256xbf16>, vector<512x256xf32> -> vector<512x256xf32>
    %7 = arith.addf %3, %6 : vector<512x256xf32>
    %c0_6 = arith.constant 0 : index
    %c0_7 = arith.constant 0 : index
    %8 = vector.load %arg6[%c0_6, %c0_7] : memref<512x256xf32, #tpu.memory_space<vmem>>, vector<512x256xf32>
    tpu.vector_store %arg6[%c0_6, %c0_7], %7 {strides = array<i32>} : memref<512x256xf32, #tpu.memory_space<vmem>>, vector<512x256xf32>,
    %c0_i32_8 = arith.constant 0 : i32
    %9 = arith.cmpi eq, %arg1, %c0_i32_8 : i32
    %10 = arith.extui %9 : i1 to i32
    %c0_i32_9 = arith.constant 0 : i32
    %11 = arith.cmpi ne, %10, %c0_i32_9 : i32
    scf.if %11 {
      %c0_10 = arith.constant 0 : index
      %c0_11 = arith.constant 0 : index
      %12 = vector.load %arg6[%c0_10, %c0_11] : memref<512x256xf32, #tpu.memory_space<vmem>>, vector<512x256xf32>
      %13 = arith.truncf %12 : vector<512x256xf32> to vector<512x256xbf16>
      %c0_12 = arith.constant 0 : index
      %c0_13 = arith.constant 0 : index
      %14 = vector.load %arg4[%c0_12, %c0_13] : memref<256x256xbf16, #tpu.memory_space<vmem>>, vector<256x256xbf16>
      %cst_14 = arith.constant dense<0.000000e+00> : vector<512x256xf32>
      %15 = tpu.matmul %13, %14, %cst_14 {dimension_numbers = #tpu.dot_dimension_numbers<[1], [0], [0], [1], [0, 0, 1, 1], [], []>} : vector<512x256xbf16>, vector<256x256xbf16>, vector<512x256xf32> -> vector<512x256xf32>
      %cst_15 = arith.constant 0.000000e+00 : f32
      %16 = vector.broadcast %cst_15 : f32 to vector<512x256xf32>
      %17 = arith.maximumf %15, %16 : vector<512x256xf32>
      %18 = arith.truncf %17 : vector<512x256xf32> to vector<512x256xbf16>
      %c0_16 = arith.constant 0 : index
      %c0_17 = arith.constant 0 : index
      %19 = vector.load %arg5[%c0_16, %c0_17] : memref<512x256xbf16, #tpu.memory_space<vmem>>, vector<512x256xbf16>
      tpu.vector_store %arg5[%c0_16, %c0_17], %18 {strides = array<i32>} : memref<512x256xbf16, #tpu.memory_space<vmem>>, vector<512x256xbf16>,
    } else {
    }
    return
  }
  func.func @transform_0(%arg0: i32, %arg1: i32) -> (i32, i32) {
    %c0_i32 = arith.constant 0 : i32
    return %arg0, %arg1 : i32, i32
  }
  func.func @transform_1(%arg0: i32, %arg1: i32) -> (i32, i32) {
    %c0_i32 = arith.constant 0 : i32
    %c0_i32_0 = arith.constant 0 : i32
    return %arg1, %c0_i32 : i32, i32
  }
  func.func @transform_2(%arg0: i32, %arg1: i32) -> (i32, i32) {
    %c0_i32 = arith.constant 0 : i32
    %c0_i32_0 = arith.constant 0 : i32
    %c0_i32_1 = arith.constant 0 : i32
    return %c0_i32, %c0_i32_0 : i32, i32
  }
  func.func @transform_3(%arg0: i32, %arg1: i32) -> (i32, i32) {
    %c0_i32 = arith.constant 0 : i32
    %c0_i32_0 = arith.constant 0 : i32
    return %arg0, %c0_i32 : i32, i32
  }
}

module attributes {stable_mosaic.version = 11 : i64} {
  func.func @_dgi_tail_kernel(%arg0: memref<512x256xbf16, #tpu.memory_space<vmem>>, %arg1: memref<512x1xf32, #tpu.memory_space<vmem>>, %arg2: memref<128x128xf32, #tpu.memory_space<vmem>>, %arg3: memref<1x1xf32, #tpu.memory_space<vmem>>, %arg4: memref<1x512xf32, #tpu.memory_space<vmem>>, %arg5: memref<1x512xf32, #tpu.memory_space<vmem>>, %arg6: memref<1x1024xf32, #tpu.memory_space<vmem>>) attributes {dimension_semantics = [], scalar_prefetch = 0 : i64, scratch_operands = 0 : i64, tpu.core_type = #tpu.core_type<tc>} {
    %c0 = arith.constant 0 : index
    %c0_0 = arith.constant 0 : index
    %0 = vector.load %arg0[%c0, %c0_0] : memref<512x256xbf16, #tpu.memory_space<vmem>>, vector<512x128xbf16>
    %c0_1 = arith.constant 0 : index
    %c128 = arith.constant 128 : index
    %1 = vector.load %arg0[%c0_1, %c128] : memref<512x256xbf16, #tpu.memory_space<vmem>>, vector<512x128xbf16>
    %c0_2 = arith.constant 0 : index
    %c0_3 = arith.constant 0 : index
    %2 = vector.load %arg1[%c0_2, %c0_3] : memref<512x1xf32, #tpu.memory_space<vmem>>, vector<512x1xf32>
    %3 = arith.extf %0 : vector<512x128xbf16> to vector<512x128xf32>
    %4 = vector.broadcast %2 : vector<512x1xf32> to vector<512x128xf32>
    %5 = arith.mulf %3, %4 : vector<512x128xf32>
    %cst = arith.constant dense<0.000000e+00> : vector<128xf32>
    %6 = vector.multi_reduction <add>, %5, %cst [0] : vector<512x128xf32> to vector<128xf32>
    %7 = vector.shape_cast %6 : vector<128xf32> to vector<1x128xf32>
    %8 = arith.negf %7 : vector<1x128xf32>
    %9 = math.exp %8 : vector<1x128xf32>
    %cst_4 = arith.constant 1.000000e+00 : f32
    %10 = vector.broadcast %cst_4 : f32 to vector<1x128xf32>
    %11 = arith.addf %10, %9 : vector<1x128xf32>
    %12 = arith.divf %10, %11 : vector<1x128xf32>
    %c0_5 = arith.constant 0 : index
    %c0_6 = arith.constant 0 : index
    %13 = vector.load %arg2[%c0_5, %c0_6] : memref<128x128xf32, #tpu.memory_space<vmem>>, vector<128x128xf32>
    %cst_7 = arith.constant dense<0.000000e+00> : vector<1x128xf32>
    %14 = tpu.matmul %12, %13, %cst_7 {dimension_numbers = #tpu.dot_dimension_numbers<[1], [1], [0], [0], [0, 0, 1, 0], [], []>} : vector<1x128xf32>, vector<128x128xf32>, vector<1x128xf32> -> vector<1x128xf32>
    %15 = arith.truncf %14 : vector<1x128xf32> to vector<1x128xbf16>
    %cst_8 = arith.constant dense<0.000000e+00> : vector<1x512xf32>
    %16 = tpu.matmul %15, %0, %cst_8 {dimension_numbers = #tpu.dot_dimension_numbers<[1], [1], [0], [0], [0, 0, 1, 0], [], []>} : vector<1x128xbf16>, vector<512x128xbf16>, vector<1x512xf32> -> vector<1x512xf32>
    %cst_9 = arith.constant dense<0.000000e+00> : vector<1x512xf32>
    %17 = tpu.matmul %15, %1, %cst_9 {dimension_numbers = #tpu.dot_dimension_numbers<[1], [1], [0], [0], [0, 0, 1, 0], [], []>} : vector<1x128xbf16>, vector<512x128xbf16>, vector<1x512xf32> -> vector<1x512xf32>
    %c0_10 = arith.constant 0 : index
    %c0_11 = arith.constant 0 : index
    %18 = vector.load %arg3[%c0_10, %c0_11] : memref<1x1xf32, #tpu.memory_space<vmem>>, vector<1x1xf32>
    %19 = vector.broadcast %18 : vector<1x1xf32> to vector<1x512xf32>
    %20 = arith.addf %16, %19 : vector<1x512xf32>
    %c0_12 = arith.constant 0 : index
    %c0_13 = arith.constant 0 : index
    %21 = vector.load %arg4[%c0_12, %c0_13] : memref<1x512xf32, #tpu.memory_space<vmem>>, vector<1x512xf32>
    %22 = arith.addf %20, %21 : vector<1x512xf32>
    %c0_14 = arith.constant 0 : index
    %c0_15 = arith.constant 0 : index
    %23 = vector.load %arg6[%c0_14, %c0_15] : memref<1x1024xf32, #tpu.memory_space<vmem>>, vector<1x512xf32>
    tpu.vector_store %arg6[%c0_14, %c0_15], %22 {strides = array<i32>} : memref<1x1024xf32, #tpu.memory_space<vmem>>, vector<1x512xf32>,
    %24 = vector.broadcast %18 : vector<1x1xf32> to vector<1x512xf32>
    %25 = arith.addf %17, %24 : vector<1x512xf32>
    %c0_16 = arith.constant 0 : index
    %c0_17 = arith.constant 0 : index
    %26 = vector.load %arg5[%c0_16, %c0_17] : memref<1x512xf32, #tpu.memory_space<vmem>>, vector<1x512xf32>
    %27 = arith.addf %25, %26 : vector<1x512xf32>
    %c0_18 = arith.constant 0 : index
    %c512 = arith.constant 512 : index
    %28 = vector.load %arg6[%c0_18, %c512] : memref<1x1024xf32, #tpu.memory_space<vmem>>, vector<1x512xf32>
    tpu.vector_store %arg6[%c0_18, %c512], %27 {strides = array<i32>} : memref<1x1024xf32, #tpu.memory_space<vmem>>, vector<1x512xf32>,
    return
  }
}

</mosaic_0001>

<llo_original>
// kernel: dgi_ind_forward.5
$region0: #{dgi_ind_forward.5}
  #allocation0 [shape = 'u32[]', space=smem, size = 0x4, offset = 0x4, fixed_abs, tag = 'smem constant byte address 0x4 - core index']
  #allocation1 [shape = 'u32[144,128]{1,0:T(1,128)}', space=vmem, size = 0x12000, scoped, tag = 'internal scratch']
  #allocation2 [shape = 'f32[1,1]{1,0:T(1,128)S(1)}', space=vmem, size = 0x200, scoped, tag = 'scoped memory for dgi_ind_forward.5']
  %s0 = inlined_call_operand.vmem [shape: bf16[512,256], index: 0, kind: input, shape index: {}]
  %s1 = inlined_call_operand.vmem [shape: f32[512,1], index: 1, kind: input, shape index: {}]
  %s2 = inlined_call_operand.vmem [shape: f32[128,128], index: 2, kind: input, shape index: {}]
  %s3 = inlined_call_operand.<no memory space> [shape: f32[1,1], index: 3, kind: input, shape index: {}]
  %s4 = inlined_call_operand.vmem [shape: f32[1,512], index: 4, kind: input, shape index: {}, may-alias: {4,5}]
  %s5 = inlined_call_operand.vmem [shape: f32[1,512], index: 5, kind: input, shape index: {}, may-alias: {4,5}]
  %s6 = inlined_call_operand.hbm [shape: f32[1,1024], index: 6, kind: output, shape index: {}]
  %s7 = sld [smem:[#allocation0]]
  $region34: #{dgi_ind_forward.5} parent=0
    _
  %s9 = ssub.s32 1, %s7
  %s10 = scalar_select 0, %s9, %s7
  %v11 = vstv %s3
  %12 = vst [vmem:[#allocation2] sm:$0x1] %v11
  $region1: #{dgi_ind_forward.5} parent=0
    #allocation3 [shape = 'u8[4096]{0}', space=vmem, size = 0x1000, scoped, tag = 'output window, operand 0, single buffered']
    #allocation4 [shape = 's32[1]{0}', space=sflag, size = 0x4, scoped, tag = 'scoped memory for dgi_ind_forward.5']
    %13 = vsyncpa [#allocation4], 0
    // Predicated region
    $region2: #{dgi_ind_forward.5} parent=1 // pred_check
      _
    $region3: #{dgi_ind_forward.5} parent=1 // pred_check_branch
      %15 = sbr.rel (0) target = $region5
    $region4: #{dgi_ind_forward.5} parent=1 // pred_region
      _
    $region5: #{dgi_ind_forward.5} parent=1 // pred_fallthru
      _
    // Predicated region
    $region6: #{dgi_ind_forward.5} parent=1 // pred_check
      _
    $region7: #{dgi_ind_forward.5} parent=1 // pred_check_branch
      %17 = sbr.rel (0) target = $region9
    $region8: #{dgi_ind_forward.5} parent=1 // pred_region
      _
    $region9: #{dgi_ind_forward.5} parent=1 // pred_fallthru
      _
    // Predicated region
    $region10: #{dgi_ind_forward.5} parent=1 // pred_check
      _
    $region11: #{dgi_ind_forward.5} parent=1 // pred_check_branch
      %19 = sbr.rel (0) target = $region13
    $region12: #{dgi_ind_forward.5} parent=1 // pred_region
      _
    $region13: #{dgi_ind_forward.5} parent=1 // pred_fallthru
      _
    // Predicated region
    $region14: #{dgi_ind_forward.5} parent=1 // pred_check
      _
    $region15: #{dgi_ind_forward.5} parent=1 // pred_check_branch
      %21 = sbr.rel (0) target = $region17
    $region16: #{dgi_ind_forward.5} parent=1 // pred_region
      _
    $region17: #{dgi_ind_forward.5} parent=1 // pred_fallthru
      _
    // Predicated region
    $region18: #{dgi_ind_forward.5} parent=1 // pred_check
      _
    $region19: #{dgi_ind_forward.5} parent=1 // pred_check_branch
      %23 = sbr.rel (0) target = $region21
    $region20: #{dgi_ind_forward.5} parent=1 // pred_region
      _
    $region21: #{dgi_ind_forward.5} parent=1 // pred_fallthru
      _
    // Predicated region
    $region22: #{dgi_ind_forward.5} parent=1 // pred_check
      _
    $region23: #{dgi_ind_forward.5} parent=1 // pred_check_branch
      %25 = sbr.rel (0) target = $region25
    $region24: #{dgi_ind_forward.5} parent=1 // pred_region
      _
    $region25: #{dgi_ind_forward.5} parent=1 // pred_fallthru
      _
    %v27 = vld [vmem:[%s0] sm:$0xf]
    %v28 = vld [vmem:[%s0 + $0x8] sm:$0xf]
    %v29 = vld [vmem:[%s0 + $0x10] sm:$0xf]
    %v30 = vld [vmem:[%s0 + $0x18] sm:$0xf]
    %v31 = vld [vmem:[%s0 + $0x20] sm:$0xf]
    %v32 = vld [vmem:[%s0 + $0x28] sm:$0xf]
    %v33 = vld [vmem:[%s0 + $0x30] sm:$0xf]
    %v34 = vld [vmem:[%s0 + $0x38] sm:$0xf]
    %v35 = vld [vmem:[%s0 + $0x40] sm:$0xf]
    %v36 = vld [vmem:[%s0 + $0x48] sm:$0xf]
    %v37 = vld [vmem:[%s0 + $0x50] sm:$0xf]
    %v38 = vld [vmem:[%s0 + $0x58] sm:$0xf]
    %v39 = vld [vmem:[%s0 + $0x60] sm:$0xf]
    %v40 = vld [vmem:[%s0 + $0x68] sm:$0xf]
    %v41 = vld [vmem:[%s0 + $0x70] sm:$0xf]
    %v42 = vld [vmem:[%s0 + $0x78] sm:$0xf]
    %v43 = vld [vmem:[%s0 + $0x80] sm:$0xf]
    %v44 = vld [vmem:[%s0 + $0x88] sm:$0xf]
    %v45 = vld [vmem:[%s0 + $0x90] sm:$0xf]
    %v46 = vld [vmem:[%s0 + $0x98] sm:$0xf]
    %v47 = vld [vmem:[%s0 + $0xa0] sm:$0xf]
    %v48 = vld [vmem:[%s0 + $0xa8] sm:$0xf]
    %v49 = vld [vmem:[%s0 + $0xb0] sm:$0xf]
    %v50 = vld [vmem:[%s0 + $0xb8] sm:$0xf]
    %v51 = vld [vmem:[%s0 + $0xc0] sm:$0xf]
    %v52 = vld [vmem:[%s0 + $0xc8] sm:$0xf]
    %v53 = vld [vmem:[%s0 + $0xd0] sm:$0xf]
    %v54 = vld [vmem:[%s0 + $0xd8] sm:$0xf]
    %v55 = vld [vmem:[%s0 + $0xe0] sm:$0xf]
    %v56 = vld [vmem:[%s0 + $0xe8] sm:$0xf]
    %v57 = vld [vmem:[%s0 + $0xf0] sm:$0xf]
    %v58 = vld [vmem:[%s0 + $0xf8] sm:$0xf]
    %v59 = vld [vmem:[%s0 + $0x100] sm:$0xf]
    %v60 = vld [vmem:[%s0 + $0x108] sm:$0xf]
    %v61 = vld [vmem:[%s0 + $0x110] sm:$0xf]
    %v62 = vld [vmem:[%s0 + $0x118] sm:$0xf]
    %v63 = vld [vmem:[%s0 + $0x120] sm:$0xf]
    %v64 = vld [vmem:[%s0 + $0x128] sm:$0xf]
    %v65 = vld [vmem:[%s0 + $0x130] sm:$0xf]
    %v66 = vld [vmem:[%s0 + $0x138] sm:$0xf]
    %v67 = vld [vmem:[%s0 + $0x140] sm:$0xf]
    %v68 = vld [vmem:[%s0 + $0x148] sm:$0xf]
    %v69 = vld [vmem:[%s0 + $0x150] sm:$0xf]
    %v70 = vld [vmem:[%s0 + $0x158] sm:$0xf]
    %v71 = vld [vmem:[%s0 + $0x160] sm:$0xf]
    %v72 = vld [vmem:[%s0 + $0x168] sm:$0xf]
    %v73 = vld [vmem:[%s0 + $0x170] sm:$0xf]
    %v74 = vld [vmem:[%s0 + $0x178] sm:$0xf]
    %v75 = vld [vmem:[%s0 + $0x180] sm:$0xf]
    %v76 = vld [vmem:[%s0 + $0x188] sm:$0xf]
    %v77 = vld [vmem:[%s0 + $0x190] sm:$0xf]
    %v78 = vld [vmem:[%s0 + $0x198] sm:$0xf]
    %v79 = vld [vmem:[%s0 + $0x1a0] sm:$0xf]
    %v80 = vld [vmem:[%s0 + $0x1a8] sm:$0xf]
    %v81 = vld [vmem:[%s0 + $0x1b0] sm:$0xf]
    %v82 = vld [vmem:[%s0 + $0x1b8] sm:$0xf]
    %v83 = vld [vmem:[%s0 + $0x1c0] sm:$0xf]
    %v84 = vld [vmem:[%s0 + $0x1c8] sm:$0xf]
    %v85 = vld [vmem:[%s0 + $0x1d0] sm:$0xf]
    %v86 = vld [vmem:[%s0 + $0x1d8] sm:$0xf]
    %v87 = vld [vmem:[%s0 + $0x1e0] sm:$0xf]
    %v88 = vld [vmem:[%s0 + $0x1e8] sm:$0xf]
    %v89 = vld [vmem:[%s0 + $0x1f0] sm:$0xf]
    %v90 = vld [vmem:[%s0 + $0x1f8] sm:$0xf]
    %v91 = vld [vmem:[%s0 + $0x4] sm:$0xf]
    %v92 = vld [vmem:[%s0 + $0xc] sm:$0xf]
    %v93 = vld [vmem:[%s0 + $0x14] sm:$0xf]
    %v94 = vld [vmem:[%s0 + $0x1c] sm:$0xf]
    %v95 = vld [vmem:[%s0 + $0x24] sm:$0xf]
    %v96 = vld [vmem:[%s0 + $0x2c] sm:$0xf]
    %v97 = vld [vmem:[%s0 + $0x34] sm:$0xf]
    %v98 = vld [vmem:[%s0 + $0x3c] sm:$0xf]
    %v99 = vld [vmem:[%s0 + $0x44] sm:$0xf]
    %v100 = vld [vmem:[%s0 + $0x4c] sm:$0xf]
    %v101 = vld [vmem:[%s0 + $0x54] sm:$0xf]
    %v102 = vld [vmem:[%s0 + $0x5c] sm:$0xf]
    %v103 = vld [vmem:[%s0 + $0x64] sm:$0xf]
    %v104 = vld [vmem:[%s0 + $0x6c] sm:$0xf]
    %v105 = vld [vmem:[%s0 + $0x74] sm:$0xf]
    %v106 = vld [vmem:[%s0 + $0x7c] sm:$0xf]
    %v107 = vld [vmem:[%s0 + $0x84] sm:$0xf]
    %v108 = vld [vmem:[%s0 + $0x8c] sm:$0xf]
    %v109 = vld [vmem:[%s0 + $0x94] sm:$0xf]
    %v110 = vld [vmem:[%s0 + $0x9c] sm:$0xf]
    %v111 = vld [vmem:[%s0 + $0xa4] sm:$0xf]
    %v112 = vld [vmem:[%s0 + $0xac] sm:$0xf]
    %v113 = vld [vmem:[%s0 + $0xb4] sm:$0xf]
    %v114 = vld [vmem:[%s0 + $0xbc] sm:$0xf]
    %v115 = vld [vmem:[%s0 + $0xc4] sm:$0xf]
    %v116 = vld [vmem:[%s0 + $0xcc] sm:$0xf]
    %v117 = vld [vmem:[%s0 + $0xd4] sm:$0xf]
    %v118 = vld [vmem:[%s0 + $0xdc] sm:$0xf]
    %v119 = vld [vmem:[%s0 + $0xe4] sm:$0xf]
    %v120 = vld [vmem:[%s0 + $0xec] sm:$0xf]
    %v121 = vld [vmem:[%s0 + $0xf4] sm:$0xf]
    %v122 = vld [vmem:[%s0 + $0xfc] sm:$0xf]
    %v123 = vld [vmem:[%s0 + $0x104] sm:$0xf]
    %v124 = vld [vmem:[%s0 + $0x10c] sm:$0xf]
    %v125 = vld [vmem:[%s0 + $0x114] sm:$0xf]
    %v126 = vld [vmem:[%s0 + $0x11c] sm:$0xf]
    %v127 = vld [vmem:[%s0 + $0x124] sm:$0xf]
    %v128 = vld [vmem:[%s0 + $0x12c] sm:$0xf]
    %v129 = vld [vmem:[%s0 + $0x134] sm:$0xf]
    %v130 = vld [vmem:[%s0 + $0x13c] sm:$0xf]
    %v131 = vld [vmem:[%s0 + $0x144] sm:$0xf]
    %v132 = vld [vmem:[%s0 + $0x14c] sm:$0xf]
    %v133 = vld [vmem:[%s0 + $0x154] sm:$0xf]
    %v134 = vld [vmem:[%s0 + $0x15c] sm:$0xf]
    %v135 = vld [vmem:[%s0 + $0x164] sm:$0xf]
    %v136 = vld [vmem:[%s0 + $0x16c] sm:$0xf]
    %v137 = vld [vmem:[%s0 + $0x174] sm:$0xf]
    %v138 = vld [vmem:[%s0 + $0x17c] sm:$0xf]
    %v139 = vld [vmem:[%s0 + $0x184] sm:$0xf]
    %v140 = vld [vmem:[%s0 + $0x18c] sm:$0xf]
    %v141 = vld [vmem:[%s0 + $0x194] sm:$0xf]
    %v142 = vld [vmem:[%s0 + $0x19c] sm:$0xf]
    %v143 = vld [vmem:[%s0 + $0x1a4] sm:$0xf]
    %v144 = vld [vmem:[%s0 + $0x1ac] sm:$0xf]
    %v145 = vld [vmem:[%s0 + $0x1b4] sm:$0xf]
    %v146 = vld [vmem:[%s0 + $0x1bc] sm:$0xf]
    %v147 = vld [vmem:[%s0 + $0x1c4] sm:$0xf]
    %v148 = vld [vmem:[%s0 + $0x1cc] sm:$0xf]
    %v149 = vld [vmem:[%s0 + $0x1d4] sm:$0xf]
    %v150 = vld [vmem:[%s0 + $0x1dc] sm:$0xf]
    %v151 = vld [vmem:[%s0 + $0x1e4] sm:$0xf]
    %v152 = vld [vmem:[%s0 + $0x1ec] sm:$0xf]
    %v153 = vld [vmem:[%s0 + $0x1f4] sm:$0xf]
    %v154 = vld [vmem:[%s0 + $0x1fc] sm:$0xf]
    %v155 = vld [vmem:[%s1] sm:$0xff]
    %v156 = vld [vmem:[%s1 + $0x8] sm:$0xff]
    %v157 = vld [vmem:[%s1 + $0x10] sm:$0xff]
    %v158 = vld [vmem:[%s1 + $0x18] sm:$0xff]
    %v159 = vld [vmem:[%s1 + $0x20] sm:$0xff]
    %v160 = vld [vmem:[%s1 + $0x28] sm:$0xff]
    %v161 = vld [vmem:[%s1 + $0x30] sm:$0xff]
    %v162 = vld [vmem:[%s1 + $0x38] sm:$0xff]
    %v163 = vld [vmem:[%s1 + $0x40] sm:$0xff]
    %v164 = vld [vmem:[%s1 + $0x48] sm:$0xff]
    %v165 = vld [vmem:[%s1 + $0x50] sm:$0xff]
    %v166 = vld [vmem:[%s1 + $0x58] sm:$0xff]
    %v167 = vld [vmem:[%s1 + $0x60] sm:$0xff]
    %v168 = vld [vmem:[%s1 + $0x68] sm:$0xff]
    %v169 = vld [vmem:[%s1 + $0x70] sm:$0xff]
    %v170 = vld [vmem:[%s1 + $0x78] sm:$0xff]
    %v171 = vld [vmem:[%s1 + $0x80] sm:$0xff]
    %v172 = vld [vmem:[%s1 + $0x88] sm:$0xff]
    %v173 = vld [vmem:[%s1 + $0x90] sm:$0xff]
    %v174 = vld [vmem:[%s1 + $0x98] sm:$0xff]
    %v175 = vld [vmem:[%s1 + $0xa0] sm:$0xff]
    %v176 = vld [vmem:[%s1 + $0xa8] sm:$0xff]
    %v177 = vld [vmem:[%s1 + $0xb0] sm:$0xff]
    %v178 = vld [vmem:[%s1 + $0xb8] sm:$0xff]
    %v179 = vld [vmem:[%s1 + $0xc0] sm:$0xff]
    %v180 = vld [vmem:[%s1 + $0xc8] sm:$0xff]
    %v181 = vld [vmem:[%s1 + $0xd0] sm:$0xff]
    %v182 = vld [vmem:[%s1 + $0xd8] sm:$0xff]
    %v183 = vld [vmem:[%s1 + $0xe0] sm:$0xff]
    %v184 = vld [vmem:[%s1 + $0xe8] sm:$0xff]
    %v185 = vld [vmem:[%s1 + $0xf0] sm:$0xff]
    %v186 = vld [vmem:[%s1 + $0xf8] sm:$0xff]
    %v187 = vld [vmem:[%s1 + $0x100] sm:$0xff]
    %v188 = vld [vmem:[%s1 + $0x108] sm:$0xff]
    %v189 = vld [vmem:[%s1 + $0x110] sm:$0xff]
    %v190 = vld [vmem:[%s1 + $0x118] sm:$0xff]
    %v191 = vld [vmem:[%s1 + $0x120] sm:$0xff]
    %v192 = vld [vmem:[%s1 + $0x128] sm:$0xff]
    %v193 = vld [vmem:[%s1 + $0x130] sm:$0xff]
    %v194 = vld [vmem:[%s1 + $0x138] sm:$0xff]
    %v195 = vld [vmem:[%s1 + $0x140] sm:$0xff]
    %v196 = vld [vmem:[%s1 + $0x148] sm:$0xff]
    %v197 = vld [vmem:[%s1 + $0x150] sm:$0xff]
    %v198 = vld [vmem:[%s1 + $0x158] sm:$0xff]
    %v199 = vld [vmem:[%s1 + $0x160] sm:$0xff]
    %v200 = vld [vmem:[%s1 + $0x168] sm:$0xff]
    %v201 = vld [vmem:[%s1 + $0x170] sm:$0xff]
    %v202 = vld [vmem:[%s1 + $0x178] sm:$0xff]
    %v203 = vld [vmem:[%s1 + $0x180] sm:$0xff]
    %v204 = vld [vmem:[%s1 + $0x188] sm:$0xff]
    %v205 = vld [vmem:[%s1 + $0x190] sm:$0xff]
    %v206 = vld [vmem:[%s1 + $0x198] sm:$0xff]
    %v207 = vld [vmem:[%s1 + $0x1a0] sm:$0xff]
    %v208 = vld [vmem:[%s1 + $0x1a8] sm:$0xff]
    %v209 = vld [vmem:[%s1 + $0x1b0] sm:$0xff]
    %v210 = vld [vmem:[%s1 + $0x1b8] sm:$0xff]
    %v211 = vld [vmem:[%s1 + $0x1c0] sm:$0xff]
    %v212 = vld [vmem:[%s1 + $0x1c8] sm:$0xff]
    %v213 = vld [vmem:[%s1 + $0x1d0] sm:$0xff]
    %v214 = vld [vmem:[%s1 + $0x1d8] sm:$0xff]
    %v215 = vld [vmem:[%s1 + $0x1e0] sm:$0xff]
    %v216 = vld [vmem:[%s1 + $0x1e8] sm:$0xff]
    %v217 = vld [vmem:[%s1 + $0x1f0] sm:$0xff]
    %v218 = vld [vmem:[%s1 + $0x1f8] sm:$0xff]
    %v219 = vunpack.c.l.bf16 %v27
    %v220 = vunpack.c.l.bf16 %v28
    %v221 = vunpack.c.l.bf16 %v29
    %v222 = vunpack.c.l.bf16 %v30
    %v223 = vunpack.c.l.bf16 %v31
    %v224 = vunpack.c.l.bf16 %v32
    %v225 = vunpack.c.l.bf16 %v33
    %v226 = vunpack.c.l.bf16 %v34
    %v227 = vunpack.c.l.bf16 %v35
    %v228 = vunpack.c.l.bf16 %v36
    %v229 = vunpack.c.l.bf16 %v37
    %v230 = vunpack.c.l.bf16 %v38
    %v231 = vunpack.c.l.bf16 %v39
    %v232 = vunpack.c.l.bf16 %v40
    %v233 = vunpack.c.l.bf16 %v41
    %v234 = vunpack.c.l.bf16 %v42
    %v235 = vunpack.c.l.bf16 %v43
    %v236 = vunpack.c.l.bf16 %v44
    %v237 = vunpack.c.l.bf16 %v45
    %v238 = vunpack.c.l.bf16 %v46
    %v239 = vunpack.c.l.bf16 %v47
    %v240 = vunpack.c.l.bf16 %v48
    %v241 = vunpack.c.l.bf16 %v49
    %v242 = vunpack.c.l.bf16 %v50
    %v243 = vunpack.c.l.bf16 %v51
    %v244 = vunpack.c.l.bf16 %v52
    %v245 = vunpack.c.l.bf16 %v53
    %v246 = vunpack.c.l.bf16 %v54
    %v247 = vunpack.c.l.bf16 %v55
    %v248 = vunpack.c.l.bf16 %v56
    %v249 = vunpack.c.l.bf16 %v57
    %v250 = vunpack.c.l.bf16 %v58
    %v251 = vunpack.c.l.bf16 %v59
    %v252 = vunpack.c.l.bf16 %v60
    %v253 = vunpack.c.l.bf16 %v61
    %v254 = vunpack.c.l.bf16 %v62
    %v255 = vunpack.c.l.bf16 %v63
    %v256 = vunpack.c.l.bf16 %v64
    %v257 = vunpack.c.l.bf16 %v65
    %v258 = vunpack.c.l.bf16 %v66
    %v259 = vunpack.c.l.bf16 %v67
    %v260 = vunpack.c.l.bf16 %v68
    %v261 = vunpack.c.l.bf16 %v69
    %v262 = vunpack.c.l.bf16 %v70
    %v263 = vunpack.c.l.bf16 %v71
    %v264 = vunpack.c.l.bf16 %v72
    %v265 = vunpack.c.l.bf16 %v73
    %v266 = vunpack.c.l.bf16 %v74
    %v267 = vunpack.c.l.bf16 %v75
    %v268 = vunpack.c.l.bf16 %v76
    %v269 = vunpack.c.l.bf16 %v77
    %v270 = vunpack.c.l.bf16 %v78
    %v271 = vunpack.c.l.bf16 %v79
    %v272 = vunpack.c.l.bf16 %v80
    %v273 = vunpack.c.l.bf16 %v81
    %v274 = vunpack.c.l.bf16 %v82
    %v275 = vunpack.c.l.bf16 %v83
    %v276 = vunpack.c.l.bf16 %v84
    %v277 = vunpack.c.l.bf16 %v85
    %v278 = vunpack.c.l.bf16 %v86
    %v279 = vunpack.c.l.bf16 %v87
    %v280 = vunpack.c.l.bf16 %v88
    %v281 = vunpack.c.l.bf16 %v89
    %v282 = vunpack.c.l.bf16 %v90
    %284 = vset.pattern.permute.xlu0 0
    %285 = vperm.xlu0 %284, %v155
    %v286 = vpop.permute.xlu0 %285
    %289 = vset.pattern.permute.xlu0 0
    %290 = vperm.xlu0 %289, %v156
    %v291 = vpop.permute.xlu0 %290
    %294 = vset.pattern.permute.xlu0 0
    %295 = vperm.xlu0 %294, %v157
    %v296 = vpop.permute.xlu0 %295
    %299 = vset.pattern.permute.xlu0 0
    %300 = vperm.xlu0 %299, %v158
    %v301 = vpop.permute.xlu0 %300
    %304 = vset.pattern.permute.xlu0 0
    %305 = vperm.xlu0 %304, %v159
    %v306 = vpop.permute.xlu0 %305
    %309 = vset.pattern.permute.xlu0 0
    %310 = vperm.xlu0 %309, %v160
    %v311 = vpop.permute.xlu0 %310
    %314 = vset.pattern.permute.xlu0 0
    %315 = vperm.xlu0 %314, %v161
    %v316 = vpop.permute.xlu0 %315
    %319 = vset.pattern.permute.xlu0 0
    %320 = vperm.xlu0 %319, %v162
    %v321 = vpop.permute.xlu0 %320
    %324 = vset.pattern.permute.xlu0 0
    %325 = vperm.xlu0 %324, %v163
    %v326 = vpop.permute.xlu0 %325
    %329 = vset.pattern.permute.xlu0 0
    %330 = vperm.xlu0 %329, %v164
    %v331 = vpop.permute.xlu0 %330
    %334 = vset.pattern.permute.xlu0 0
    %335 = vperm.xlu0 %334, %v165
    %v336 = vpop.permute.xlu0 %335
    %339 = vset.pattern.permute.xlu0 0
    %340 = vperm.xlu0 %339, %v166
    %v341 = vpop.permute.xlu0 %340
    %344 = vset.pattern.permute.xlu0 0
    %345 = vperm.xlu0 %344, %v167
    %v346 = vpop.permute.xlu0 %345
    %349 = vset.pattern.permute.xlu0 0
    %350 = vperm.xlu0 %349, %v168
    %v351 = vpop.permute.xlu0 %350
    %354 = vset.pattern.permute.xlu0 0
    %355 = vperm.xlu0 %354, %v169
    %v356 = vpop.permute.xlu0 %355
    %359 = vset.pattern.permute.xlu0 0
    %360 = vperm.xlu0 %359, %v170
    %v361 = vpop.permute.xlu0 %360
    %364 = vset.pattern.permute.xlu0 0
    %365 = vperm.xlu0 %364, %v171
    %v366 = vpop.permute.xlu0 %365
    %369 = vset.pattern.permute.xlu0 0
    %370 = vperm.xlu0 %369, %v172
    %v371 = vpop.permute.xlu0 %370
    %374 = vset.pattern.permute.xlu0 0
    %375 = vperm.xlu0 %374, %v173
    %v376 = vpop.permute.xlu0 %375
    %379 = vset.pattern.permute.xlu0 0
    %380 = vperm.xlu0 %379, %v174
    %v381 = vpop.permute.xlu0 %380
    %384 = vset.pattern.permute.xlu0 0
    %385 = vperm.xlu0 %384, %v175
    %v386 = vpop.permute.xlu0 %385
    %389 = vset.pattern.permute.xlu0 0
    %390 = vperm.xlu0 %389, %v176
    %v391 = vpop.permute.xlu0 %390
    %394 = vset.pattern.permute.xlu0 0
    %395 = vperm.xlu0 %394, %v177
    %v396 = vpop.permute.xlu0 %395
    %399 = vset.pattern.permute.xlu0 0
    %400 = vperm.xlu0 %399, %v178
    %v401 = vpop.permute.xlu0 %400
    %404 = vset.pattern.permute.xlu0 0
    %405 = vperm.xlu0 %404, %v179
    %v406 = vpop.permute.xlu0 %405
    %409 = vset.pattern.permute.xlu0 0
    %410 = vperm.xlu0 %409, %v180
    %v411 = vpop.permute.xlu0 %410
    %414 = vset.pattern.permute.xlu0 0
    %415 = vperm.xlu0 %414, %v181
    %v416 = vpop.permute.xlu0 %415
    %419 = vset.pattern.permute.xlu0 0
    %420 = vperm.xlu0 %419, %v182
    %v421 = vpop.permute.xlu0 %420
    %424 = vset.pattern.permute.xlu0 0
    %425 = vperm.xlu0 %424, %v183
    %v426 = vpop.permute.xlu0 %425
    %429 = vset.pattern.permute.xlu0 0
    %430 = vperm.xlu0 %429, %v184
    %v431 = vpop.permute.xlu0 %430
    %434 = vset.pattern.permute.xlu0 0
    %435 = vperm.xlu0 %434, %v185
    %v436 = vpop.permute.xlu0 %435
    %439 = vset.pattern.permute.xlu0 0
    %440 = vperm.xlu0 %439, %v186
    %v441 = vpop.permute.xlu0 %440
    %444 = vset.pattern.permute.xlu0 0
    %445 = vperm.xlu0 %444, %v187
    %v446 = vpop.permute.xlu0 %445
    %449 = vset.pattern.permute.xlu0 0
    %450 = vperm.xlu0 %449, %v188
    %v451 = vpop.permute.xlu0 %450
    %454 = vset.pattern.permute.xlu0 0
    %455 = vperm.xlu0 %454, %v189
    %v456 = vpop.permute.xlu0 %455
    %459 = vset.pattern.permute.xlu0 0
    %460 = vperm.xlu0 %459, %v190
    %v461 = vpop.permute.xlu0 %460
    %464 = vset.pattern.permute.xlu0 0
    %465 = vperm.xlu0 %464, %v191
    %v466 = vpop.permute.xlu0 %465
    %469 = vset.pattern.permute.xlu0 0
    %470 = vperm.xlu0 %469, %v192
    %v471 = vpop.permute.xlu0 %470
    %474 = vset.pattern.permute.xlu0 0
    %475 = vperm.xlu0 %474, %v193
    %v476 = vpop.permute.xlu0 %475
    %479 = vset.pattern.permute.xlu0 0
    %480 = vperm.xlu0 %479, %v194
    %v481 = vpop.permute.xlu0 %480
    %484 = vset.pattern.permute.xlu0 0
    %485 = vperm.xlu0 %484, %v195
    %v486 = vpop.permute.xlu0 %485
    %489 = vset.pattern.permute.xlu0 0
    %490 = vperm.xlu0 %489, %v196
    %v491 = vpop.permute.xlu0 %490
    %494 = vset.pattern.permute.xlu0 0
    %495 = vperm.xlu0 %494, %v197
    %v496 = vpop.permute.xlu0 %495
    %499 = vset.pattern.permute.xlu0 0
    %500 = vperm.xlu0 %499, %v198
    %v501 = vpop.permute.xlu0 %500
    %504 = vset.pattern.permute.xlu0 0
    %505 = vperm.xlu0 %504, %v199
    %v506 = vpop.permute.xlu0 %505
    %509 = vset.pattern.permute.xlu0 0
    %510 = vperm.xlu0 %509, %v200
    %v511 = vpop.permute.xlu0 %510
    %514 = vset.pattern.permute.xlu0 0
    %515 = vperm.xlu0 %514, %v201
    %v516 = vpop.permute.xlu0 %515
    %519 = vset.pattern.permute.xlu0 0
    %520 = vperm.xlu0 %519, %v202
    %v521 = vpop.permute.xlu0 %520
    %524 = vset.pattern.permute.xlu0 0
    %525 = vperm.xlu0 %524, %v203
    %v526 = vpop.permute.xlu0 %525
    %529 = vset.pattern.permute.xlu0 0
    %530 = vperm.xlu0 %529, %v204
    %v531 = vpop.permute.xlu0 %530
    %534 = vset.pattern.permute.xlu0 0
    %535 = vperm.xlu0 %534, %v205
    %v536 = vpop.permute.xlu0 %535
    %539 = vset.pattern.permute.xlu0 0
    %540 = vperm.xlu0 %539, %v206
    %v541 = vpop.permute.xlu0 %540
    %544 = vset.pattern.permute.xlu0 0
    %545 = vperm.xlu0 %544, %v207
    %v546 = vpop.permute.xlu0 %545
    %549 = vset.pattern.permute.xlu0 0
    %550 = vperm.xlu0 %549, %v208
    %v551 = vpop.permute.xlu0 %550
    %554 = vset.pattern.permute.xlu0 0
    %555 = vperm.xlu0 %554, %v209
    %v556 = vpop.permute.xlu0 %555
    %559 = vset.pattern.permute.xlu0 0
    %560 = vperm.xlu0 %559, %v210
    %v561 = vpop.permute.xlu0 %560
    %564 = vset.pattern.permute.xlu0 0
    %565 = vperm.xlu0 %564, %v211
    %v566 = vpop.permute.xlu0 %565
    %569 = vset.pattern.permute.xlu0 0
    %570 = vperm.xlu0 %569, %v212
    %v571 = vpop.permute.xlu0 %570
    %574 = vset.pattern.permute.xlu0 0
    %575 = vperm.xlu0 %574, %v213
    %v576 = vpop.permute.xlu0 %575
    %579 = vset.pattern.permute.xlu0 0
    %580 = vperm.xlu0 %579, %v214
    %v581 = vpop.permute.xlu0 %580
    %584 = vset.pattern.permute.xlu0 0
    %585 = vperm.xlu0 %584, %v215
    %v586 = vpop.permute.xlu0 %585
    %589 = vset.pattern.permute.xlu0 0
    %590 = vperm.xlu0 %589, %v216
    %v591 = vpop.permute.xlu0 %590
    %594 = vset.pattern.permute.xlu0 0
    %595 = vperm.xlu0 %594, %v217
    %v596 = vpop.permute.xlu0 %595
    %599 = vset.pattern.permute.xlu0 0
    %600 = vperm.xlu0 %599, %v218
    %v601 = vpop.permute.xlu0 %600
    %v603 = vmul.f32 %v219, %v286
    %v604 = vmul.f32 %v220, %v291
    %v605 = vmul.f32 %v221, %v296
    %v606 = vmul.f32 %v222, %v301
    %v607 = vmul.f32 %v223, %v306
    %v608 = vmul.f32 %v224, %v311
    %v609 = vmul.f32 %v225, %v316
    %v610 = vmul.f32 %v226, %v321
    %v611 = vmul.f32 %v227, %v326
    %v612 = vmul.f32 %v228, %v331
    %v613 = vmul.f32 %v229, %v336
    %v614 = vmul.f32 %v230, %v341
    %v615 = vmul.f32 %v231, %v346
    %v616 = vmul.f32 %v232, %v351
    %v617 = vmul.f32 %v233, %v356
    %v618 = vmul.f32 %v234, %v361
    %v619 = vmul.f32 %v235, %v366
    %v620 = vmul.f32 %v236, %v371
    %v621 = vmul.f32 %v237, %v376
    %v622 = vmul.f32 %v238, %v381
    %v623 = vmul.f32 %v239, %v386
    %v624 = vmul.f32 %v240, %v391
    %v625 = vmul.f32 %v241, %v396
    %v626 = vmul.f32 %v242, %v401
    %v627 = vmul.f32 %v243, %v406
    %v628 = vmul.f32 %v244, %v411
    %v629 = vmul.f32 %v245, %v416
    %v630 = vmul.f32 %v246, %v421
    %v631 = vmul.f32 %v247, %v426
    %v632 = vmul.f32 %v248, %v431
    %v633 = vmul.f32 %v249, %v436
    %v634 = vmul.f32 %v250, %v441
    %v635 = vmul.f32 %v251, %v446
    %v636 = vmul.f32 %v252, %v451
    %v637 = vmul.f32 %v253, %v456
    %v638 = vmul.f32 %v254, %v461
    %v639 = vmul.f32 %v255, %v466
    %v640 = vmul.f32 %v256, %v471
    %v641 = vmul.f32 %v257, %v476
    %v642 = vmul.f32 %v258, %v481
    %v643 = vmul.f32 %v259, %v486
    %v644 = vmul.f32 %v260, %v491
    %v645 = vmul.f32 %v261, %v496
    %v646 = vmul.f32 %v262, %v501
    %v647 = vmul.f32 %v263, %v506
    %v648 = vmul.f32 %v264, %v511
    %v649 = vmul.f32 %v265, %v516
    %v650 = vmul.f32 %v266, %v521
    %v651 = vmul.f32 %v267, %v526
    %v652 = vmul.f32 %v268, %v531
    %v653 = vmul.f32 %v269, %v536
    %v654 = vmul.f32 %v270, %v541
    %v655 = vmul.f32 %v271, %v546
    %v656 = vmul.f32 %v272, %v551
    %v657 = vmul.f32 %v273, %v556
    %v658 = vmul.f32 %v274, %v561
    %v659 = vmul.f32 %v275, %v566
    %v660 = vmul.f32 %v276, %v571
    %v661 = vmul.f32 %v277, %v576
    %v662 = vmul.f32 %v278, %v581
    %v663 = vmul.f32 %v279, %v586
    %v664 = vmul.f32 %v280, %v591
    %v665 = vmul.f32 %v281, %v596
    %v666 = vmul.f32 %v282, %v601
    %v667 = vadd.f32 %v603, %v604
    %v668 = vadd.f32 %v667, %v605
    %v669 = vadd.f32 %v668, %v606
    %v670 = vadd.f32 %v669, %v607
    %v671 = vadd.f32 %v670, %v608
    %v672 = vadd.f32 %v671, %v609
    %v673 = vadd.f32 %v672, %v610
    %v674 = vadd.f32 %v673, %v611
    %v675 = vadd.f32 %v674, %v612
    %v676 = vadd.f32 %v675, %v613
    %v677 = vadd.f32 %v676, %v614
    %v678 = vadd.f32 %v677, %v615
    %v679 = vadd.f32 %v678, %v616
    %v680 = vadd.f32 %v679, %v617
    %v681 = vadd.f32 %v680, %v618
    %v682 = vadd.f32 %v681, %v619
    %v683 = vadd.f32 %v682, %v620
    %v684 = vadd.f32 %v683, %v621
    %v685 = vadd.f32 %v684, %v622
    %v686 = vadd.f32 %v685, %v623
    %v687 = vadd.f32 %v686, %v624
    %v688 = vadd.f32 %v687, %v625
    %v689 = vadd.f32 %v688, %v626
    %v690 = vadd.f32 %v689, %v627
    %v691 = vadd.f32 %v690, %v628
    %v692 = vadd.f32 %v691, %v629
    %v693 = vadd.f32 %v692, %v630
    %v694 = vadd.f32 %v693, %v631
    %v695 = vadd.f32 %v694, %v632
    %v696 = vadd.f32 %v695, %v633
    %v697 = vadd.f32 %v696, %v634
    %v698 = vadd.f32 %v697, %v635
    %v699 = vadd.f32 %v698, %v636
    %v700 = vadd.f32 %v699, %v637
    %v701 = vadd.f32 %v700, %v638
    %v702 = vadd.f32 %v701, %v639
    %v703 = vadd.f32 %v702, %v640
    %v704 = vadd.f32 %v703, %v641
    %v705 = vadd.f32 %v704, %v642
    %v706 = vadd.f32 %v705, %v643
    %v707 = vadd.f32 %v706, %v644
    %v708 = vadd.f32 %v707, %v645
    %v709 = vadd.f32 %v708, %v646
    %v710 = vadd.f32 %v709, %v647
    %v711 = vadd.f32 %v710, %v648
    %v712 = vadd.f32 %v711, %v649
    %v713 = vadd.f32 %v712, %v650
    %v714 = vadd.f32 %v713, %v651
    %v715 = vadd.f32 %v714, %v652
    %v716 = vadd.f32 %v715, %v653
    %v717 = vadd.f32 %v716, %v654
    %v718 = vadd.f32 %v717, %v655
    %v719 = vadd.f32 %v718, %v656
    %v720 = vadd.f32 %v719, %v657
    %v721 = vadd.f32 %v720, %v658
    %v722 = vadd.f32 %v721, %v659
    %v723 = vadd.f32 %v722, %v660
    %v724 = vadd.f32 %v723, %v661
    %v725 = vadd.f32 %v724, %v662
    %v726 = vadd.f32 %v725, %v663
    %v727 = vadd.f32 %v726, %v664
    %v728 = vadd.f32 %v727, %v665
    %v729 = vadd.f32 %v728, %v666
    %v730 = vrot.slane %v729, 4
    %v731 = vadd.f32 %v729, %v730
    %v732 = vrot.slane %v731, 2
    %v733 = vadd.f32 %v731, %v732
    %v734 = vrot.slane %v733, 1
    %v735 = vadd.f32 %v733, %v734
    %v736 = vxor.u32 %v735, 2147483648
    %v737 = vmul.f32 %v736, 1.442695
    %v738 = vpow.pop %v737
    %v739 = vadd.f32 %v738, 1.0
    %v740 = vrcp.pop %v739
    %v741 = vmul.f32 1.0, %v740
    %v742 = vld [vmem:[%s2] sm:$0xff]
    %v743 = vld [vmem:[%s2 + $0x8] sm:$0xff]
    %v744 = vld [vmem:[%s2 + $0x10] sm:$0xff]
    %v745 = vld [vmem:[%s2 + $0x18] sm:$0xff]
    %v746 = vld [vmem:[%s2 + $0x20] sm:$0xff]
    %v747 = vld [vmem:[%s2 + $0x28] sm:$0xff]
    %v748 = vld [vmem:[%s2 + $0x30] sm:$0xff]
    %v749 = vld [vmem:[%s2 + $0x38] sm:$0xff]
    %v750 = vld [vmem:[%s2 + $0x40] sm:$0xff]
    %v751 = vld [vmem:[%s2 + $0x48] sm:$0xff]
    %v752 = vld [vmem:[%s2 + $0x50] sm:$0xff]
    %v753 = vld [vmem:[%s2 + $0x58] sm:$0xff]
    %v754 = vld [vmem:[%s2 + $0x60] sm:$0xff]
    %v755 = vld [vmem:[%s2 + $0x68] sm:$0xff]
    %v756 = vld [vmem:[%s2 + $0x70] sm:$0xff]
    %v757 = vld [vmem:[%s2 + $0x78] sm:$0xff]
    %758 = vmatprep.subr.mxu0 0.0
    %759 = vmatpush1.xpose.msra.mxu0 %v742
    %760 = vmatprep.subr.mxu0 0.0
    %761 = vmatpush1.xpose.msra.mxu0 %v743
    %762 = vmatprep.subr.mxu0 0.0
    %763 = vmatpush1.xpose.msra.mxu0 %v744
    %764 = vmatprep.subr.mxu0 0.0
    %765 = vmatpush1.xpose.msra.mxu0 %v745
    %766 = vmatprep.subr.mxu0 0.0
    %767 = vmatpush1.xpose.msra.mxu0 %v746
    %768 = vmatprep.subr.mxu0 0.0
    %769 = vmatpush1.xpose.msra.mxu0 %v747
    %770 = vmatprep.subr.mxu0 0.0
    %771 = vmatpush1.xpose.msra.mxu0 %v748
    %772 = vmatprep.subr.mxu0 0.0
    %773 = vmatpush1.xpose.msra.mxu0 %v749
    %774 = vmatprep.subr.mxu0 0.0
    %775 = vmatpush1.xpose.msra.mxu0 %v750
    %776 = vmatprep.subr.mxu0 0.0
    %777 = vmatpush1.xpose.msra.mxu0 %v751
    %778 = vmatprep.subr.mxu0 0.0
    %779 = vmatpush1.xpose.msra.mxu0 %v752
    %780 = vmatprep.subr.mxu0 0.0
    %781 = vmatpush1.xpose.msra.mxu0 %v753
    %782 = vmatprep.subr.mxu0 0.0
    %783 = vmatpush1.xpose.msra.mxu0 %v754
    %784 = vmatprep.subr.mxu0 0.0
    %785 = vmatpush1.xpose.msra.mxu0 %v755
    %786 = vmatprep.subr.mxu0 0.0
    %787 = vmatpush1.xpose.msra.mxu0 %v756
    %788 = vmatprep.subr.mxu0 0.0
    %789 = vmatpush1.xpose.msra.mxu0 %v757
    %790 = vmatprep.subr.mxu0 0.0
    %791 = vmatpush1.xpose.msra.mxu0 0.0
    %792 = vmatprep.subr.mxu0 0.0
    %793 = vmatpush1.xpose.msra.mxu0 0.0
    %794 = vmatprep.subr.mxu0 0.0
    %795 = vmatpush1.xpose.msra.mxu0 0.0
    %796 = vmatprep.subr.mxu0 0.0
    %797 = vmatpush1.xpose.msra.mxu0 0.0
    %798 = vmatprep.subr.mxu0 0.0
    %799 = vmatpush1.xpose.msra.mxu0 0.0
    %800 = vmatprep.subr.mxu0 0.0
    %801 = vmatpush1.xpose.msra.mxu0 0.0
    %802 = vmatprep.subr.mxu0 0.0
    %803 = vmatpush1.xpose.msra.mxu0 0.0
    %804 = vmatprep.subr.mxu0 0.0
    %805 = vmatpush1.xpose.msra.mxu0 0.0
    %806 = vmatprep.subr.mxu0 0.0
    %807 = vmatpush1.xpose.msra.mxu0 0.0
    %808 = vmatprep.subr.mxu0 0.0
    %809 = vmatpush1.xpose.msra.mxu0 0.0
    %810 = vmatprep.subr.mxu0 0.0
    %811 = vmatpush1.xpose.msra.mxu0 0.0
    %812 = vmatprep.subr.mxu0 0.0
    %813 = vmatpush1.xpose.msra.mxu0 0.0
    %814 = vmatprep.subr.mxu0 0.0
    %815 = vmatpush1.xpose.msra.mxu0 0.0
    %816 = vmatprep.subr.mxu0 0.0
    %817 = vmatpush1.xpose.msra.mxu0 0.0
    %818 = vmatprep.subr.mxu0 0.0
    %819 = vmatpush1.xpose.msra.mxu0 0.0
    %820 = vmatprep.subr.mxu0 0.0
    %821 = vmatpush1.xpose.msra.mxu0 0.0
    %822 = vmatprep.mubr.f32.mxu0 0.0
    %823 = vmatmul.mubr.f32.gmra.mrb[0].mxu0 %v741
    %v824 = vpop.f32.mrb[0].mxu0
    %v825 = vadd.f32 0.0, %v824
    %v826 = vpop.f32.mrb[0].mxu0
    %827 = vdwg.mxu0
    %v828 = vpack.c.bf16 %v825, %v825
    %v829 = vld [vmem:[#allocation2] sm:$0x1]
    %831 = vset.pattern.permute.xlu0 0
    %832 = vperm.xlu0 %831, %v829
    %v833 = vpop.permute.xlu0 %832
    %v835 = vlaneseq
    %v836 = vshrl.u32 %v835, 7
    %v837 = vsub.s32 0, %v836
    %v838 = vrot.slane %v833, %v837
    %v903 = vunpack.c.l.b16 %v27
    %v904 = vunpack.c.l.b16 %v28
    %v905 = vunpack.c.l.b16 %v29
    %v906 = vunpack.c.l.b16 %v30
    %v907 = vunpack.c.l.b16 %v31
    %v908 = vunpack.c.l.b16 %v32
    %v909 = vunpack.c.l.b16 %v33
    %v910 = vunpack.c.l.b16 %v34
    %v911 = vunpack.c.l.b16 %v35
    %v912 = vunpack.c.l.b16 %v36
    %v913 = vunpack.c.l.b16 %v37
    %v914 = vunpack.c.l.b16 %v38
    %v915 = vunpack.c.l.b16 %v39
    %v916 = vunpack.c.l.b16 %v40
    %v917 = vunpack.c.l.b16 %v41
    %v918 = vunpack.c.l.b16 %v42
    %v919 = vunpack.c.l.b16 %v43
    %v920 = vunpack.c.l.b16 %v44
    %v921 = vunpack.c.l.b16 %v45
    %v922 = vunpack.c.l.b16 %v46
    %v923 = vunpack.c.l.b16 %v47
    %v924 = vunpack.c.l.b16 %v48
    %v925 = vunpack.c.l.b16 %v49
    %v926 = vunpack.c.l.b16 %v50
    %v927 = vunpack.c.l.b16 %v51
    %v928 = vunpack.c.l.b16 %v52
    %v929 = vunpack.c.l.b16 %v53
    %v930 = vunpack.c.l.b16 %v54
    %v931 = vunpack.c.l.b16 %v55
    %v932 = vunpack.c.l.b16 %v56
    %v933 = vunpack.c.l.b16 %v57
    %v934 = vunpack.c.l.b16 %v58
    %v935 = vunpack.c.l.b16 %v59
    %v936 = vunpack.c.l.b16 %v60
    %v937 = vunpack.c.l.b16 %v61
    %v938 = vunpack.c.l.b16 %v62
    %v939 = vunpack.c.l.b16 %v63
    %v940 = vunpack.c.l.b16 %v64
    %v941 = vunpack.c.l.b16 %v65
    %v942 = vunpack.c.l.b16 %v66
    %v943 = vunpack.c.l.b16 %v67
    %v944 = vunpack.c.l.b16 %v68
    %v945 = vunpack.c.l.b16 %v69
    %v946 = vunpack.c.l.b16 %v70
    %v947 = vunpack.c.l.b16 %v71
    %v948 = vunpack.c.l.b16 %v72
    %v949 = vunpack.c.l.b16 %v73
    %v950 = vunpack.c.l.b16 %v74
    %v951 = vunpack.c.l.b16 %v75
    %v952 = vunpack.c.l.b16 %v76
    %v953 = vunpack.c.l.b16 %v77
    %v954 = vunpack.c.l.b16 %v78
    %v955 = vunpack.c.l.b16 %v79
    %v956 = vunpack.c.l.b16 %v80
    %v957 = vunpack.c.l.b16 %v81
    %v958 = vunpack.c.l.b16 %v82
    %v959 = vunpack.c.l.b16 %v83
    %v960 = vunpack.c.l.b16 %v84
    %v961 = vunpack.c.l.b16 %v85
    %v962 = vunpack.c.l.b16 %v86
    %v963 = vunpack.c.l.b16 %v87
    %v964 = vunpack.c.l.b16 %v88
    %v965 = vunpack.c.l.b16 %v89
    %v966 = vunpack.c.l.b16 %v90
    %v967 = vpack.c.b16 %v904, %v903
    %v968 = vpack.c.b16 %v906, %v905
    %v969 = vpack.c.b16 %v908, %v907
    %v970 = vpack.c.b16 %v910, %v909
    %v971 = vpack.c.b16 %v912, %v911
    %v972 = vpack.c.b16 %v914, %v913
    %v973 = vpack.c.b16 %v916, %v915
    %v974 = vpack.c.b16 %v918, %v917
    %v975 = vpack.c.b16 %v920, %v919
    %v976 = vpack.c.b16 %v922, %v921
    %v977 = vpack.c.b16 %v924, %v923
    %v978 = vpack.c.b16 %v926, %v925
    %v979 = vpack.c.b16 %v928, %v927
    %v980 = vpack.c.b16 %v930, %v929
    %v981 = vpack.c.b16 %v932, %v931
    %v982 = vpack.c.b16 %v934, %v933
    %v983 = vpack.c.b16 %v936, %v935
    %v984 = vpack.c.b16 %v938, %v937
    %v985 = vpack.c.b16 %v940, %v939
    %v986 = vpack.c.b16 %v942, %v941
    %v987 = vpack.c.b16 %v944, %v943
    %v988 = vpack.c.b16 %v946, %v945
    %v989 = vpack.c.b16 %v948, %v947
    %v990 = vpack.c.b16 %v950, %v949
    %v991 = vpack.c.b16 %v952, %v951
    %v992 = vpack.c.b16 %v954, %v953
    %v993 = vpack.c.b16 %v956, %v955
    %v994 = vpack.c.b16 %v958, %v957
    %v995 = vpack.c.b16 %v960, %v959
    %v996 = vpack.c.b16 %v962, %v961
    %v997 = vpack.c.b16 %v964, %v963
    %v998 = vpack.c.b16 %v966, %v965
    %1031 = vmatprep.subr.bf16.mxu0 0
    %1032 = vmatpush1.bf16.xpose.msra.mxu0 %v967
    %1033 = vmatprep.subr.bf16.mxu0 0
    %1034 = vmatpush1.bf16.xpose.msra.mxu0 %v968
    %1035 = vmatprep.subr.bf16.mxu0 0
    %1036 = vmatpush1.bf16.xpose.msra.mxu0 %v969
    %1037 = vmatprep.subr.bf16.mxu0 0
    %1038 = vmatpush1.bf16.xpose.msra.mxu0 %v970
    %1039 = vmatprep.subr.bf16.mxu0 0
    %1040 = vmatpush1.bf16.xpose.msra.mxu0 %v971
    %1041 = vmatprep.subr.bf16.mxu0 0
    %1042 = vmatpush1.bf16.xpose.msra.mxu0 %v972
    %1043 = vmatprep.subr.bf16.mxu0 0
    %1044 = vmatpush1.bf16.xpose.msra.mxu0 %v973
    %1045 = vmatprep.subr.bf16.mxu0 0
    %1046 = vmatpush1.bf16.xpose.msra.mxu0 %v974
    %1047 = vmatprep.subr.bf16.mxu0 0
    %1048 = vmatpush1.bf16.xpose.msra.mxu0 %v975
    %1049 = vmatprep.subr.bf16.mxu0 0
    %1050 = vmatpush1.bf16.xpose.msra.mxu0 %v976
    %1051 = vmatprep.subr.bf16.mxu0 0
    %1052 = vmatpush1.bf16.xpose.msra.mxu0 %v977
    %1053 = vmatprep.subr.bf16.mxu0 0
    %1054 = vmatpush1.bf16.xpose.msra.mxu0 %v978
    %1055 = vmatprep.subr.bf16.mxu0 0
    %1056 = vmatpush1.bf16.xpose.msra.mxu0 %v979
    %1057 = vmatprep.subr.bf16.mxu0 0
    %1058 = vmatpush1.bf16.xpose.msra.mxu0 %v980
    %1059 = vmatprep.subr.bf16.mxu0 0
    %1060 = vmatpush1.bf16.xpose.msra.mxu0 %v981
    %1061 = vmatprep.subr.bf16.mxu0 0
    %1062 = vmatpush1.bf16.xpose.msra.mxu0 %v982
    %1063 = vmatprep.mubr.bf16.mxu0 0
    %1064 = vmatmul.mubr.bf16.gmra.mrb[0].mxu0 %v828
    %v1065 = vpop.f32.mrb[0].mxu0
    %v1066 = vadd.f32 %v838, %v1065
    %v1067 = vpop.f32.mrb[0].mxu0
    %v1068 = vadd.f32 %v838, %v1067
    %v1069 = vpop.f32.mrb[0].mxu0
    %v1070 = vpop.f32.mrb[0].mxu0
    %1071 = vdwg.mxu0
    %1072 = vmatprep.subr.bf16.mxu0 0
    %1073 = vmatpush1.bf16.xpose.msra.mxu0 %v983
    %1074 = vmatprep.subr.bf16.mxu0 0
    %1075 = vmatpush1.bf16.xpose.msra.mxu0 %v984
    %1076 = vmatprep.subr.bf16.mxu0 0
    %1077 = vmatpush1.bf16.xpose.msra.mxu0 %v985
    %1078 = vmatprep.subr.bf16.mxu0 0
    %1079 = vmatpush1.bf16.xpose.msra.mxu0 %v986
    %1080 = vmatprep.subr.bf16.mxu0 0
    %1081 = vmatpush1.bf16.xpose.msra.mxu0 %v987
    %1082 = vmatprep.subr.bf16.mxu0 0
    %1083 = vmatpush1.bf16.xpose.msra.mxu0 %v988
    %1084 = vmatprep.subr.bf16.mxu0 0
    %1085 = vmatpush1.bf16.xpose.msra.mxu0 %v989
    %1086 = vmatprep.subr.bf16.mxu0 0
    %1087 = vmatpush1.bf16.xpose.msra.mxu0 %v990
    %1088 = vmatprep.subr.bf16.mxu0 0
    %1089 = vmatpush1.bf16.xpose.msra.mxu0 %v991
    %1090 = vmatprep.subr.bf16.mxu0 0
    %1091 = vmatpush1.bf16.xpose.msra.mxu0 %v992
    %1092 = vmatprep.subr.bf16.mxu0 0
    %1093 = vmatpush1.bf16.xpose.msra.mxu0 %v993
    %1094 = vmatprep.subr.bf16.mxu0 0
    %1095 = vmatpush1.bf16.xpose.msra.mxu0 %v994
    %1096 = vmatprep.subr.bf16.mxu0 0
    %1097 = vmatpush1.bf16.xpose.msra.mxu0 %v995
    %1098 = vmatprep.subr.bf16.mxu0 0
    %1099 = vmatpush1.bf16.xpose.msra.mxu0 %v996
    %1100 = vmatprep.subr.bf16.mxu0 0
    %1101 = vmatpush1.bf16.xpose.msra.mxu0 %v997
    %1102 = vmatprep.subr.bf16.mxu0 0
    %1103 = vmatpush1.bf16.xpose.msra.mxu0 %v998
    %1104 = vmatprep.mubr.bf16.mxu0 0
    %1105 = vmatmul.mubr.bf16.gmra.mrb[0].mxu0 %v828
    %v1106 = vpop.f32.mrb[0].mxu0
    %v1107 = vadd.f32 %v838, %v1106
    %v1108 = vpop.f32.mrb[0].mxu0
    %v1109 = vadd.f32 %v838, %v1108
    %v1110 = vpop.f32.mrb[0].mxu0
    %v1111 = vpop.f32.mrb[0].mxu0
    %1112 = vdwg.mxu0
    %v1113 = vld [vmem:[%s4] sm:$0xf]
    %v1115 = vlaneseq
    %v1116 = vshrl.u32 %v1115, 7
    %v1117 = vsub.s32 0, %v1116
    %v1118 = vrot.slane %v1113, %v1117
    %v1119 = vlaneseq
    %v1120 = vshrl.u32 %v1119, 7
    %v1121 = vsub.s32 1, %v1120
    %v1122 = vrot.slane %v1113, %v1121
    %v1123 = vlaneseq
    %v1124 = vshrl.u32 %v1123, 7
    %v1125 = vsub.s32 2, %v1124
    %v1126 = vrot.slane %v1113, %v1125
    %v1127 = vlaneseq
    %v1128 = vshrl.u32 %v1127, 7
    %v1129 = vsub.s32 3, %v1128
    %v1130 = vrot.slane %v1113, %v1129
    %v1135 = vadd.f32 %v1066, %v1118
    %v1136 = vadd.f32 %v1068, %v1122
    %v1137 = vadd.f32 %v1107, %v1126
    %v1138 = vadd.f32 %v1109, %v1130
    %v1143 = vcombine.low %v1135, %v1136
    %v1144 = vcombine.low %v1137, %v1138
    %v1146 = vunpack.c.l.s4 1966171168
    %v1147 = vunpack.c.0.s8 %v1146
    %v1148 = vlaneseq
    %v1149 = vshrl.u32 %v1148, 7
    %v1150 = vsub.s32 %v1147, %v1149
    %v1151 = vrot.slane %v1143, %v1150
    %v1153 = vunpack.c.l.s4 1966171168
    %v1154 = vunpack.c.0.s8 %v1153
    %v1155 = vlaneseq
    %v1156 = vshrl.u32 %v1155, 7
    %v1157 = vsub.s32 %v1154, %v1156
    %v1158 = vrot.slane %v1144, %v1157
    %v1159 = vcombine.low %v1151, %v1158
    %v1161 = vunpack.c.l.s4 1966171168
    %v1162 = vunpack.c.0.s8 %v1161
    %v1163 = vlaneseq
    %v1164 = vshrl.u32 %v1163, 7
    %v1165 = vsub.s32 %v1162, %v1164
    %v1166 = vrot.slane %v1159, %v1165
    %v1168 = vlaneseq
    %vm1169 = vcmp.ge.s32.totalorder %v1168, 0
    %vm1170 = vcmp.lt.s32.totalorder %v1168, 512
    %vm1171 = vmand %vm1169, %vm1170
    %1172 = vst.msk [vmem:[#allocation3] sm:$0xf] %vm1171, %v1166
    %v1237 = vunpack.c.l.b16 %v91
    %v1238 = vunpack.c.l.b16 %v92
    %v1239 = vunpack.c.l.b16 %v93
    %v1240 = vunpack.c.l.b16 %v94
    %v1241 = vunpack.c.l.b16 %v95
    %v1242 = vunpack.c.l.b16 %v96
    %v1243 = vunpack.c.l.b16 %v97
    %v1244 = vunpack.c.l.b16 %v98
    %v1245 = vunpack.c.l.b16 %v99
    %v1246 = vunpack.c.l.b16 %v100
    %v1247 = vunpack.c.l.b16 %v101
    %v1248 = vunpack.c.l.b16 %v102
    %v1249 = vunpack.c.l.b16 %v103
    %v1250 = vunpack.c.l.b16 %v104
    %v1251 = vunpack.c.l.b16 %v105
    %v1252 = vunpack.c.l.b16 %v106
    %v1253 = vunpack.c.l.b16 %v107
    %v1254 = vunpack.c.l.b16 %v108
    %v1255 = vunpack.c.l.b16 %v109
    %v1256 = vunpack.c.l.b16 %v110
    %v1257 = vunpack.c.l.b16 %v111
    %v1258 = vunpack.c.l.b16 %v112
    %v1259 = vunpack.c.l.b16 %v113
    %v1260 = vunpack.c.l.b16 %v114
    %v1261 = vunpack.c.l.b16 %v115
    %v1262 = vunpack.c.l.b16 %v116
    %v1263 = vunpack.c.l.b16 %v117
    %v1264 = vunpack.c.l.b16 %v118
    %v1265 = vunpack.c.l.b16 %v119
    %v1266 = vunpack.c.l.b16 %v120
    %v1267 = vunpack.c.l.b16 %v121
    %v1268 = vunpack.c.l.b16 %v122
    %v1269 = vunpack.c.l.b16 %v123
    %v1270 = vunpack.c.l.b16 %v124
    %v1271 = vunpack.c.l.b16 %v125
    %v1272 = vunpack.c.l.b16 %v126
    %v1273 = vunpack.c.l.b16 %v127
    %v1274 = vunpack.c.l.b16 %v128
    %v1275 = vunpack.c.l.b16 %v129
    %v1276 = vunpack.c.l.b16 %v130
    %v1277 = vunpack.c.l.b16 %v131
    %v1278 = vunpack.c.l.b16 %v132
    %v1279 = vunpack.c.l.b16 %v133
    %v1280 = vunpack.c.l.b16 %v134
    %v1281 = vunpack.c.l.b16 %v135
    %v1282 = vunpack.c.l.b16 %v136
    %v1283 = vunpack.c.l.b16 %v137
    %v1284 = vunpack.c.l.b16 %v138
    %v1285 = vunpack.c.l.b16 %v139
    %v1286 = vunpack.c.l.b16 %v140
    %v1287 = vunpack.c.l.b16 %v141
    %v1288 = vunpack.c.l.b16 %v142
    %v1289 = vunpack.c.l.b16 %v143
    %v1290 = vunpack.c.l.b16 %v144
    %v1291 = vunpack.c.l.b16 %v145
    %v1292 = vunpack.c.l.b16 %v146
    %v1293 = vunpack.c.l.b16 %v147
    %v1294 = vunpack.c.l.b16 %v148
    %v1295 = vunpack.c.l.b16 %v149
    %v1296 = vunpack.c.l.b16 %v150
    %v1297 = vunpack.c.l.b16 %v151
    %v1298 = vunpack.c.l.b16 %v152
    %v1299 = vunpack.c.l.b16 %v153
    %v1300 = vunpack.c.l.b16 %v154
    %v1301 = vpack.c.b16 %v1238, %v1237
    %v1302 = vpack.c.b16 %v1240, %v1239
    %v1303 = vpack.c.b16 %v1242, %v1241
    %v1304 = vpack.c.b16 %v1244, %v1243
    %v1305 = vpack.c.b16 %v1246, %v1245
    %v1306 = vpack.c.b16 %v1248, %v1247
    %v1307 = vpack.c.b16 %v1250, %v1249
    %v1308 = vpack.c.b16 %v1252, %v1251
    %v1309 = vpack.c.b16 %v1254, %v1253
    %v1310 = vpack.c.b16 %v1256, %v1255
    %v1311 = vpack.c.b16 %v1258, %v1257
    %v1312 = vpack.c.b16 %v1260, %v1259
    %v1313 = vpack.c.b16 %v1262, %v1261
    %v1314 = vpack.c.b16 %v1264, %v1263
    %v1315 = vpack.c.b16 %v1266, %v1265
    %v1316 = vpack.c.b16 %v1268, %v1267
    %v1317 = vpack.c.b16 %v1270, %v1269
    %v1318 = vpack.c.b16 %v1272, %v1271
    %v1319 = vpack.c.b16 %v1274, %v1273
    %v1320 = vpack.c.b16 %v1276, %v1275
    %v1321 = vpack.c.b16 %v1278, %v1277
    %v1322 = vpack.c.b16 %v1280, %v1279
    %v1323 = vpack.c.b16 %v1282, %v1281
    %v1324 = vpack.c.b16 %v1284, %v1283
    %v1325 = vpack.c.b16 %v1286, %v1285
    %v1326 = vpack.c.b16 %v1288, %v1287
    %v1327 = vpack.c.b16 %v1290, %v1289
    %v1328 = vpack.c.b16 %v1292, %v1291
    %v1329 = vpack.c.b16 %v1294, %v1293
    %v1330 = vpack.c.b16 %v1296, %v1295
    %v1331 = vpack.c.b16 %v1298, %v1297
    %v1332 = vpack.c.b16 %v1300, %v1299
    %1365 = vmatprep.subr.bf16.mxu0 0
    %1366 = vmatpush1.bf16.xpose.msra.mxu0 %v1301
    %1367 = vmatprep.subr.bf16.mxu0 0
    %1368 = vmatpush1.bf16.xpose.msra.mxu0 %v1302
    %1369 = vmatprep.subr.bf16.mxu0 0
    %1370 = vmatpush1.bf16.xpose.msra.mxu0 %v1303
    %1371 = vmatprep.subr.bf16.mxu0 0
    %1372 = vmatpush1.bf16.xpose.msra.mxu0 %v1304
    %1373 = vmatprep.subr.bf16.mxu0 0
    %1374 = vmatpush1.bf16.xpose.msra.mxu0 %v1305
    %1375 = vmatprep.subr.bf16.mxu0 0
    %1376 = vmatpush1.bf16.xpose.msra.mxu0 %v1306
    %1377 = vmatprep.subr.bf16.mxu0 0
    %1378 = vmatpush1.bf16.xpose.msra.mxu0 %v1307
    %1379 = vmatprep.subr.bf16.mxu0 0
    %1380 = vmatpush1.bf16.xpose.msra.mxu0 %v1308
    %1381 = vmatprep.subr.bf16.mxu0 0
    %1382 = vmatpush1.bf16.xpose.msra.mxu0 %v1309
    %1383 = vmatprep.subr.bf16.mxu0 0
    %1384 = vmatpush1.bf16.xpose.msra.mxu0 %v1310
    %1385 = vmatprep.subr.bf16.mxu0 0
    %1386 = vmatpush1.bf16.xpose.msra.mxu0 %v1311
    %1387 = vmatprep.subr.bf16.mxu0 0
    %1388 = vmatpush1.bf16.xpose.msra.mxu0 %v1312
    %1389 = vmatprep.subr.bf16.mxu0 0
    %1390 = vmatpush1.bf16.xpose.msra.mxu0 %v1313
    %1391 = vmatprep.subr.bf16.mxu0 0
    %1392 = vmatpush1.bf16.xpose.msra.mxu0 %v1314
    %1393 = vmatprep.subr.bf16.mxu0 0
    %1394 = vmatpush1.bf16.xpose.msra.mxu0 %v1315
    %1395 = vmatprep.subr.bf16.mxu0 0
    %1396 = vmatpush1.bf16.xpose.msra.mxu0 %v1316
    %1397 = vmatprep.mubr.bf16.mxu0 0
    %1398 = vmatmul.mubr.bf16.gmra.mrb[0].mxu0 %v828
    %v1399 = vpop.f32.mrb[0].mxu0
    %v1400 = vadd.f32 %v838, %v1399
    %v1401 = vpop.f32.mrb[0].mxu0
    %v1402 = vadd.f32 %v838, %v1401
    %v1403 = vpop.f32.mrb[0].mxu0
    %v1404 = vpop.f32.mrb[0].mxu0
    %1405 = vdwg.mxu0
    %1406 = vmatprep.subr.bf16.mxu0 0
    %1407 = vmatpush1.bf16.xpose.msra.mxu0 %v1317
    %1408 = vmatprep.subr.bf16.mxu0 0
    %1409 = vmatpush1.bf16.xpose.msra.mxu0 %v1318
    %1410 = vmatprep.subr.bf16.mxu0 0
    %1411 = vmatpush1.bf16.xpose.msra.mxu0 %v1319
    %1412 = vmatprep.subr.bf16.mxu0 0
    %1413 = vmatpush1.bf16.xpose.msra.mxu0 %v1320
    %1414 = vmatprep.subr.bf16.mxu0 0
    %1415 = vmatpush1.bf16.xpose.msra.mxu0 %v1321
    %1416 = vmatprep.subr.bf16.mxu0 0
    %1417 = vmatpush1.bf16.xpose.msra.mxu0 %v1322
    %1418 = vmatprep.subr.bf16.mxu0 0
    %1419 = vmatpush1.bf16.xpose.msra.mxu0 %v1323
    %1420 = vmatprep.subr.bf16.mxu0 0
    %1421 = vmatpush1.bf16.xpose.msra.mxu0 %v1324
    %1422 = vmatprep.subr.bf16.mxu0 0
    %1423 = vmatpush1.bf16.xpose.msra.mxu0 %v1325
    %1424 = vmatprep.subr.bf16.mxu0 0
    %1425 = vmatpush1.bf16.xpose.msra.mxu0 %v1326
    %1426 = vmatprep.subr.bf16.mxu0 0
    %1427 = vmatpush1.bf16.xpose.msra.mxu0 %v1327
    %1428 = vmatprep.subr.bf16.mxu0 0
    %1429 = vmatpush1.bf16.xpose.msra.mxu0 %v1328
    %1430 = vmatprep.subr.bf16.mxu0 0
    %1431 = vmatpush1.bf16.xpose.msra.mxu0 %v1329
    %1432 = vmatprep.subr.bf16.mxu0 0
    %1433 = vmatpush1.bf16.xpose.msra.mxu0 %v1330
    %1434 = vmatprep.subr.bf16.mxu0 0
    %1435 = vmatpush1.bf16.xpose.msra.mxu0 %v1331
    %1436 = vmatprep.subr.bf16.mxu0 0
    %1437 = vmatpush1.bf16.xpose.msra.mxu0 %v1332
    %1438 = vmatprep.mubr.bf16.mxu0 0
    %1439 = vmatmul.mubr.bf16.gmra.mrb[0].mxu0 %v828
    %v1440 = vpop.f32.mrb[0].mxu0
    %v1441 = vadd.f32 %v838, %v1440
    %v1442 = vpop.f32.mrb[0].mxu0
    %v1443 = vadd.f32 %v838, %v1442
    %v1444 = vpop.f32.mrb[0].mxu0
    %v1445 = vpop.f32.mrb[0].mxu0
    %1446 = vdwg.mxu0
    %v1447 = vld [vmem:[%s5] sm:$0xf]
    %v1449 = vlaneseq
    %v1450 = vshrl.u32 %v1449, 7
    %v1451 = vsub.s32 0, %v1450
    %v1452 = vrot.slane %v1447, %v1451
    %v1453 = vlaneseq
    %v1454 = vshrl.u32 %v1453, 7
    %v1455 = vsub.s32 1, %v1454
    %v1456 = vrot.slane %v1447, %v1455
    %v1457 = vlaneseq
    %v1458 = vshrl.u32 %v1457, 7
    %v1459 = vsub.s32 2, %v1458
    %v1460 = vrot.slane %v1447, %v1459
    %v1461 = vlaneseq
    %v1462 = vshrl.u32 %v1461, 7
    %v1463 = vsub.s32 3, %v1462
    %v1464 = vrot.slane %v1447, %v1463
    %v1469 = vadd.f32 %v1400, %v1452
    %v1470 = vadd.f32 %v1402, %v1456
    %v1471 = vadd.f32 %v1441, %v1460
    %v1472 = vadd.f32 %v1443, %v1464
    %v1477 = vcombine.low %v1469, %v1470
    %v1478 = vcombine.low %v1471, %v1472
    %v1480 = vunpack.c.l.s4 1966171168
    %v1481 = vunpack.c.0.s8 %v1480
    %v1482 = vlaneseq
    %v1483 = vshrl.u32 %v1482, 7
    %v1484 = vsub.s32 %v1481, %v1483
    %v1485 = vrot.slane %v1477, %v1484
    %v1487 = vunpack.c.l.s4 1966171168
    %v1488 = vunpack.c.0.s8 %v1487
    %v1489 = vlaneseq
    %v1490 = vshrl.u32 %v1489, 7
    %v1491 = vsub.s32 %v1488, %v1490
    %v1492 = vrot.slane %v1478, %v1491
    %v1493 = vcombine.low %v1485, %v1492
    %v1495 = vunpack.c.l.s4 1966171168
    %v1496 = vunpack.c.0.s8 %v1495
    %v1497 = vlaneseq
    %v1498 = vshrl.u32 %v1497, 7
    %v1499 = vsub.s32 %v1496, %v1498
    %v1500 = vrot.slane %v1493, %v1499
    %1502 = vst.msk [vmem:[#allocation3 + $0x4] sm:$0xf] %vm1171, %v1500
    // Predicated region
    $region26: #{dgi_ind_forward.5} parent=1 // pred_check
      _
    $region27: #{dgi_ind_forward.5} parent=1 // pred_check_branch
      %1504 = sbr.rel (0) target = $region29
    $region28: #{dgi_ind_forward.5} parent=1 // pred_region
      %s1506 = ssub.s32 128, 128
      %1507 = vsyncadd [#allocation4], %s1506
      %s1509 = sshll.u32 [#allocation3], 4
      %s1510 = int_to_ptr.vmem [resolvable:$true] %s1509
      %1512 = dma.vmem_to_hbm [thread:$0]  %s1510, 128, %s6, [#allocation4]
    $region29: #{dgi_ind_forward.5} parent=1 // pred_fallthru
      _
    // Predicated region
    $region30: #{dgi_ind_forward.5} parent=1 // pred_check
      _
    $region31: #{dgi_ind_forward.5} parent=1 // pred_check_branch
      %1514 = sbr.rel (0) target = $region33
    $region32: #{dgi_ind_forward.5} parent=1 // pred_region
      %1515 = dma.done [#allocation4], 128
    $region33: #{dgi_ind_forward.5} parent=1 // pred_fallthru
      _
    %1516 = vsyncpa [#allocation4], 1

// kernel: dgi_ind_forward.3
$region0: #{dgi_ind_forward.3}
  #allocation0 [shape = 'u32[]', space=smem, size = 0x4, offset = 0x4, fixed_abs, tag = 'smem constant byte address 0x4 - core index']
  #allocation1 [shape = 'u32[144,128]{1,0:T(1,128)}', space=vmem, size = 0x12000, scoped, tag = 'internal scratch']
  #allocation2 [shape = 'f32[512,256]{1,0:T(8,128)}', space=vmem, size = 0x80000, scoped, tag = 'scratch operand']
  %s0 = inlined_call_operand.vmem [shape: bf16[512,512], index: 0, kind: input, shape index: {}]
  %s1 = inlined_call_operand.vmem [shape: bf16[512,256], index: 1, kind: input, shape index: {}]
  %s2 = inlined_call_operand.vmem [shape: bf16[256,256], index: 2, kind: input, shape index: {}]
  %s3 = inlined_call_operand.vmem [shape: bf16[512,256], index: 3, kind: output, shape index: {}]
  %s4 = sld [smem:[#allocation0]]
  $region30: #{dgi_ind_forward.3} parent=0
    _
  %s6 = ssub.s32 1, %s4
  %s7 = scalar_select 0, %s6, %s4
  // Predicated region
  $region2: #{dgi_ind_forward.3} parent=0 // pred_check
    _
  $region3: #{dgi_ind_forward.3} parent=0 // pred_check_branch
    %9 = sbr.rel (0) target = $region5
  $region4: #{dgi_ind_forward.3} parent=0 // pred_region
    _
  $region5: #{dgi_ind_forward.3} parent=0 // pred_fallthru
    _
  // Predicated region
  $region6: #{dgi_ind_forward.3} parent=0 // pred_check
    _
  $region7: #{dgi_ind_forward.3} parent=0 // pred_check_branch
    %11 = sbr.rel (0) target = $region9
  $region8: #{dgi_ind_forward.3} parent=0 // pred_region
    _
  $region9: #{dgi_ind_forward.3} parent=0 // pred_fallthru
    _
  // Predicated region
  $region10: #{dgi_ind_forward.3} parent=0 // pred_check
    _
  $region11: #{dgi_ind_forward.3} parent=0 // pred_check_branch
    %13 = sbr.rel (0) target = $region13
  $region12: #{dgi_ind_forward.3} parent=0 // pred_region
    _
  $region13: #{dgi_ind_forward.3} parent=0 // pred_fallthru
    _
  %p14 = scmp.eq.s32.totalorder 0, 0
  // Predicated region
  $region14: #{dgi_ind_forward.3} parent=0 // pred_check
    %p15 = pneg %p14
  $region15: #{dgi_ind_forward.3} parent=0 // pred_check_branch
    %17 = sbr.rel (%p15) target = $region17
  $region16: #{dgi_ind_forward.3} parent=0 // pred_region
    %18 = vst [vmem:[#allocation2] sm:$0xff] 0.0
    %19 = vst [vmem:[#allocation2 + $0x8] sm:$0xff] 0.0
    %20 = vst [vmem:[#allocation2 + $0x10] sm:$0xff] 0.0
    %21 = vst [vmem:[#allocation2 + $0x18] sm:$0xff] 0.0
    %22 = vst [vmem:[#allocation2 + $0x20] sm:$0xff] 0.0
    %23 = vst [vmem:[#allocation2 + $0x28] sm:$0xff] 0.0
    %24 = vst [vmem:[#allocation2 + $0x30] sm:$0xff] 0.0
    %25 = vst [vmem:[#allocation2 + $0x38] sm:$0xff] 0.0
    %26 = vst [vmem:[#allocation2 + $0x40] sm:$0xff] 0.0
    %27 = vst [vmem:[#allocation2 + $0x48] sm:$0xff] 0.0
    %28 = vst [vmem:[#allocation2 + $0x50] sm:$0xff] 0.0
    %29 = vst [vmem:[#allocation2 + $0x58] sm:$0xff] 0.0
    %30 = vst [vmem:[#allocation2 + $0x60] sm:$0xff] 0.0
    %31 = vst [vmem:[#allocation2 + $0x68] sm:$0xff] 0.0
    %32 = vst [vmem:[#allocation2 + $0x70] sm:$0xff] 0.0
    %33 = vst [vmem:[#allocation2 + $0x78] sm:$0xff] 0.0
    %34 = vst [vmem:[#allocation2 + $0x80] sm:$0xff] 0.0
    %35 = vst [vmem:[#allocation2 + $0x88] sm:$0xff] 0.0
    %36 = vst [vmem:[#allocation2 + $0x90] sm:$0xff] 0.0
    %37 = vst [vmem:[#allocation2 + $0x98] sm:$0xff] 0.0
    %38 = vst [vmem:[#allocation2 + $0xa0] sm:$0xff] 0.0
    %39 = vst [vmem:[#allocation2 + $0xa8] sm:$0xff] 0.0
    %40 = vst [vmem:[#allocation2 + $0xb0] sm:$0xff] 0.0
    %41 = vst [vmem:[#allocation2 + $0xb8] sm:$0xff] 0.0
    %42 = vst [vmem:[#allocation2 + $0xc0] sm:$0xff] 0.0
    %43 = vst [vmem:[#allocation2 + $0xc8] sm:$0xff] 0.0
    %44 = vst [vmem:[#allocation2 + $0xd0] sm:$0xff] 0.0
    %45 = vst [vmem:[#allocation2 + $0xd8] sm:$0xff] 0.0
    %46 = vst [vmem:[#allocation2 + $0xe0] sm:$0xff] 0.0
    %47 = vst [vmem:[#allocation2 + $0xe8] sm:$0xff] 0.0
    %48 = vst [vmem:[#allocation2 + $0xf0] sm:$0xff] 0.0
    %49 = vst [vmem:[#allocation2 + $0xf8] sm:$0xff] 0.0
    %50 = vst [vmem:[#allocation2 + $0x100] sm:$0xff] 0.0
    %51 = vst [vmem:[#allocation2 + $0x108] sm:$0xff] 0.0
    %52 = vst [vmem:[#allocation2 + $0x110] sm:$0xff] 0.0
    %53 = vst [vmem:[#allocation2 + $0x118] sm:$0xff] 0.0
    %54 = vst [vmem:[#allocation2 + $0x120] sm:$0xff] 0.0
    %55 = vst [vmem:[#allocation2 + $0x128] sm:$0xff] 0.0
    %56 = vst [vmem:[#allocation2 + $0x130] sm:$0xff] 0.0
    %57 = vst [vmem:[#allocation2 + $0x138] sm:$0xff] 0.0
    %58 = vst [vmem:[#allocation2 + $0x140] sm:$0xff] 0.0
    %59 = vst [vmem:[#allocation2 + $0x148] sm:$0xff] 0.0
    %60 = vst [vmem:[#allocation2 + $0x150] sm:$0xff] 0.0
    %61 = vst [vmem:[#allocation2 + $0x158] sm:$0xff] 0.0
    %62 = vst [vmem:[#allocation2 + $0x160] sm:$0xff] 0.0
    %63 = vst [vmem:[#allocation2 + $0x168] sm:$0xff] 0.0
    %64 = vst [vmem:[#allocation2 + $0x170] sm:$0xff] 0.0
    %65 = vst [vmem:[#allocation2 + $0x178] sm:$0xff] 0.0
    %66 = vst [vmem:[#allocation2 + $0x180] sm:$0xff] 0.0
    %67 = vst [vmem:[#allocation2 + $0x188] sm:$0xff] 0.0
    %68 = vst [vmem:[#allocation2 + $0x190] sm:$0xff] 0.0
    %69 = vst [vmem:[#allocation2 + $0x198] sm:$0xff] 0.0
    %70 = vst [vmem:[#allocation2 + $0x1a0] sm:$0xff] 0.0
    %71 = vst [vmem:[#allocation2 + $0x1a8] sm:$0xff] 0.0
    %72 = vst [vmem:[#allocation2 + $0x1b0] sm:$0xff] 0.0
    %73 = vst [vmem:[#allocation2 + $0x1b8] sm:$0xff] 0.0
    %74 = vst [vmem:[#allocation2 + $0x1c0] sm:$0xff] 0.0
    %75 = vst [vmem:[#allocation2 + $0x1c8] sm:$0xff] 0.0
    %76 = vst [vmem:[#allocation2 + $0x1d0] sm:$0xff] 0.0
    %77 = vst [vmem:[#allocation2 + $0x1d8] sm:$0xff] 0.0
    %78 = vst [vmem:[#allocation2 + $0x1e0] sm:$0xff] 0.0
    %79 = vst [vmem:[#allocation2 + $0x1e8] sm:$0xff] 0.0
    %80 = vst [vmem:[#allocation2 + $0x1f0] sm:$0xff] 0.0
    %81 = vst [vmem:[#allocation2 + $0x1f8] sm:$0xff] 0.0
    %82 = vst [vmem:[#allocation2 + $0x200] sm:$0xff] 0.0
    %83 = vst [vmem:[#allocation2 + $0x208] sm:$0xff] 0.0
    %84 = vst [vmem:[#allocation2 + $0x210] sm:$0xff] 0.0
    %85 = vst [vmem:[#allocation2 + $0x218] sm:$0xff] 0.0
    %86 = vst [vmem:[#allocation2 + $0x220] sm:$0xff] 0.0
    %87 = vst [vmem:[#allocation2 + $0x228] sm:$0xff] 0.0
    %88 = vst [vmem:[#allocation2 + $0x230] sm:$0xff] 0.0
    %89 = vst [vmem:[#allocation2 + $0x238] sm:$0xff] 0.0
    %90 = vst [vmem:[#allocation2 + $0x240] sm:$0xff] 0.0
    %91 = vst [vmem:[#allocation2 + $0x248] sm:$0xff] 0.0
    %92 = vst [vmem:[#allocation2 + $0x250] sm:$0xff] 0.0
    %93 = vst [vmem:[#allocation2 + $0x258] sm:$0xff] 0.0
    %94 = vst [vmem:[#allocation2 + $0x260] sm:$0xff] 0.0
    %95 = vst [vmem:[#allocation2 + $0x268] sm:$0xff] 0.0
    %96 = vst [vmem:[#allocation2 + $0x270] sm:$0xff] 0.0
    %97 = vst [vmem:[#allocation2 + $0x278] sm:$0xff] 0.0
    %98 = vst [vmem:[#allocation2 + $0x280] sm:$0xff] 0.0
    %99 = vst [vmem:[#allocation2 + $0x288] sm:$0xff] 0.0
    %100 = vst [vmem:[#allocation2 + $0x290] sm:$0xff] 0.0
    %101 = vst [vmem:[#allocation2 + $0x298] sm:$0xff] 0.0
    %102 = vst [vmem:[#allocation2 + $0x2a0] sm:$0xff] 0.0
    %103 = vst [vmem:[#allocation2 + $0x2a8] sm:$0xff] 0.0
    %104 = vst [vmem:[#allocation2 + $0x2b0] sm:$0xff] 0.0
    %105 = vst [vmem:[#allocation2 + $0x2b8] sm:$0xff] 0.0
    %106 = vst [vmem:[#allocation2 + $0x2c0] sm:$0xff] 0.0
    %107 = vst [vmem:[#allocation2 + $0x2c8] sm:$0xff] 0.0
    %108 = vst [vmem:[#allocation2 + $0x2d0] sm:$0xff] 0.0
    %109 = vst [vmem:[#allocation2 + $0x2d8] sm:$0xff] 0.0
    %110 = vst [vmem:[#allocation2 + $0x2e0] sm:$0xff] 0.0
    %111 = vst [vmem:[#allocation2 + $0x2e8] sm:$0xff] 0.0
    %112 = vst [vmem:[#allocation2 + $0x2f0] sm:$0xff] 0.0
    %113 = vst [vmem:[#allocation2 + $0x2f8] sm:$0xff] 0.0
    %114 = vst [vmem:[#allocation2 + $0x300] sm:$0xff] 0.0
    %115 = vst [vmem:[#allocation2 + $0x308] sm:$0xff] 0.0
    %116 = vst [vmem:[#allocation2 + $0x310] sm:$0xff] 0.0
    %117 = vst [vmem:[#allocation2 + $0x318] sm:$0xff] 0.0
    %118 = vst [vmem:[#allocation2 + $0x320] sm:$0xff] 0.0
    %119 = vst [vmem:[#allocation2 + $0x328] sm:$0xff] 0.0
    %120 = vst [vmem:[#allocation2 + $0x330] sm:$0xff] 0.0
    %121 = vst [vmem:[#allocation2 + $0x338] sm:$0xff] 0.0
    %122 = vst [vmem:[#allocation2 + $0x340] sm:$0xff] 0.0
    %123 = vst [vmem:[#allocation2 + $0x348] sm:$0xff] 0.0
    %124 = vst [vmem:[#allocation2 + $0x350] sm:$0xff] 0.0
    %125 = vst [vmem:[#allocation2 + $0x358] sm:$0xff] 0.0
    %126 = vst [vmem:[#allocation2 + $0x360] sm:$0xff] 0.0
    %127 = vst [vmem:[#allocation2 + $0x368] sm:$0xff] 0.0
    %128 = vst [vmem:[#allocation2 + $0x370] sm:$0xff] 0.0
    %129 = vst [vmem:[#allocation2 + $0x378] sm:$0xff] 0.0
    %130 = vst [vmem:[#allocation2 + $0x380] sm:$0xff] 0.0
    %131 = vst [vmem:[#allocation2 + $0x388] sm:$0xff] 0.0
    %132 = vst [vmem:[#allocation2 + $0x390] sm:$0xff] 0.0
    %133 = vst [vmem:[#allocation2 + $0x398] sm:$0xff] 0.0
    %134 = vst [vmem:[#allocation2 + $0x3a0] sm:$0xff] 0.0
    %135 = vst [vmem:[#allocation2 + $0x3a8] sm:$0xff] 0.0
    %136 = vst [vmem:[#allocation2 + $0x3b0] sm:$0xff] 0.0
    %137 = vst [vmem:[#allocation2 + $0x3b8] sm:$0xff] 0.0
    %138 = vst [vmem:[#allocation2 + $0x3c0] sm:$0xff] 0.0
    %139 = vst [vmem:[#allocation2 + $0x3c8] sm:$0xff] 0.0
    %140 = vst [vmem:[#allocation2 + $0x3d0] sm:$0xff] 0.0
    %141 = vst [vmem:[#allocation2 + $0x3d8] sm:$0xff] 0.0
    %142 = vst [vmem:[#allocation2 + $0x3e0] sm:$0xff] 0.0
    %143 = vst [vmem:[#allocation2 + $0x3e8] sm:$0xff] 0.0
    %144 = vst [vmem:[#allocation2 + $0x3f0] sm:$0xff] 0.0
    %145 = vst [vmem:[#allocation2 + $0x3f8] sm:$0xff] 0.0
  $region17: #{dgi_ind_forward.3} parent=0 // pred_fallthru
    _
  %v146 = vld [vmem:[#allocation2] sm:$0xff]
  %v147 = vld [vmem:[#allocation2 + $0x8] sm:$0xff]
  %v148 = vld [vmem:[#allocation2 + $0x10] sm:$0xff]
  %v149 = vld [vmem:[#allocation2 + $0x18] sm:$0xff]
  %v150 = vld [vmem:[#allocation2 + $0x20] sm:$0xff]
  %v151 = vld [vmem:[#allocation2 + $0x28] sm:$0xff]
  %v152 = vld [vmem:[#allocation2 + $0x30] sm:$0xff]
  %v153 = vld [vmem:[#allocation2 + $0x38] sm:$0xff]
  %v154 = vld [vmem:[#allocation2 + $0x40] sm:$0xff]
  %v155 = vld [vmem:[#allocation2 + $0x48] sm:$0xff]
  %v156 = vld [vmem:[#allocation2 + $0x50] sm:$0xff]
  %v157 = vld [vmem:[#allocation2 + $0x58] sm:$0xff]
  %v158 = vld [vmem:[#allocation2 + $0x60] sm:$0xff]
  %v159 = vld [vmem:[#allocation2 + $0x68] sm:$0xff]
  %v160 = vld [vmem:[#allocation2 + $0x70] sm:$0xff]
  %v161 = vld [vmem:[#allocation2 + $0x78] sm:$0xff]
  %v162 = vld [vmem:[#allocation2 + $0x80] sm:$0xff]
  %v163 = vld [vmem:[#allocation2 + $0x88] sm:$0xff]
  %v164 = vld [vmem:[#allocation2 + $0x90] sm:$0xff]
  %v165 = vld [vmem:[#allocation2 + $0x98] sm:$0xff]
  %v166 = vld [vmem:[#allocation2 + $0xa0] sm:$0xff]
  %v167 = vld [vmem:[#allocation2 + $0xa8] sm:$0xff]
  %v168 = vld [vmem:[#allocation2 + $0xb0] sm:$0xff]
  %v169 = vld [vmem:[#allocation2 + $0xb8] sm:$0xff]
  %v170 = vld [vmem:[#allocation2 + $0xc0] sm:$0xff]
  %v171 = vld [vmem:[#allocation2 + $0xc8] sm:$0xff]
  %v172 = vld [vmem:[#allocation2 + $0xd0] sm:$0xff]
  %v173 = vld [vmem:[#allocation2 + $0xd8] sm:$0xff]
  %v174 = vld [vmem:[#allocation2 + $0xe0] sm:$0xff]
  %v175 = vld [vmem:[#allocation2 + $0xe8] sm:$0xff]
  %v176 = vld [vmem:[#allocation2 + $0xf0] sm:$0xff]
  %v177 = vld [vmem:[#allocation2 + $0xf8] sm:$0xff]
  %v178 = vld [vmem:[#allocation2 + $0x100] sm:$0xff]
  %v179 = vld [vmem:[#allocation2 + $0x108] sm:$0xff]
  %v180 = vld [vmem:[#allocation2 + $0x110] sm:$0xff]
  %v181 = vld [vmem:[#allocation2 + $0x118] sm:$0xff]
  %v182 = vld [vmem:[#allocation2 + $0x120] sm:$0xff]
  %v183 = vld [vmem:[#allocation2 + $0x128] sm:$0xff]
  %v184 = vld [vmem:[#allocation2 + $0x130] sm:$0xff]
  %v185 = vld [vmem:[#allocation2 + $0x138] sm:$0xff]
  %v186 = vld [vmem:[#allocation2 + $0x140] sm:$0xff]
  %v187 = vld [vmem:[#allocation2 + $0x148] sm:$0xff]
  %v188 = vld [vmem:[#allocation2 + $0x150] sm:$0xff]
  %v189 = vld [vmem:[#allocation2 + $0x158] sm:$0xff]
  %v190 = vld [vmem:[#allocation2 + $0x160] sm:$0xff]
  %v191 = vld [vmem:[#allocation2 + $0x168] sm:$0xff]
  %v192 = vld [vmem:[#allocation2 + $0x170] sm:$0xff]
  %v193 = vld [vmem:[#allocation2 + $0x178] sm:$0xff]
  %v194 = vld [vmem:[#allocation2 + $0x180] sm:$0xff]
  %v195 = vld [vmem:[#allocation2 + $0x188] sm:$0xff]
  %v196 = vld [vmem:[#allocation2 + $0x190] sm:$0xff]
  %v197 = vld [vmem:[#allocation2 + $0x198] sm:$0xff]
  %v198 = vld [vmem:[#allocation2 + $0x1a0] sm:$0xff]
  %v199 = vld [vmem:[#allocation2 + $0x1a8] sm:$0xff]
  %v200 = vld [vmem:[#allocation2 + $0x1b0] sm:$0xff]
  %v201 = vld [vmem:[#allocation2 + $0x1b8] sm:$0xff]
  %v202 = vld [vmem:[#allocation2 + $0x1c0] sm:$0xff]
  %v203 = vld [vmem:[#allocation2 + $0x1c8] sm:$0xff]
  %v204 = vld [vmem:[#allocation2 + $0x1d0] sm:$0xff]
  %v205 = vld [vmem:[#allocation2 + $0x1d8] sm:$0xff]
  %v206 = vld [vmem:[#allocation2 + $0x1e0] sm:$0xff]
  %v207 = vld [vmem:[#allocation2 + $0x1e8] sm:$0xff]
  %v208 = vld [vmem:[#allocation2 + $0x1f0] sm:$0xff]
  %v209 = vld [vmem:[#allocation2 + $0x1f8] sm:$0xff]
  %v210 = vld [vmem:[#allocation2 + $0x200] sm:$0xff]
  %v211 = vld [vmem:[#allocation2 + $0x208] sm:$0xff]
  %v212 = vld [vmem:[#allocation2 + $0x210] sm:$0xff]
  %v213 = vld [vmem:[#allocation2 + $0x218] sm:$0xff]
  %v214 = vld [vmem:[#allocation2 + $0x220] sm:$0xff]
  %v215 = vld [vmem:[#allocation2 + $0x228] sm:$0xff]
  %v216 = vld [vmem:[#allocation2 + $0x230] sm:$0xff]
  %v217 = vld [vmem:[#allocation2 + $0x238] sm:$0xff]
  %v218 = vld [vmem:[#allocation2 + $0x240] sm:$0xff]
  %v219 = vld [vmem:[#allocation2 + $0x248] sm:$0xff]
  %v220 = vld [vmem:[#allocation2 + $0x250] sm:$0xff]
  %v221 = vld [vmem:[#allocation2 + $0x258] sm:$0xff]
  %v222 = vld [vmem:[#allocation2 + $0x260] sm:$0xff]
  %v223 = vld [vmem:[#allocation2 + $0x268] sm:$0xff]
  %v224 = vld [vmem:[#allocation2 + $0x270] sm:$0xff]
  %v225 = vld [vmem:[#allocation2 + $0x278] sm:$0xff]
  %v226 = vld [vmem:[#allocation2 + $0x280] sm:$0xff]
  %v227 = vld [vmem:[#allocation2 + $0x288] sm:$0xff]
  %v228 = vld [vmem:[#allocation2 + $0x290] sm:$0xff]
  %v229 = vld [vmem:[#allocation2 + $0x298] sm:$0xff]
  %v230 = vld [vmem:[#allocation2 + $0x2a0] sm:$0xff]
  %v231 = vld [vmem:[#allocation2 + $0x2a8] sm:$0xff]
  %v232 = vld [vmem:[#allocation2 + $0x2b0] sm:$0xff]
  %v233 = vld [vmem:[#allocation2 + $0x2b8] sm:$0xff]
  %v234 = vld [vmem:[#allocation2 + $0x2c0] sm:$0xff]
  %v235 = vld [vmem:[#allocation2 + $0x2c8] sm:$0xff]
  %v236 = vld [vmem:[#allocation2 + $0x2d0] sm:$0xff]
  %v237 = vld [vmem:[#allocation2 + $0x2d8] sm:$0xff]
  %v238 = vld [vmem:[#allocation2 + $0x2e0] sm:$0xff]
  %v239 = vld [vmem:[#allocation2 + $0x2e8] sm:$0xff]
  %v240 = vld [vmem:[#allocation2 + $0x2f0] sm:$0xff]
  %v241 = vld [vmem:[#allocation2 + $0x2f8] sm:$0xff]
  %v242 = vld [vmem:[#allocation2 + $0x300] sm:$0xff]
  %v243 = vld [vmem:[#allocation2 + $0x308] sm:$0xff]
  %v244 = vld [vmem:[#allocation2 + $0x310] sm:$0xff]
  %v245 = vld [vmem:[#allocation2 + $0x318] sm:$0xff]
  %v246 = vld [vmem:[#allocation2 + $0x320] sm:$0xff]
  %v247 = vld [vmem:[#allocation2 + $0x328] sm:$0xff]
  %v248 = vld [vmem:[#allocation2 + $0x330] sm:$0xff]
  %v249 = vld [vmem:[#allocation2 + $0x338] sm:$0xff]
  %v250 = vld [vmem:[#allocation2 + $0x340] sm:$0xff]
  %v251 = vld [vmem:[#allocation2 + $0x348] sm:$0xff]
  %v252 = vld [vmem:[#allocation2 + $0x350] sm:$0xff]
  %v253 = vld [vmem:[#allocation2 + $0x358] sm:$0xff]
  %v254 = vld [vmem:[#allocation2 + $0x360] sm:$0xff]
  %v255 = vld [vmem:[#allocation2 + $0x368] sm:$0xff]
  %v256 = vld [vmem:[#allocation2 + $0x370] sm:$0xff]
  %v257 = vld [vmem:[#allocation2 + $0x378] sm:$0xff]
  %v258 = vld [vmem:[#allocation2 + $0x380] sm:$0xff]
  %v259 = vld [vmem:[#allocation2 + $0x388] sm:$0xff]
  %v260 = vld [vmem:[#allocation2 + $0x390] sm:$0xff]
  %v261 = vld [vmem:[#allocation2 + $0x398] sm:$0xff]
  %v262 = vld [vmem:[#allocation2 + $0x3a0] sm:$0xff]
  %v263 = vld [vmem:[#allocation2 + $0x3a8] sm:$0xff]
  %v264 = vld [vmem:[#allocation2 + $0x3b0] sm:$0xff]
  %v265 = vld [vmem:[#allocation2 + $0x3b8] sm:$0xff]
  %v266 = vld [vmem:[#allocation2 + $0x3c0] sm:$0xff]
  %v267 = vld [vmem:[#allocation2 + $0x3c8] sm:$0xff]
  %v268 = vld [vmem:[#allocation2 + $0x3d0] sm:$0xff]
  %v269 = vld [vmem:[#allocation2 + $0x3d8] sm:$0xff]
  %v270 = vld [vmem:[#allocation2 + $0x3e0] sm:$0xff]
  %v271 = vld [vmem:[#allocation2 + $0x3e8] sm:$0xff]
  %v272 = vld [vmem:[#allocation2 + $0x3f0] sm:$0xff]
  %v273 = vld [vmem:[#allocation2 + $0x3f8] sm:$0xff]
  %v274 = vld [vmem:[%s0] sm:$0xff]
  %v275 = vld [vmem:[%s0 + $0x8] sm:$0xff]
  %v276 = vld [vmem:[%s0 + $0x10] sm:$0xff]
  %v277 = vld [vmem:[%s0 + $0x18] sm:$0xff]
  %v278 = vld [vmem:[%s0 + $0x20] sm:$0xff]
  %v279 = vld [vmem:[%s0 + $0x28] sm:$0xff]
  %v280 = vld [vmem:[%s0 + $0x30] sm:$0xff]
  %v281 = vld [vmem:[%s0 + $0x38] sm:$0xff]
  %v282 = vld [vmem:[%s0 + $0x40] sm:$0xff]
  %v283 = vld [vmem:[%s0 + $0x48] sm:$0xff]
  %v284 = vld [vmem:[%s0 + $0x50] sm:$0xff]
  %v285 = vld [vmem:[%s0 + $0x58] sm:$0xff]
  %v286 = vld [vmem:[%s0 + $0x60] sm:$0xff]
  %v287 = vld [vmem:[%s0 + $0x68] sm:$0xff]
  %v288 = vld [vmem:[%s0 + $0x70] sm:$0xff]
  %v289 = vld [vmem:[%s0 + $0x78] sm:$0xff]
  %v290 = vld [vmem:[%s0 + $0x80] sm:$0xff]
  %v291 = vld [vmem:[%s0 + $0x88] sm:$0xff]
  %v292 = vld [vmem:[%s0 + $0x90] sm:$0xff]
  %v293 = vld [vmem:[%s0 + $0x98] sm:$0xff]
  %v294 = vld [vmem:[%s0 + $0xa0] sm:$0xff]
  %v295 = vld [vmem:[%s0 + $0xa8] sm:$0xff]
  %v296 = vld [vmem:[%s0 + $0xb0] sm:$0xff]
  %v297 = vld [vmem:[%s0 + $0xb8] sm:$0xff]
  %v298 = vld [vmem:[%s0 + $0xc0] sm:$0xff]
  %v299 = vld [vmem:[%s0 + $0xc8] sm:$0xff]
  %v300 = vld [vmem:[%s0 + $0xd0] sm:$0xff]
  %v301 = vld [vmem:[%s0 + $0xd8] sm:$0xff]
  %v302 = vld [vmem:[%s0 + $0xe0] sm:$0xff]
  %v303 = vld [vmem:[%s0 + $0xe8] sm:$0xff]
  %v304 = vld [vmem:[%s0 + $0xf0] sm:$0xff]
  %v305 = vld [vmem:[%s0 + $0xf8] sm:$0xff]
  %v306 = vld [vmem:[%s0 + $0x100] sm:$0xff]
  %v307 = vld [vmem:[%s0 + $0x108] sm:$0xff]
  %v308 = vld [vmem:[%s0 + $0x110] sm:$0xff]
  %v309 = vld [vmem:[%s0 + $0x118] sm:$0xff]
  %v310 = vld [vmem:[%s0 + $0x120] sm:$0xff]
  %v311 = vld [vmem:[%s0 + $0x128] sm:$0xff]
  %v312 = vld [vmem:[%s0 + $0x130] sm:$0xff]
  %v313 = vld [vmem:[%s0 + $0x138] sm:$0xff]
  %v314 = vld [vmem:[%s0 + $0x140] sm:$0xff]
  %v315 = vld [vmem:[%s0 + $0x148] sm:$0xff]
  %v316 = vld [vmem:[%s0 + $0x150] sm:$0xff]
  %v317 = vld [vmem:[%s0 + $0x158] sm:$0xff]
  %v318 = vld [vmem:[%s0 + $0x160] sm:$0xff]
  %v319 = vld [vmem:[%s0 + $0x168] sm:$0xff]
  %v320 = vld [vmem:[%s0 + $0x170] sm:$0xff]
  %v321 = vld [vmem:[%s0 + $0x178] sm:$0xff]
  %v322 = vld [vmem:[%s0 + $0x180] sm:$0xff]
  %v323 = vld [vmem:[%s0 + $0x188] sm:$0xff]
  %v324 = vld [vmem:[%s0 + $0x190] sm:$0xff]
  %v325 = vld [vmem:[%s0 + $0x198] sm:$0xff]
  %v326 = vld [vmem:[%s0 + $0x1a0] sm:$0xff]
  %v327 = vld [vmem:[%s0 + $0x1a8] sm:$0xff]
  %v328 = vld [vmem:[%s0 + $0x1b0] sm:$0xff]
  %v329 = vld [vmem:[%s0 + $0x1b8] sm:$0xff]
  %v330 = vld [vmem:[%s0 + $0x1c0] sm:$0xff]
  %v331 = vld [vmem:[%s0 + $0x1c8] sm:$0xff]
  %v332 = vld [vmem:[%s0 + $0x1d0] sm:$0xff]
  %v333 = vld [vmem:[%s0 + $0x1d8] sm:$0xff]
  %v334 = vld [vmem:[%s0 + $0x1e0] sm:$0xff]
  %v335 = vld [vmem:[%s0 + $0x1e8] sm:$0xff]
  %v336 = vld [vmem:[%s0 + $0x1f0] sm:$0xff]
  %v337 = vld [vmem:[%s0 + $0x1f8] sm:$0xff]
  %v338 = vld [vmem:[%s0 + $0x200] sm:$0xff]
  %v339 = vld [vmem:[%s0 + $0x208] sm:$0xff]
  %v340 = vld [vmem:[%s0 + $0x210] sm:$0xff]
  %v341 = vld [vmem:[%s0 + $0x218] sm:$0xff]
  %v342 = vld [vmem:[%s0 + $0x220] sm:$0xff]
  %v343 = vld [vmem:[%s0 + $0x228] sm:$0xff]
  %v344 = vld [vmem:[%s0 + $0x230] sm:$0xff]
  %v345 = vld [vmem:[%s0 + $0x238] sm:$0xff]
  %v346 = vld [vmem:[%s0 + $0x240] sm:$0xff]
  %v347 = vld [vmem:[%s0 + $0x248] sm:$0xff]
  %v348 = vld [vmem:[%s0 + $0x250] sm:$0xff]
  %v349 = vld [vmem:[%s0 + $0x258] sm:$0xff]
  %v350 = vld [vmem:[%s0 + $0x260] sm:$0xff]
  %v351 = vld [vmem:[%s0 + $0x268] sm:$0xff]
  %v352 = vld [vmem:[%s0 + $0x270] sm:$0xff]
  %v353 = vld [vmem:[%s0 + $0x278] sm:$0xff]
  %v354 = vld [vmem:[%s0 + $0x280] sm:$0xff]
  %v355 = vld [vmem:[%s0 + $0x288] sm:$0xff]
  %v356 = vld [vmem:[%s0 + $0x290] sm:$0xff]
  %v357 = vld [vmem:[%s0 + $0x298] sm:$0xff]
  %v358 = vld [vmem:[%s0 + $0x2a0] sm:$0xff]
  %v359 = vld [vmem:[%s0 + $0x2a8] sm:$0xff]
  %v360 = vld [vmem:[%s0 + $0x2b0] sm:$0xff]
  %v361 = vld [vmem:[%s0 + $0x2b8] sm:$0xff]
  %v362 = vld [vmem:[%s0 + $0x2c0] sm:$0xff]
  %v363 = vld [vmem:[%s0 + $0x2c8] sm:$0xff]
  %v364 = vld [vmem:[%s0 + $0x2d0] sm:$0xff]
  %v365 = vld [vmem:[%s0 + $0x2d8] sm:$0xff]
  %v366 = vld [vmem:[%s0 + $0x2e0] sm:$0xff]
  %v367 = vld [vmem:[%s0 + $0x2e8] sm:$0xff]
  %v368 = vld [vmem:[%s0 + $0x2f0] sm:$0xff]
  %v369 = vld [vmem:[%s0 + $0x2f8] sm:$0xff]
  %v370 = vld [vmem:[%s0 + $0x300] sm:$0xff]
  %v371 = vld [vmem:[%s0 + $0x308] sm:$0xff]
  %v372 = vld [vmem:[%s0 + $0x310] sm:$0xff]
  %v373 = vld [vmem:[%s0 + $0x318] sm:$0xff]
  %v374 = vld [vmem:[%s0 + $0x320] sm:$0xff]
  %v375 = vld [vmem:[%s0 + $0x328] sm:$0xff]
  %v376 = vld [vmem:[%s0 + $0x330] sm:$0xff]
  %v377 = vld [vmem:[%s0 + $0x338] sm:$0xff]
  %v378 = vld [vmem:[%s0 + $0x340] sm:$0xff]
  %v379 = vld [vmem:[%s0 + $0x348] sm:$0xff]
  %v380 = vld [vmem:[%s0 + $0x350] sm:$0xff]
  %v381 = vld [vmem:[%s0 + $0x358] sm:$0xff]
  %v382 = vld [vmem:[%s0 + $0x360] sm:$0xff]
  %v383 = vld [vmem:[%s0 + $0x368] sm:$0xff]
  %v384 = vld [vmem:[%s0 + $0x370] sm:$0xff]
  %v385 = vld [vmem:[%s0 + $0x378] sm:$0xff]
  %v386 = vld [vmem:[%s0 + $0x380] sm:$0xff]
  %v387 = vld [vmem:[%s0 + $0x388] sm:$0xff]
  %v388 = vld [vmem:[%s0 + $0x390] sm:$0xff]
  %v389 = vld [vmem:[%s0 + $0x398] sm:$0xff]
  %v390 = vld [vmem:[%s0 + $0x3a0] sm:$0xff]
  %v391 = vld [vmem:[%s0 + $0x3a8] sm:$0xff]
  %v392 = vld [vmem:[%s0 + $0x3b0] sm:$0xff]
  %v393 = vld [vmem:[%s0 + $0x3b8] sm:$0xff]
  %v394 = vld [vmem:[%s0 + $0x3c0] sm:$0xff]
  %v395 = vld [vmem:[%s0 + $0x3c8] sm:$0xff]
  %v396 = vld [vmem:[%s0 + $0x3d0] sm:$0xff]
  %v397 = vld [vmem:[%s0 + $0x3d8] sm:$0xff]
  %v398 = vld [vmem:[%s0 + $0x3e0] sm:$0xff]
  %v399 = vld [vmem:[%s0 + $0x3e8] sm:$0xff]
  %v400 = vld [vmem:[%s0 + $0x3f0] sm:$0xff]
  %v401 = vld [vmem:[%s0 + $0x3f8] sm:$0xff]
  %v402 = vld [vmem:[%s1] sm:$0xff]
  %v403 = vld [vmem:[%s1 + $0x8] sm:$0xff]
  %v404 = vld [vmem:[%s1 + $0x10] sm:$0xff]
  %v405 = vld [vmem:[%s1 + $0x18] sm:$0xff]
  %v406 = vld [vmem:[%s1 + $0x20] sm:$0xff]
  %v407 = vld [vmem:[%s1 + $0x28] sm:$0xff]
  %v408 = vld [vmem:[%s1 + $0x30] sm:$0xff]
  %v409 = vld [vmem:[%s1 + $0x38] sm:$0xff]
  %v410 = vld [vmem:[%s1 + $0x40] sm:$0xff]
  %v411 = vld [vmem:[%s1 + $0x48] sm:$0xff]
  %v412 = vld [vmem:[%s1 + $0x50] sm:$0xff]
  %v413 = vld [vmem:[%s1 + $0x58] sm:$0xff]
  %v414 = vld [vmem:[%s1 + $0x60] sm:$0xff]
  %v415 = vld [vmem:[%s1 + $0x68] sm:$0xff]
  %v416 = vld [vmem:[%s1 + $0x70] sm:$0xff]
  %v417 = vld [vmem:[%s1 + $0x78] sm:$0xff]
  %v418 = vld [vmem:[%s1 + $0x80] sm:$0xff]
  %v419 = vld [vmem:[%s1 + $0x88] sm:$0xff]
  %v420 = vld [vmem:[%s1 + $0x90] sm:$0xff]
  %v421 = vld [vmem:[%s1 + $0x98] sm:$0xff]
  %v422 = vld [vmem:[%s1 + $0xa0] sm:$0xff]
  %v423 = vld [vmem:[%s1 + $0xa8] sm:$0xff]
  %v424 = vld [vmem:[%s1 + $0xb0] sm:$0xff]
  %v425 = vld [vmem:[%s1 + $0xb8] sm:$0xff]
  %v426 = vld [vmem:[%s1 + $0xc0] sm:$0xff]
  %v427 = vld [vmem:[%s1 + $0xc8] sm:$0xff]
  %v428 = vld [vmem:[%s1 + $0xd0] sm:$0xff]
  %v429 = vld [vmem:[%s1 + $0xd8] sm:$0xff]
  %v430 = vld [vmem:[%s1 + $0xe0] sm:$0xff]
  %v431 = vld [vmem:[%s1 + $0xe8] sm:$0xff]
  %v432 = vld [vmem:[%s1 + $0xf0] sm:$0xff]
  %v433 = vld [vmem:[%s1 + $0xf8] sm:$0xff]
  %v434 = vld [vmem:[%s1 + $0x100] sm:$0xff]
  %v435 = vld [vmem:[%s1 + $0x108] sm:$0xff]
  %v436 = vld [vmem:[%s1 + $0x110] sm:$0xff]
  %v437 = vld [vmem:[%s1 + $0x118] sm:$0xff]
  %v438 = vld [vmem:[%s1 + $0x120] sm:$0xff]
  %v439 = vld [vmem:[%s1 + $0x128] sm:$0xff]
  %v440 = vld [vmem:[%s1 + $0x130] sm:$0xff]
  %v441 = vld [vmem:[%s1 + $0x138] sm:$0xff]
  %v442 = vld [vmem:[%s1 + $0x140] sm:$0xff]
  %v443 = vld [vmem:[%s1 + $0x148] sm:$0xff]
  %v444 = vld [vmem:[%s1 + $0x150] sm:$0xff]
  %v445 = vld [vmem:[%s1 + $0x158] sm:$0xff]
  %v446 = vld [vmem:[%s1 + $0x160] sm:$0xff]
  %v447 = vld [vmem:[%s1 + $0x168] sm:$0xff]
  %v448 = vld [vmem:[%s1 + $0x170] sm:$0xff]
  %v449 = vld [vmem:[%s1 + $0x178] sm:$0xff]
  %v450 = vld [vmem:[%s1 + $0x180] sm:$0xff]
  %v451 = vld [vmem:[%s1 + $0x188] sm:$0xff]
  %v452 = vld [vmem:[%s1 + $0x190] sm:$0xff]
  %v453 = vld [vmem:[%s1 + $0x198] sm:$0xff]
  %v454 = vld [vmem:[%s1 + $0x1a0] sm:$0xff]
  %v455 = vld [vmem:[%s1 + $0x1a8] sm:$0xff]
  %v456 = vld [vmem:[%s1 + $0x1b0] sm:$0xff]
  %v457 = vld [vmem:[%s1 + $0x1b8] sm:$0xff]
  %v458 = vld [vmem:[%s1 + $0x1c0] sm:$0xff]
  %v459 = vld [vmem:[%s1 + $0x1c8] sm:$0xff]
  %v460 = vld [vmem:[%s1 + $0x1d0] sm:$0xff]
  %v461 = vld [vmem:[%s1 + $0x1d8] sm:$0xff]
  %v462 = vld [vmem:[%s1 + $0x1e0] sm:$0xff]
  %v463 = vld [vmem:[%s1 + $0x1e8] sm:$0xff]
  %v464 = vld [vmem:[%s1 + $0x1f0] sm:$0xff]
  %v465 = vld [vmem:[%s1 + $0x1f8] sm:$0xff]
  %v594 = vunpack.c.l.b16 %v274
  %v595 = vunpack.c.h.b16 %v274
  %v596 = vunpack.c.l.b16 %v275
  %v597 = vunpack.c.h.b16 %v275
  %v598 = vunpack.c.l.b16 %v276
  %v599 = vunpack.c.h.b16 %v276
  %v600 = vunpack.c.l.b16 %v277
  %v601 = vunpack.c.h.b16 %v277
  %v602 = vunpack.c.l.b16 %v278
  %v603 = vunpack.c.h.b16 %v278
  %v604 = vunpack.c.l.b16 %v279
  %v605 = vunpack.c.h.b16 %v279
  %v606 = vunpack.c.l.b16 %v280
  %v607 = vunpack.c.h.b16 %v280
  %v608 = vunpack.c.l.b16 %v281
  %v609 = vunpack.c.h.b16 %v281
  %v610 = vunpack.c.l.b16 %v282
  %v611 = vunpack.c.h.b16 %v282
  %v612 = vunpack.c.l.b16 %v283
  %v613 = vunpack.c.h.b16 %v283
  %v614 = vunpack.c.l.b16 %v284
  %v615 = vunpack.c.h.b16 %v284
  %v616 = vunpack.c.l.b16 %v285
  %v617 = vunpack.c.h.b16 %v285
  %v618 = vunpack.c.l.b16 %v286
  %v619 = vunpack.c.h.b16 %v286
  %v620 = vunpack.c.l.b16 %v287
  %v621 = vunpack.c.h.b16 %v287
  %v622 = vunpack.c.l.b16 %v288
  %v623 = vunpack.c.h.b16 %v288
  %v624 = vunpack.c.l.b16 %v289
  %v625 = vunpack.c.h.b16 %v289
  %v626 = vunpack.c.l.b16 %v290
  %v627 = vunpack.c.h.b16 %v290
  %v628 = vunpack.c.l.b16 %v291
  %v629 = vunpack.c.h.b16 %v291
  %v630 = vunpack.c.l.b16 %v292
  %v631 = vunpack.c.h.b16 %v292
  %v632 = vunpack.c.l.b16 %v293
  %v633 = vunpack.c.h.b16 %v293
  %v634 = vunpack.c.l.b16 %v294
  %v635 = vunpack.c.h.b16 %v294
  %v636 = vunpack.c.l.b16 %v295
  %v637 = vunpack.c.h.b16 %v295
  %v638 = vunpack.c.l.b16 %v296
  %v639 = vunpack.c.h.b16 %v296
  %v640 = vunpack.c.l.b16 %v297
  %v641 = vunpack.c.h.b16 %v297
  %v642 = vunpack.c.l.b16 %v298
  %v643 = vunpack.c.h.b16 %v298
  %v644 = vunpack.c.l.b16 %v299
  %v645 = vunpack.c.h.b16 %v299
  %v646 = vunpack.c.l.b16 %v300
  %v647 = vunpack.c.h.b16 %v300
  %v648 = vunpack.c.l.b16 %v301
  %v649 = vunpack.c.h.b16 %v301
  %v650 = vunpack.c.l.b16 %v302
  %v651 = vunpack.c.h.b16 %v302
  %v652 = vunpack.c.l.b16 %v303
  %v653 = vunpack.c.h.b16 %v303
  %v654 = vunpack.c.l.b16 %v304
  %v655 = vunpack.c.h.b16 %v304
  %v656 = vunpack.c.l.b16 %v305
  %v657 = vunpack.c.h.b16 %v305
  %v658 = vunpack.c.l.b16 %v306
  %v659 = vunpack.c.h.b16 %v306
  %v660 = vunpack.c.l.b16 %v307
  %v661 = vunpack.c.h.b16 %v307
  %v662 = vunpack.c.l.b16 %v308
  %v663 = vunpack.c.h.b16 %v308
  %v664 = vunpack.c.l.b16 %v309
  %v665 = vunpack.c.h.b16 %v309
  %v666 = vunpack.c.l.b16 %v310
  %v667 = vunpack.c.h.b16 %v310
  %v668 = vunpack.c.l.b16 %v311
  %v669 = vunpack.c.h.b16 %v311
  %v670 = vunpack.c.l.b16 %v312
  %v671 = vunpack.c.h.b16 %v312
  %v672 = vunpack.c.l.b16 %v313
  %v673 = vunpack.c.h.b16 %v313
  %v674 = vunpack.c.l.b16 %v314
  %v675 = vunpack.c.h.b16 %v314
  %v676 = vunpack.c.l.b16 %v315
  %v677 = vunpack.c.h.b16 %v315
  %v678 = vunpack.c.l.b16 %v316
  %v679 = vunpack.c.h.b16 %v316
  %v680 = vunpack.c.l.b16 %v317
  %v681 = vunpack.c.h.b16 %v317
  %v682 = vunpack.c.l.b16 %v318
  %v683 = vunpack.c.h.b16 %v318
  %v684 = vunpack.c.l.b16 %v319
  %v685 = vunpack.c.h.b16 %v319
  %v686 = vunpack.c.l.b16 %v320
  %v687 = vunpack.c.h.b16 %v320
  %v688 = vunpack.c.l.b16 %v321
  %v689 = vunpack.c.h.b16 %v321
  %v690 = vunpack.c.l.b16 %v322
  %v691 = vunpack.c.h.b16 %v322
  %v692 = vunpack.c.l.b16 %v323
  %v693 = vunpack.c.h.b16 %v323
  %v694 = vunpack.c.l.b16 %v324
  %v695 = vunpack.c.h.b16 %v324
  %v696 = vunpack.c.l.b16 %v325
  %v697 = vunpack.c.h.b16 %v325
  %v698 = vunpack.c.l.b16 %v326
  %v699 = vunpack.c.h.b16 %v326
  %v700 = vunpack.c.l.b16 %v327
  %v701 = vunpack.c.h.b16 %v327
  %v702 = vunpack.c.l.b16 %v328
  %v703 = vunpack.c.h.b16 %v328
  %v704 = vunpack.c.l.b16 %v329
  %v705 = vunpack.c.h.b16 %v329
  %v706 = vunpack.c.l.b16 %v330
  %v707 = vunpack.c.h.b16 %v330
  %v708 = vunpack.c.l.b16 %v331
  %v709 = vunpack.c.h.b16 %v331
  %v710 = vunpack.c.l.b16 %v332
  %v711 = vunpack.c.h.b16 %v332
  %v712 = vunpack.c.l.b16 %v333
  %v713 = vunpack.c.h.b16 %v333
  %v714 = vunpack.c.l.b16 %v334
  %v715 = vunpack.c.h.b16 %v334
  %v716 = vunpack.c.l.b16 %v335
  %v717 = vunpack.c.h.b16 %v335
  %v718 = vunpack.c.l.b16 %v336
  %v719 = vunpack.c.h.b16 %v336
  %v720 = vunpack.c.l.b16 %v337
  %v721 = vunpack.c.h.b16 %v337
  %v722 = vunpack.c.l.b16 %v338
  %v723 = vunpack.c.h.b16 %v338
  %v724 = vunpack.c.l.b16 %v339
  %v725 = vunpack.c.h.b16 %v339
  %v726 = vunpack.c.l.b16 %v340
  %v727 = vunpack.c.h.b16 %v340
  %v728 = vunpack.c.l.b16 %v341
  %v729 = vunpack.c.h.b16 %v341
  %v730 = vunpack.c.l.b16 %v342
  %v731 = vunpack.c.h.b16 %v342
  %v732 = vunpack.c.l.b16 %v343
  %v733 = vunpack.c.h.b16 %v343
  %v734 = vunpack.c.l.b16 %v344
  %v735 = vunpack.c.h.b16 %v344
  %v736 = vunpack.c.l.b16 %v345
  %v737 = vunpack.c.h.b16 %v345
  %v738 = vunpack.c.l.b16 %v346
  %v739 = vunpack.c.h.b16 %v346
  %v740 = vunpack.c.l.b16 %v347
  %v741 = vunpack.c.h.b16 %v347
  %v742 = vunpack.c.l.b16 %v348
  %v743 = vunpack.c.h.b16 %v348
  %v744 = vunpack.c.l.b16 %v349
  %v745 = vunpack.c.h.b16 %v349
  %v746 = vunpack.c.l.b16 %v350
  %v747 = vunpack.c.h.b16 %v350
  %v748 = vunpack.c.l.b16 %v351
  %v749 = vunpack.c.h.b16 %v351
  %v750 = vunpack.c.l.b16 %v352
  %v751 = vunpack.c.h.b16 %v352
  %v752 = vunpack.c.l.b16 %v353
  %v753 = vunpack.c.h.b16 %v353
  %v754 = vunpack.c.l.b16 %v354
  %v755 = vunpack.c.h.b16 %v354
  %v756 = vunpack.c.l.b16 %v355
  %v757 = vunpack.c.h.b16 %v355
  %v758 = vunpack.c.l.b16 %v356
  %v759 = vunpack.c.h.b16 %v356
  %v760 = vunpack.c.l.b16 %v357
  %v761 = vunpack.c.h.b16 %v357
  %v762 = vunpack.c.l.b16 %v358
  %v763 = vunpack.c.h.b16 %v358
  %v764 = vunpack.c.l.b16 %v359
  %v765 = vunpack.c.h.b16 %v359
  %v766 = vunpack.c.l.b16 %v360
  %v767 = vunpack.c.h.b16 %v360
  %v768 = vunpack.c.l.b16 %v361
  %v769 = vunpack.c.h.b16 %v361
  %v770 = vunpack.c.l.b16 %v362
  %v771 = vunpack.c.h.b16 %v362
  %v772 = vunpack.c.l.b16 %v363
  %v773 = vunpack.c.h.b16 %v363
  %v774 = vunpack.c.l.b16 %v364
  %v775 = vunpack.c.h.b16 %v364
  %v776 = vunpack.c.l.b16 %v365
  %v777 = vunpack.c.h.b16 %v365
  %v778 = vunpack.c.l.b16 %v366
  %v779 = vunpack.c.h.b16 %v366
  %v780 = vunpack.c.l.b16 %v367
  %v781 = vunpack.c.h.b16 %v367
  %v782 = vunpack.c.l.b16 %v368
  %v783 = vunpack.c.h.b16 %v368
  %v784 = vunpack.c.l.b16 %v369
  %v785 = vunpack.c.h.b16 %v369
  %v786 = vunpack.c.l.b16 %v370
  %v787 = vunpack.c.h.b16 %v370
  %v788 = vunpack.c.l.b16 %v371
  %v789 = vunpack.c.h.b16 %v371
  %v790 = vunpack.c.l.b16 %v372
  %v791 = vunpack.c.h.b16 %v372
  %v792 = vunpack.c.l.b16 %v373
  %v793 = vunpack.c.h.b16 %v373
  %v794 = vunpack.c.l.b16 %v374
  %v795 = vunpack.c.h.b16 %v374
  %v796 = vunpack.c.l.b16 %v375
  %v797 = vunpack.c.h.b16 %v375
  %v798 = vunpack.c.l.b16 %v376
  %v799 = vunpack.c.h.b16 %v376
  %v800 = vunpack.c.l.b16 %v377
  %v801 = vunpack.c.h.b16 %v377
  %v802 = vunpack.c.l.b16 %v378
  %v803 = vunpack.c.h.b16 %v378
  %v804 = vunpack.c.l.b16 %v379
  %v805 = vunpack.c.h.b16 %v379
  %v806 = vunpack.c.l.b16 %v380
  %v807 = vunpack.c.h.b16 %v380
  %v808 = vunpack.c.l.b16 %v381
  %v809 = vunpack.c.h.b16 %v381
  %v810 = vunpack.c.l.b16 %v382
  %v811 = vunpack.c.h.b16 %v382
  %v812 = vunpack.c.l.b16 %v383
  %v813 = vunpack.c.h.b16 %v383
  %v814 = vunpack.c.l.b16 %v384
  %v815 = vunpack.c.h.b16 %v384
  %v816 = vunpack.c.l.b16 %v385
  %v817 = vunpack.c.h.b16 %v385
  %v818 = vunpack.c.l.b16 %v386
  %v819 = vunpack.c.h.b16 %v386
  %v820 = vunpack.c.l.b16 %v387
  %v821 = vunpack.c.h.b16 %v387
  %v822 = vunpack.c.l.b16 %v388
  %v823 = vunpack.c.h.b16 %v388
  %v824 = vunpack.c.l.b16 %v389
  %v825 = vunpack.c.h.b16 %v389
  %v826 = vunpack.c.l.b16 %v390
  %v827 = vunpack.c.h.b16 %v390
  %v828 = vunpack.c.l.b16 %v391
  %v829 = vunpack.c.h.b16 %v391
  %v830 = vunpack.c.l.b16 %v392
  %v831 = vunpack.c.h.b16 %v392
  %v832 = vunpack.c.l.b16 %v393
  %v833 = vunpack.c.h.b16 %v393
  %v834 = vunpack.c.l.b16 %v394
  %v835 = vunpack.c.h.b16 %v394
  %v836 = vunpack.c.l.b16 %v395
  %v837 = vunpack.c.h.b16 %v395
  %v838 = vunpack.c.l.b16 %v396
  %v839 = vunpack.c.h.b16 %v396
  %v840 = vunpack.c.l.b16 %v397
  %v841 = vunpack.c.h.b16 %v397
  %v842 = vunpack.c.l.b16 %v398
  %v843 = vunpack.c.h.b16 %v398
  %v844 = vunpack.c.l.b16 %v399
  %v845 = vunpack.c.h.b16 %v399
  %v846 = vunpack.c.l.b16 %v400
  %v847 = vunpack.c.h.b16 %v400
  %v848 = vunpack.c.l.b16 %v401
  %v849 = vunpack.c.h.b16 %v401
  %v850 = vpack.c.b16 %v598, %v594
  %v851 = vpack.c.b16 %v599, %v595
  %v852 = vpack.c.b16 %v600, %v596
  %v853 = vpack.c.b16 %v601, %v597
  %v854 = vpack.c.b16 %v606, %v602
  %v855 = vpack.c.b16 %v607, %v603
  %v856 = vpack.c.b16 %v608, %v604
  %v857 = vpack.c.b16 %v609, %v605
  %v858 = vpack.c.b16 %v614, %v610
  %v859 = vpack.c.b16 %v615, %v611
  %v860 = vpack.c.b16 %v616, %v612
  %v861 = vpack.c.b16 %v617, %v613
  %v862 = vpack.c.b16 %v622, %v618
  %v863 = vpack.c.b16 %v623, %v619
  %v864 = vpack.c.b16 %v624, %v620
  %v865 = vpack.c.b16 %v625, %v621
  %v866 = vpack.c.b16 %v630, %v626
  %v867 = vpack.c.b16 %v631, %v627
  %v868 = vpack.c.b16 %v632, %v628
  %v869 = vpack.c.b16 %v633, %v629
  %v870 = vpack.c.b16 %v638, %v634
  %v871 = vpack.c.b16 %v639, %v635
  %v872 = vpack.c.b16 %v640, %v636
  %v873 = vpack.c.b16 %v641, %v637
  %v874 = vpack.c.b16 %v646, %v642
  %v875 = vpack.c.b16 %v647, %v643
  %v876 = vpack.c.b16 %v648, %v644
  %v877 = vpack.c.b16 %v649, %v645
  %v878 = vpack.c.b16 %v654, %v650
  %v879 = vpack.c.b16 %v655, %v651
  %v880 = vpack.c.b16 %v656, %v652
  %v881 = vpack.c.b16 %v657, %v653
  %v882 = vpack.c.b16 %v662, %v658
  %v883 = vpack.c.b16 %v663, %v659
  %v884 = vpack.c.b16 %v664, %v660
  %v885 = vpack.c.b16 %v665, %v661
  %v886 = vpack.c.b16 %v670, %v666
  %v887 = vpack.c.b16 %v671, %v667
  %v888 = vpack.c.b16 %v672, %v668
  %v889 = vpack.c.b16 %v673, %v669
  %v890 = vpack.c.b16 %v678, %v674
  %v891 = vpack.c.b16 %v679, %v675
  %v892 = vpack.c.b16 %v680, %v676
  %v893 = vpack.c.b16 %v681, %v677
  %v894 = vpack.c.b16 %v686, %v682
  %v895 = vpack.c.b16 %v687, %v683
  %v896 = vpack.c.b16 %v688, %v684
  %v897 = vpack.c.b16 %v689, %v685
  %v898 = vpack.c.b16 %v694, %v690
  %v899 = vpack.c.b16 %v695, %v691
  %v900 = vpack.c.b16 %v696, %v692
  %v901 = vpack.c.b16 %v697, %v693
  %v902 = vpack.c.b16 %v702, %v698
  %v903 = vpack.c.b16 %v703, %v699
  %v904 = vpack.c.b16 %v704, %v700
  %v905 = vpack.c.b16 %v705, %v701
  %v906 = vpack.c.b16 %v710, %v706
  %v907 = vpack.c.b16 %v711, %v707
  %v908 = vpack.c.b16 %v712, %v708
  %v909 = vpack.c.b16 %v713, %v709
  %v910 = vpack.c.b16 %v718, %v714
  %v911 = vpack.c.b16 %v719, %v715
  %v912 = vpack.c.b16 %v720, %v716
  %v913 = vpack.c.b16 %v721, %v717
  %v914 = vpack.c.b16 %v726, %v722
  %v915 = vpack.c.b16 %v727, %v723
  %v916 = vpack.c.b16 %v728, %v724
  %v917 = vpack.c.b16 %v729, %v725
  %v918 = vpack.c.b16 %v734, %v730
  %v919 = vpack.c.b16 %v735, %v731
  %v920 = vpack.c.b16 %v736, %v732
  %v921 = vpack.c.b16 %v737, %v733
  %v922 = vpack.c.b16 %v742, %v738
  %v923 = vpack.c.b16 %v743, %v739
  %v924 = vpack.c.b16 %v744, %v740
  %v925 = vpack.c.b16 %v745, %v741
  %v926 = vpack.c.b16 %v750, %v746
  %v927 = vpack.c.b16 %v751, %v747
  %v928 = vpack.c.b16 %v752, %v748
  %v929 = vpack.c.b16 %v753, %v749
  %v930 = vpack.c.b16 %v758, %v754
  %v931 = vpack.c.b16 %v759, %v755
  %v932 = vpack.c.b16 %v760, %v756
  %v933 = vpack.c.b16 %v761, %v757
  %v934 = vpack.c.b16 %v766, %v762
  %v935 = vpack.c.b16 %v767, %v763
  %v936 = vpack.c.b16 %v768, %v764
  %v937 = vpack.c.b16 %v769, %v765
  %v938 = vpack.c.b16 %v774, %v770
  %v939 = vpack.c.b16 %v775, %v771
  %v940 = vpack.c.b16 %v776, %v772
  %v941 = vpack.c.b16 %v777, %v773
  %v942 = vpack.c.b16 %v782, %v778
  %v943 = vpack.c.b16 %v783, %v779
  %v944 = vpack.c.b16 %v784, %v780
  %v945 = vpack.c.b16 %v785, %v781
  %v946 = vpack.c.b16 %v790, %v786
  %v947 = vpack.c.b16 %v791, %v787
  %v948 = vpack.c.b16 %v792, %v788
  %v949 = vpack.c.b16 %v793, %v789
  %v950 = vpack.c.b16 %v798, %v794
  %v951 = vpack.c.b16 %v799, %v795
  %v952 = vpack.c.b16 %v800, %v796
  %v953 = vpack.c.b16 %v801, %v797
  %v954 = vpack.c.b16 %v806, %v802
  %v955 = vpack.c.b16 %v807, %v803
  %v956 = vpack.c.b16 %v808, %v804
  %v957 = vpack.c.b16 %v809, %v805
  %v958 = vpack.c.b16 %v814, %v810
  %v959 = vpack.c.b16 %v815, %v811
  %v960 = vpack.c.b16 %v816, %v812
  %v961 = vpack.c.b16 %v817, %v813
  %v962 = vpack.c.b16 %v822, %v818
  %v963 = vpack.c.b16 %v823, %v819
  %v964 = vpack.c.b16 %v824, %v820
  %v965 = vpack.c.b16 %v825, %v821
  %v966 = vpack.c.b16 %v830, %v826
  %v967 = vpack.c.b16 %v831, %v827
  %v968 = vpack.c.b16 %v832, %v828
  %v969 = vpack.c.b16 %v833, %v829
  %v970 = vpack.c.b16 %v838, %v834
  %v971 = vpack.c.b16 %v839, %v835
  %v972 = vpack.c.b16 %v840, %v836
  %v973 = vpack.c.b16 %v841, %v837
  %v974 = vpack.c.b16 %v846, %v842
  %v975 = vpack.c.b16 %v847, %v843
  %v976 = vpack.c.b16 %v848, %v844
  %v977 = vpack.c.b16 %v849, %v845
  %v1170 = vunpack.c.l.b16 %v402
  %v1171 = vunpack.c.h.b16 %v402
  %v1172 = vunpack.c.l.b16 %v403
  %v1173 = vunpack.c.h.b16 %v403
  %v1174 = vunpack.c.l.b16 %v404
  %v1175 = vunpack.c.h.b16 %v404
  %v1176 = vunpack.c.l.b16 %v405
  %v1177 = vunpack.c.h.b16 %v405
  %v1178 = vunpack.c.l.b16 %v406
  %v1179 = vunpack.c.h.b16 %v406
  %v1180 = vunpack.c.l.b16 %v407
  %v1181 = vunpack.c.h.b16 %v407
  %v1182 = vunpack.c.l.b16 %v408
  %v1183 = vunpack.c.h.b16 %v408
  %v1184 = vunpack.c.l.b16 %v409
  %v1185 = vunpack.c.h.b16 %v409
  %v1186 = vunpack.c.l.b16 %v410
  %v1187 = vunpack.c.h.b16 %v410
  %v1188 = vunpack.c.l.b16 %v411
  %v1189 = vunpack.c.h.b16 %v411
  %v1190 = vunpack.c.l.b16 %v412
  %v1191 = vunpack.c.h.b16 %v412
  %v1192 = vunpack.c.l.b16 %v413
  %v1193 = vunpack.c.h.b16 %v413
  %v1194 = vunpack.c.l.b16 %v414
  %v1195 = vunpack.c.h.b16 %v414
  %v1196 = vunpack.c.l.b16 %v415
  %v1197 = vunpack.c.h.b16 %v415
  %v1198 = vunpack.c.l.b16 %v416
  %v1199 = vunpack.c.h.b16 %v416
  %v1200 = vunpack.c.l.b16 %v417
  %v1201 = vunpack.c.h.b16 %v417
  %v1202 = vunpack.c.l.b16 %v418
  %v1203 = vunpack.c.h.b16 %v418
  %v1204 = vunpack.c.l.b16 %v419
  %v1205 = vunpack.c.h.b16 %v419
  %v1206 = vunpack.c.l.b16 %v420
  %v1207 = vunpack.c.h.b16 %v420
  %v1208 = vunpack.c.l.b16 %v421
  %v1209 = vunpack.c.h.b16 %v421
  %v1210 = vunpack.c.l.b16 %v422
  %v1211 = vunpack.c.h.b16 %v422
  %v1212 = vunpack.c.l.b16 %v423
  %v1213 = vunpack.c.h.b16 %v423
  %v1214 = vunpack.c.l.b16 %v424
  %v1215 = vunpack.c.h.b16 %v424
  %v1216 = vunpack.c.l.b16 %v425
  %v1217 = vunpack.c.h.b16 %v425
  %v1218 = vunpack.c.l.b16 %v426
  %v1219 = vunpack.c.h.b16 %v426
  %v1220 = vunpack.c.l.b16 %v427
  %v1221 = vunpack.c.h.b16 %v427
  %v1222 = vunpack.c.l.b16 %v428
  %v1223 = vunpack.c.h.b16 %v428
  %v1224 = vunpack.c.l.b16 %v429
  %v1225 = vunpack.c.h.b16 %v429
  %v1226 = vunpack.c.l.b16 %v430
  %v1227 = vunpack.c.h.b16 %v430
  %v1228 = vunpack.c.l.b16 %v431
  %v1229 = vunpack.c.h.b16 %v431
  %v1230 = vunpack.c.l.b16 %v432
  %v1231 = vunpack.c.h.b16 %v432
  %v1232 = vunpack.c.l.b16 %v433
  %v1233 = vunpack.c.h.b16 %v433
  %v1234 = vunpack.c.l.b16 %v434
  %v1235 = vunpack.c.h.b16 %v434
  %v1236 = vunpack.c.l.b16 %v435
  %v1237 = vunpack.c.h.b16 %v435
  %v1238 = vunpack.c.l.b16 %v436
  %v1239 = vunpack.c.h.b16 %v436
  %v1240 = vunpack.c.l.b16 %v437
  %v1241 = vunpack.c.h.b16 %v437
  %v1242 = vunpack.c.l.b16 %v438
  %v1243 = vunpack.c.h.b16 %v438
  %v1244 = vunpack.c.l.b16 %v439
  %v1245 = vunpack.c.h.b16 %v439
  %v1246 = vunpack.c.l.b16 %v440
  %v1247 = vunpack.c.h.b16 %v440
  %v1248 = vunpack.c.l.b16 %v441
  %v1249 = vunpack.c.h.b16 %v441
  %v1250 = vunpack.c.l.b16 %v442
  %v1251 = vunpack.c.h.b16 %v442
  %v1252 = vunpack.c.l.b16 %v443
  %v1253 = vunpack.c.h.b16 %v443
  %v1254 = vunpack.c.l.b16 %v444
  %v1255 = vunpack.c.h.b16 %v444
  %v1256 = vunpack.c.l.b16 %v445
  %v1257 = vunpack.c.h.b16 %v445
  %v1258 = vunpack.c.l.b16 %v446
  %v1259 = vunpack.c.h.b16 %v446
  %v1260 = vunpack.c.l.b16 %v447
  %v1261 = vunpack.c.h.b16 %v447
  %v1262 = vunpack.c.l.b16 %v448
  %v1263 = vunpack.c.h.b16 %v448
  %v1264 = vunpack.c.l.b16 %v449
  %v1265 = vunpack.c.h.b16 %v449
  %v1266 = vunpack.c.l.b16 %v450
  %v1267 = vunpack.c.h.b16 %v450
  %v1268 = vunpack.c.l.b16 %v451
  %v1269 = vunpack.c.h.b16 %v451
  %v1270 = vunpack.c.l.b16 %v452
  %v1271 = vunpack.c.h.b16 %v452
  %v1272 = vunpack.c.l.b16 %v453
  %v1273 = vunpack.c.h.b16 %v453
  %v1274 = vunpack.c.l.b16 %v454
  %v1275 = vunpack.c.h.b16 %v454
  %v1276 = vunpack.c.l.b16 %v455
  %v1277 = vunpack.c.h.b16 %v455
  %v1278 = vunpack.c.l.b16 %v456
  %v1279 = vunpack.c.h.b16 %v456
  %v1280 = vunpack.c.l.b16 %v457
  %v1281 = vunpack.c.h.b16 %v457
  %v1282 = vunpack.c.l.b16 %v458
  %v1283 = vunpack.c.h.b16 %v458
  %v1284 = vunpack.c.l.b16 %v459
  %v1285 = vunpack.c.h.b16 %v459
  %v1286 = vunpack.c.l.b16 %v460
  %v1287 = vunpack.c.h.b16 %v460
  %v1288 = vunpack.c.l.b16 %v461
  %v1289 = vunpack.c.h.b16 %v461
  %v1290 = vunpack.c.l.b16 %v462
  %v1291 = vunpack.c.h.b16 %v462
  %v1292 = vunpack.c.l.b16 %v463
  %v1293 = vunpack.c.h.b16 %v463
  %v1294 = vunpack.c.l.b16 %v464
  %v1295 = vunpack.c.h.b16 %v464
  %v1296 = vunpack.c.l.b16 %v465
  %v1297 = vunpack.c.h.b16 %v465
  %v1298 = vpack.c.b16 %v1172, %v1170
  %v1299 = vpack.c.b16 %v1173, %v1171
  %v1300 = vpack.c.b16 %v1176, %v1174
  %v1301 = vpack.c.b16 %v1177, %v1175
  %v1302 = vpack.c.b16 %v1180, %v1178
  %v1303 = vpack.c.b16 %v1181, %v1179
  %v1304 = vpack.c.b16 %v1184, %v1182
  %v1305 = vpack.c.b16 %v1185, %v1183
  %v1306 = vpack.c.b16 %v1188, %v1186
  %v1307 = vpack.c.b16 %v1189, %v1187
  %v1308 = vpack.c.b16 %v1192, %v1190
  %v1309 = vpack.c.b16 %v1193, %v1191
  %v1310 = vpack.c.b16 %v1196, %v1194
  %v1311 = vpack.c.b16 %v1197, %v1195
  %v1312 = vpack.c.b16 %v1200, %v1198
  %v1313 = vpack.c.b16 %v1201, %v1199
  %v1314 = vpack.c.b16 %v1204, %v1202
  %v1315 = vpack.c.b16 %v1205, %v1203
  %v1316 = vpack.c.b16 %v1208, %v1206
  %v1317 = vpack.c.b16 %v1209, %v1207
  %v1318 = vpack.c.b16 %v1212, %v1210
  %v1319 = vpack.c.b16 %v1213, %v1211
  %v1320 = vpack.c.b16 %v1216, %v1214
  %v1321 = vpack.c.b16 %v1217, %v1215
  %v1322 = vpack.c.b16 %v1220, %v1218
  %v1323 = vpack.c.b16 %v1221, %v1219
  %v1324 = vpack.c.b16 %v1224, %v1222
  %v1325 = vpack.c.b16 %v1225, %v1223
  %v1326 = vpack.c.b16 %v1228, %v1226
  %v1327 = vpack.c.b16 %v1229, %v1227
  %v1328 = vpack.c.b16 %v1232, %v1230
  %v1329 = vpack.c.b16 %v1233, %v1231
  %v1330 = vpack.c.b16 %v1236, %v1234
  %v1331 = vpack.c.b16 %v1237, %v1235
  %v1332 = vpack.c.b16 %v1240, %v1238
  %v1333 = vpack.c.b16 %v1241, %v1239
  %v1334 = vpack.c.b16 %v1244, %v1242
  %v1335 = vpack.c.b16 %v1245, %v1243
  %v1336 = vpack.c.b16 %v1248, %v1246
  %v1337 = vpack.c.b16 %v1249, %v1247
  %v1338 = vpack.c.b16 %v1252, %v1250
  %v1339 = vpack.c.b16 %v1253, %v1251
  %v1340 = vpack.c.b16 %v1256, %v1254
  %v1341 = vpack.c.b16 %v1257, %v1255
  %v1342 = vpack.c.b16 %v1260, %v1258
  %v1343 = vpack.c.b16 %v1261, %v1259
  %v1344 = vpack.c.b16 %v1264, %v1262
  %v1345 = vpack.c.b16 %v1265, %v1263
  %v1346 = vpack.c.b16 %v1268, %v1266
  %v1347 = vpack.c.b16 %v1269, %v1267
  %v1348 = vpack.c.b16 %v1272, %v1270
  %v1349 = vpack.c.b16 %v1273, %v1271
  %v1350 = vpack.c.b16 %v1276, %v1274
  %v1351 = vpack.c.b16 %v1277, %v1275
  %v1352 = vpack.c.b16 %v1280, %v1278
  %v1353 = vpack.c.b16 %v1281, %v1279
  %v1354 = vpack.c.b16 %v1284, %v1282
  %v1355 = vpack.c.b16 %v1285, %v1283
  %v1356 = vpack.c.b16 %v1288, %v1286
  %v1357 = vpack.c.b16 %v1289, %v1287
  %v1358 = vpack.c.b16 %v1292, %v1290
  %v1359 = vpack.c.b16 %v1293, %v1291
  %v1360 = vpack.c.b16 %v1296, %v1294
  %v1361 = vpack.c.b16 %v1297, %v1295
  %1426 = vmatprep.subr.bf16.mxu0 %v1299
  %1427 = vmatpush1.bf16.msra.mxu0 %v1298
  %1428 = vmatprep.subr.bf16.mxu0 %v1301
  %1429 = vmatpush1.bf16.msra.mxu0 %v1300
  %1430 = vmatprep.subr.bf16.mxu0 %v1303
  %1431 = vmatpush1.bf16.msra.mxu0 %v1302
  %1432 = vmatprep.subr.bf16.mxu0 %v1305
  %1433 = vmatpush1.bf16.msra.mxu0 %v1304
  %1434 = vmatprep.subr.bf16.mxu0 %v1307
  %1435 = vmatpush1.bf16.msra.mxu0 %v1306
  %1436 = vmatprep.subr.bf16.mxu0 %v1309
  %1437 = vmatpush1.bf16.msra.mxu0 %v1308
  %1438 = vmatprep.subr.bf16.mxu0 %v1311
  %1439 = vmatpush1.bf16.msra.mxu0 %v1310
  %1440 = vmatprep.subr.bf16.mxu0 %v1313
  %1441 = vmatpush1.bf16.msra.mxu0 %v1312
  %1442 = vmatprep.subr.bf16.mxu0 %v1315
  %1443 = vmatpush1.bf16.msra.mxu0 %v1314
  %1444 = vmatprep.subr.bf16.mxu0 %v1317
  %1445 = vmatpush1.bf16.msra.mxu0 %v1316
  %1446 = vmatprep.subr.bf16.mxu0 %v1319
  %1447 = vmatpush1.bf16.msra.mxu0 %v1318
  %1448 = vmatprep.subr.bf16.mxu0 %v1321
  %1449 = vmatpush1.bf16.msra.mxu0 %v1320
  %1450 = vmatprep.subr.bf16.mxu0 %v1323
  %1451 = vmatpush1.bf16.msra.mxu0 %v1322
  %1452 = vmatprep.subr.bf16.mxu0 %v1325
  %1453 = vmatpush1.bf16.msra.mxu0 %v1324
  %1454 = vmatprep.subr.bf16.mxu0 %v1327
  %1455 = vmatpush1.bf16.msra.mxu0 %v1326
  %1456 = vmatprep.subr.bf16.mxu0 %v1329
  %1457 = vmatpush1.bf16.msra.mxu0 %v1328
  %1458 = vmatprep.mubr.bf16.mxu0 %v851
  %1459 = vmatmul.mubr.bf16.gmra.mrb[0].mxu0 %v850
  %v1460 = vpop.f32.mrb[0].mxu0
  %v1461 = vadd.f32 0.0, %v1460
  %v1462 = vpop.f32.mrb[0].mxu0
  %v1463 = vadd.f32 0.0, %v1462
  %v1464 = vpop.f32.mrb[0].mxu0
  %v1465 = vadd.f32 0.0, %v1464
  %v1466 = vpop.f32.mrb[0].mxu0
  %v1467 = vadd.f32 0.0, %v1466
  %1468 = vmatprep.mubr.bf16.mxu0 %v855
  %1469 = vmatmul.mubr.bf16.gmra.mrb[0].mxu0 %v854
  %v1470 = vpop.f32.mrb[0].mxu0
  %v1471 = vadd.f32 0.0, %v1470
  %v1472 = vpop.f32.mrb[0].mxu0
  %v1473 = vadd.f32 0.0, %v1472
  %v1474 = vpop.f32.mrb[0].mxu0
  %v1475 = vadd.f32 0.0, %v1474
  %v1476 = vpop.f32.mrb[0].mxu0
  %v1477 = vadd.f32 0.0, %v1476
  %1478 = vmatprep.mubr.bf16.mxu0 %v859
  %1479 = vmatmul.mubr.bf16.gmra.mrb[0].mxu0 %v858
  %v1480 = vpop.f32.mrb[0].mxu0
  %v1481 = vadd.f32 0.0, %v1480
  %v1482 = vpop.f32.mrb[0].mxu0
  %v1483 = vadd.f32 0.0, %v1482
  %v1484 = vpop.f32.mrb[0].mxu0
  %v1485 = vadd.f32 0.0, %v1484
  %v1486 = vpop.f32.mrb[0].mxu0
  %v1487 = vadd.f32 0.0, %v1486
  %1488 = vmatprep.mubr.bf16.mxu0 %v863
  %1489 = vmatmul.mubr.bf16.gmra.mrb[0].mxu0 %v862
  %v1490 = vpop.f32.mrb[0].mxu0
  %v1491 = vadd.f32 0.0, %v1490
  %v1492 = vpop.f32.mrb[0].mxu0
  %v1493 = vadd.f32 0.0, %v1492
  %v1494 = vpop.f32.mrb[0].mxu0
  %v1495 = vadd.f32 0.0, %v1494
  %v1496 = vpop.f32.mrb[0].mxu0
  %v1497 = vadd.f32 0.0, %v1496
  %1498 = vmatprep.mubr.bf16.mxu0 %v867
  %1499 = vmatmul.mubr.bf16.gmra.mrb[0].mxu0 %v866
  %v1500 = vpop.f32.mrb[0].mxu0
  %v1501 = vadd.f32 0.0, %v1500
  %v1502 = vpop.f32.mrb[0].mxu0
  %v1503 = vadd.f32 0.0, %v1502
  %v1504 = vpop.f32.mrb[0].mxu0
  %v1505 = vadd.f32 0.0, %v1504
  %v1506 = vpop.f32.mrb[0].mxu0
  %v1507 = vadd.f32 0.0, %v1506
  %1508 = vmatprep.mubr.bf16.mxu0 %v871
  %1509 = vmatmul.mubr.bf16.gmra.mrb[0].mxu0 %v870
  %v1510 = vpop.f32.mrb[0].mxu0
  %v1511 = vadd.f32 0.0, %v1510
  %v1512 = vpop.f32.mrb[0].mxu0
  %v1513 = vadd.f32 0.0, %v1512
  %v1514 = vpop.f32.mrb[0].mxu0
  %v1515 = vadd.f32 0.0, %v1514
  %v1516 = vpop.f32.mrb[0].mxu0
  %v1517 = vadd.f32 0.0, %v1516
  %1518 = vmatprep.mubr.bf16.mxu0 %v875
  %1519 = vmatmul.mubr.bf16.gmra.mrb[0].mxu0 %v874
  %v1520 = vpop.f32.mrb[0].mxu0
  %v1521 = vadd.f32 0.0, %v1520
  %v1522 = vpop.f32.mrb[0].mxu0
  %v1523 = vadd.f32 0.0, %v1522
  %v1524 = vpop.f32.mrb[0].mxu0
  %v1525 = vadd.f32 0.0, %v1524
  %v1526 = vpop.f32.mrb[0].mxu0
  %v1527 = vadd.f32 0.0, %v1526
  %1528 = vmatprep.mubr.bf16.mxu0 %v879
  %1529 = vmatmul.mubr.bf16.gmra.mrb[0].mxu0 %v878
  %v1530 = vpop.f32.mrb[0].mxu0
  %v1531 = vadd.f32 0.0, %v1530
  %v1532 = vpop.f32.mrb[0].mxu0
  %v1533 = vadd.f32 0.0, %v1532
  %v1534 = vpop.f32.mrb[0].mxu0
  %v1535 = vadd.f32 0.0, %v1534
  %v1536 = vpop.f32.mrb[0].mxu0
  %v1537 = vadd.f32 0.0, %v1536
  %1538 = vmatprep.mubr.bf16.mxu0 %v883
  %1539 = vmatmul.mubr.bf16.gmra.mrb[0].mxu0 %v882
  %v1540 = vpop.f32.mrb[0].mxu0
  %v1541 = vadd.f32 0.0, %v1540
  %v1542 = vpop.f32.mrb[0].mxu0
  %v1543 = vadd.f32 0.0, %v1542
  %v1544 = vpop.f32.mrb[0].mxu0
  %v1545 = vadd.f32 0.0, %v1544
  %v1546 = vpop.f32.mrb[0].mxu0
  %v1547 = vadd.f32 0.0, %v1546
  %1548 = vmatprep.mubr.bf16.mxu0 %v887
  %1549 = vmatmul.mubr.bf16.gmra.mrb[0].mxu0 %v886
  %v1550 = vpop.f32.mrb[0].mxu0
  %v1551 = vadd.f32 0.0, %v1550
  %v1552 = vpop.f32.mrb[0].mxu0
  %v1553 = vadd.f32 0.0, %v1552
  %v1554 = vpop.f32.mrb[0].mxu0
  %v1555 = vadd.f32 0.0, %v1554
  %v1556 = vpop.f32.mrb[0].mxu0
  %v1557 = vadd.f32 0.0, %v1556
  %1558 = vmatprep.mubr.bf16.mxu0 %v891
  %1559 = vmatmul.mubr.bf16.gmra.mrb[0].mxu0 %v890
  %v1560 = vpop.f32.mrb[0].mxu0
  %v1561 = vadd.f32 0.0, %v1560
  %v1562 = vpop.f32.mrb[0].mxu0
  %v1563 = vadd.f32 0.0, %v1562
  %v1564 = vpop.f32.mrb[0].mxu0
  %v1565 = vadd.f32 0.0, %v1564
  %v1566 = vpop.f32.mrb[0].mxu0
  %v1567 = vadd.f32 0.0, %v1566
  %1568 = vmatprep.mubr.bf16.mxu0 %v895
  %1569 = vmatmul.mubr.bf16.gmra.mrb[0].mxu0 %v894
  %v1570 = vpop.f32.mrb[0].mxu0
  %v1571 = vadd.f32 0.0, %v1570
  %v1572 = vpop.f32.mrb[0].mxu0
  %v1573 = vadd.f32 0.0, %v1572
  %v1574 = vpop.f32.mrb[0].mxu0
  %v1575 = vadd.f32 0.0, %v1574
  %v1576 = vpop.f32.mrb[0].mxu0
  %v1577 = vadd.f32 0.0, %v1576
  %1578 = vmatprep.mubr.bf16.mxu0 %v899
  %1579 = vmatmul.mubr.bf16.gmra.mrb[0].mxu0 %v898
  %v1580 = vpop.f32.mrb[0].mxu0
  %v1581 = vadd.f32 0.0, %v1580
  %v1582 = vpop.f32.mrb[0].mxu0
  %v1583 = vadd.f32 0.0, %v1582
  %v1584 = vpop.f32.mrb[0].mxu0
  %v1585 = vadd.f32 0.0, %v1584
  %v1586 = vpop.f32.mrb[0].mxu0
  %v1587 = vadd.f32 0.0, %v1586
  %1588 = vmatprep.mubr.bf16.mxu0 %v903
  %1589 = vmatmul.mubr.bf16.gmra.mrb[0].mxu0 %v902
  %v1590 = vpop.f32.mrb[0].mxu0
  %v1591 = vadd.f32 0.0, %v1590
  %v1592 = vpop.f32.mrb[0].mxu0
  %v1593 = vadd.f32 0.0, %v1592
  %v1594 = vpop.f32.mrb[0].mxu0
  %v1595 = vadd.f32 0.0, %v1594
  %v1596 = vpop.f32.mrb[0].mxu0
  %v1597 = vadd.f32 0.0, %v1596
  %1598 = vmatprep.mubr.bf16.mxu0 %v907
  %1599 = vmatmul.mubr.bf16.gmra.mrb[0].mxu0 %v906
  %v1600 = vpop.f32.mrb[0].mxu0
  %v1601 = vadd.f32 0.0, %v1600
  %v1602 = vpop.f32.mrb[0].mxu0
  %v1603 = vadd.f32 0.0, %v1602
  %v1604 = vpop.f32.mrb[0].mxu0
  %v1605 = vadd.f32 0.0, %v1604
  %v1606 = vpop.f32.mrb[0].mxu0
  %v1607 = vadd.f32 0.0, %v1606
  %1608 = vmatprep.mubr.bf16.mxu0 %v911
  %1609 = vmatmul.mubr.bf16.gmra.mrb[0].mxu0 %v910
  %v1610 = vpop.f32.mrb[0].mxu0
  %v1611 = vadd.f32 0.0, %v1610
  %v1612 = vpop.f32.mrb[0].mxu0
  %v1613 = vadd.f32 0.0, %v1612
  %v1614 = vpop.f32.mrb[0].mxu0
  %v1615 = vadd.f32 0.0, %v1614
  %v1616 = vpop.f32.mrb[0].mxu0
  %v1617 = vadd.f32 0.0, %v1616
  %1618 = vmatprep.mubr.bf16.mxu0 %v915
  %1619 = vmatmul.mubr.bf16.gmra.mrb[0].mxu0 %v914
  %v1620 = vpop.f32.mrb[0].mxu0
  %v1621 = vadd.f32 0.0, %v1620
  %v1622 = vpop.f32.mrb[0].mxu0
  %v1623 = vadd.f32 0.0, %v1622
  %v1624 = vpop.f32.mrb[0].mxu0
  %v1625 = vadd.f32 0.0, %v1624
  %v1626 = vpop.f32.mrb[0].mxu0
  %v1627 = vadd.f32 0.0, %v1626
  %1628 = vmatprep.mubr.bf16.mxu0 %v919
  %1629 = vmatmul.mubr.bf16.gmra.mrb[0].mxu0 %v918
  %v1630 = vpop.f32.mrb[0].mxu0
  %v1631 = vadd.f32 0.0, %v1630
  %v1632 = vpop.f32.mrb[0].mxu0
  %v1633 = vadd.f32 0.0, %v1632
  %v1634 = vpop.f32.mrb[0].mxu0
  %v1635 = vadd.f32 0.0, %v1634
  %v1636 = vpop.f32.mrb[0].mxu0
  %v1637 = vadd.f32 0.0, %v1636
  %1638 = vmatprep.mubr.bf16.mxu0 %v923
  %1639 = vmatmul.mubr.bf16.gmra.mrb[0].mxu0 %v922
  %v1640 = vpop.f32.mrb[0].mxu0
  %v1641 = vadd.f32 0.0, %v1640
  %v1642 = vpop.f32.mrb[0].mxu0
  %v1643 = vadd.f32 0.0, %v1642
  %v1644 = vpop.f32.mrb[0].mxu0
  %v1645 = vadd.f32 0.0, %v1644
  %v1646 = vpop.f32.mrb[0].mxu0
  %v1647 = vadd.f32 0.0, %v1646
  %1648 = vmatprep.mubr.bf16.mxu0 %v927
  %1649 = vmatmul.mubr.bf16.gmra.mrb[0].mxu0 %v926
  %v1650 = vpop.f32.mrb[0].mxu0
  %v1651 = vadd.f32 0.0, %v1650
  %v1652 = vpop.f32.mrb[0].mxu0
  %v1653 = vadd.f32 0.0, %v1652
  %v1654 = vpop.f32.mrb[0].mxu0
  %v1655 = vadd.f32 0.0, %v1654
  %v1656 = vpop.f32.mrb[0].mxu0
  %v1657 = vadd.f32 0.0, %v1656
  %1658 = vmatprep.mubr.bf16.mxu0 %v931
  %1659 = vmatmul.mubr.bf16.gmra.mrb[0].mxu0 %v930
  %v1660 = vpop.f32.mrb[0].mxu0
  %v1661 = vadd.f32 0.0, %v1660
  %v1662 = vpop.f32.mrb[0].mxu0
  %v1663 = vadd.f32 0.0, %v1662
  %v1664 = vpop.f32.mrb[0].mxu0
  %v1665 = vadd.f32 0.0, %v1664
  %v1666 = vpop.f32.mrb[0].mxu0
  %v1667 = vadd.f32 0.0, %v1666
  %1668 = vmatprep.mubr.bf16.mxu0 %v935
  %1669 = vmatmul.mubr.bf16.gmra.mrb[0].mxu0 %v934
  %v1670 = vpop.f32.mrb[0].mxu0
  %v1671 = vadd.f32 0.0, %v1670
  %v1672 = vpop.f32.mrb[0].mxu0
  %v1673 = vadd.f32 0.0, %v1672
  %v1674 = vpop.f32.mrb[0].mxu0
  %v1675 = vadd.f32 0.0, %v1674
  %v1676 = vpop.f32.mrb[0].mxu0
  %v1677 = vadd.f32 0.0, %v1676
  %1678 = vmatprep.mubr.bf16.mxu0 %v939
  %1679 = vmatmul.mubr.bf16.gmra.mrb[0].mxu0 %v938
  %v1680 = vpop.f32.mrb[0].mxu0
  %v1681 = vadd.f32 0.0, %v1680
  %v1682 = vpop.f32.mrb[0].mxu0
  %v1683 = vadd.f32 0.0, %v1682
  %v1684 = vpop.f32.mrb[0].mxu0
  %v1685 = vadd.f32 0.0, %v1684
  %v1686 = vpop.f32.mrb[0].mxu0
  %v1687 = vadd.f32 0.0, %v1686
  %1688 = vmatprep.mubr.bf16.mxu0 %v943
  %1689 = vmatmul.mubr.bf16.gmra.mrb[0].mxu0 %v942
  %v1690 = vpop.f32.mrb[0].mxu0
  %v1691 = vadd.f32 0.0, %v1690
  %v1692 = vpop.f32.mrb[0].mxu0
  %v1693 = vadd.f32 0.0, %v1692
  %v1694 = vpop.f32.mrb[0].mxu0
  %v1695 = vadd.f32 0.0, %v1694
  %v1696 = vpop.f32.mrb[0].mxu0
  %v1697 = vadd.f32 0.0, %v1696
  %1698 = vmatprep.mubr.bf16.mxu0 %v947
  %1699 = vmatmul.mubr.bf16.gmra.mrb[0].mxu0 %v946
  %v1700 = vpop.f32.mrb[0].mxu0
  %v1701 = vadd.f32 0.0, %v1700
  %v1702 = vpop.f32.mrb[0].mxu0
  %v1703 = vadd.f32 0.0, %v1702
  %v1704 = vpop.f32.mrb[0].mxu0
  %v1705 = vadd.f32 0.0, %v1704
  %v1706 = vpop.f32.mrb[0].mxu0
  %v1707 = vadd.f32 0.0, %v1706
  %1708 = vmatprep.mubr.bf16.mxu0 %v951
  %1709 = vmatmul.mubr.bf16.gmra.mrb[0].mxu0 %v950
  %v1710 = vpop.f32.mrb[0].mxu0
  %v1711 = vadd.f32 0.0, %v1710
  %v1712 = vpop.f32.mrb[0].mxu0
  %v1713 = vadd.f32 0.0, %v1712
  %v1714 = vpop.f32.mrb[0].mxu0
  %v1715 = vadd.f32 0.0, %v1714
  %v1716 = vpop.f32.mrb[0].mxu0
  %v1717 = vadd.f32 0.0, %v1716
  %1718 = vmatprep.mubr.bf16.mxu0 %v955
  %1719 = vmatmul.mubr.bf16.gmra.mrb[0].mxu0 %v954
  %v1720 = vpop.f32.mrb[0].mxu0
  %v1721 = vadd.f32 0.0, %v1720
  %v1722 = vpop.f32.mrb[0].mxu0
  %v1723 = vadd.f32 0.0, %v1722
  %v1724 = vpop.f32.mrb[0].mxu0
  %v1725 = vadd.f32 0.0, %v1724
  %v1726 = vpop.f32.mrb[0].mxu0
  %v1727 = vadd.f32 0.0, %v1726
  %1728 = vmatprep.mubr.bf16.mxu0 %v959
  %1729 = vmatmul.mubr.bf16.gmra.mrb[0].mxu0 %v958
  %v1730 = vpop.f32.mrb[0].mxu0
  %v1731 = vadd.f32 0.0, %v1730
  %v1732 = vpop.f32.mrb[0].mxu0
  %v1733 = vadd.f32 0.0, %v1732
  %v1734 = vpop.f32.mrb[0].mxu0
  %v1735 = vadd.f32 0.0, %v1734
  %v1736 = vpop.f32.mrb[0].mxu0
  %v1737 = vadd.f32 0.0, %v1736
  %1738 = vmatprep.mubr.bf16.mxu0 %v963
  %1739 = vmatmul.mubr.bf16.gmra.mrb[0].mxu0 %v962
  %v1740 = vpop.f32.mrb[0].mxu0
  %v1741 = vadd.f32 0.0, %v1740
  %v1742 = vpop.f32.mrb[0].mxu0
  %v1743 = vadd.f32 0.0, %v1742
  %v1744 = vpop.f32.mrb[0].mxu0
  %v1745 = vadd.f32 0.0, %v1744
  %v1746 = vpop.f32.mrb[0].mxu0
  %v1747 = vadd.f32 0.0, %v1746
  %1748 = vmatprep.mubr.bf16.mxu0 %v967
  %1749 = vmatmul.mubr.bf16.gmra.mrb[0].mxu0 %v966
  %v1750 = vpop.f32.mrb[0].mxu0
  %v1751 = vadd.f32 0.0, %v1750
  %v1752 = vpop.f32.mrb[0].mxu0
  %v1753 = vadd.f32 0.0, %v1752
  %v1754 = vpop.f32.mrb[0].mxu0
  %v1755 = vadd.f32 0.0, %v1754
  %v1756 = vpop.f32.mrb[0].mxu0
  %v1757 = vadd.f32 0.0, %v1756
  %1758 = vmatprep.mubr.bf16.mxu0 %v971
  %1759 = vmatmul.mubr.bf16.gmra.mrb[0].mxu0 %v970
  %v1760 = vpop.f32.mrb[0].mxu0
  %v1761 = vadd.f32 0.0, %v1760
  %v1762 = vpop.f32.mrb[0].mxu0
  %v1763 = vadd.f32 0.0, %v1762
  %v1764 = vpop.f32.mrb[0].mxu0
  %v1765 = vadd.f32 0.0, %v1764
  %v1766 = vpop.f32.mrb[0].mxu0
  %v1767 = vadd.f32 0.0, %v1766
  %1768 = vmatprep.mubr.bf16.mxu0 %v975
  %1769 = vmatmul.mubr.bf16.gmra.mrb[0].mxu0 %v974
  %v1770 = vpop.f32.mrb[0].mxu0
  %v1771 = vadd.f32 0.0, %v1770
  %v1772 = vpop.f32.mrb[0].mxu0
  %v1773 = vadd.f32 0.0, %v1772
  %v1774 = vpop.f32.mrb[0].mxu0
  %v1775 = vadd.f32 0.0, %v1774
  %v1776 = vpop.f32.mrb[0].mxu0
  %v1777 = vadd.f32 0.0, %v1776
  %1778 = vdwg.mxu0
  %1779 = vmatprep.subr.bf16.mxu0 %v1331
  %1780 = vmatpush1.bf16.msra.mxu0 %v1330
  %1781 = vmatprep.subr.bf16.mxu0 %v1333
  %1782 = vmatpush1.bf16.msra.mxu0 %v1332
  %1783 = vmatprep.subr.bf16.mxu0 %v1335
  %1784 = vmatpush1.bf16.msra.mxu0 %v1334
  %1785 = vmatprep.subr.bf16.mxu0 %v1337
  %1786 = vmatpush1.bf16.msra.mxu0 %v1336
  %1787 = vmatprep.subr.bf16.mxu0 %v1339
  %1788 = vmatpush1.bf16.msra.mxu0 %v1338
  %1789 = vmatprep.subr.bf16.mxu0 %v1341
  %1790 = vmatpush1.bf16.msra.mxu0 %v1340
  %1791 = vmatprep.subr.bf16.mxu0 %v1343
  %1792 = vmatpush1.bf16.msra.mxu0 %v1342
  %1793 = vmatprep.subr.bf16.mxu0 %v1345
  %1794 = vmatpush1.bf16.msra.mxu0 %v1344
  %1795 = vmatprep.subr.bf16.mxu0 %v1347
  %1796 = vmatpush1.bf16.msra.mxu0 %v1346
  %1797 = vmatprep.subr.bf16.mxu0 %v1349
  %1798 = vmatpush1.bf16.msra.mxu0 %v1348
  %1799 = vmatprep.subr.bf16.mxu0 %v1351
  %1800 = vmatpush1.bf16.msra.mxu0 %v1350
  %1801 = vmatprep.subr.bf16.mxu0 %v1353
  %1802 = vmatpush1.bf16.msra.mxu0 %v1352
  %1803 = vmatprep.subr.bf16.mxu0 %v1355
  %1804 = vmatpush1.bf16.msra.mxu0 %v1354
  %1805 = vmatprep.subr.bf16.mxu0 %v1357
  %1806 = vmatpush1.bf16.msra.mxu0 %v1356
  %1807 = vmatprep.subr.bf16.mxu0 %v1359
  %1808 = vmatpush1.bf16.msra.mxu0 %v1358
  %1809 = vmatprep.subr.bf16.mxu0 %v1361
  %1810 = vmatpush1.bf16.msra.mxu0 %v1360
  %1811 = vmatprep.mubr.bf16.mxu0 %v853
  %1812 = vmatmul.mubr.bf16.gmra.mrb[0].mxu0 %v852
  %v1813 = vpop.f32.mrb[0].mxu0
  %v1814 = vadd.f32 %v1461, %v1813
  %v1815 = vpop.f32.mrb[0].mxu0
  %v1816 = vadd.f32 %v1463, %v1815
  %v1817 = vpop.f32.mrb[0].mxu0
  %v1818 = vadd.f32 %v1465, %v1817
  %v1819 = vpop.f32.mrb[0].mxu0
  %v1820 = vadd.f32 %v1467, %v1819
  %1821 = vmatprep.mubr.bf16.mxu0 %v857
  %1822 = vmatmul.mubr.bf16.gmra.mrb[0].mxu0 %v856
  %v1823 = vpop.f32.mrb[0].mxu0
  %v1824 = vadd.f32 %v1471, %v1823
  %v1825 = vpop.f32.mrb[0].mxu0
  %v1826 = vadd.f32 %v1473, %v1825
  %v1827 = vpop.f32.mrb[0].mxu0
  %v1828 = vadd.f32 %v1475, %v1827
  %v1829 = vpop.f32.mrb[0].mxu0
  %v1830 = vadd.f32 %v1477, %v1829
  %1831 = vmatprep.mubr.bf16.mxu0 %v861
  %1832 = vmatmul.mubr.bf16.gmra.mrb[0].mxu0 %v860
  %v1833 = vpop.f32.mrb[0].mxu0
  %v1834 = vadd.f32 %v1481, %v1833
  %v1835 = vpop.f32.mrb[0].mxu0
  %v1836 = vadd.f32 %v1483, %v1835
  %v1837 = vpop.f32.mrb[0].mxu0
  %v1838 = vadd.f32 %v1485, %v1837
  %v1839 = vpop.f32.mrb[0].mxu0
  %v1840 = vadd.f32 %v1487, %v1839
  %1841 = vmatprep.mubr.bf16.mxu0 %v865
  %1842 = vmatmul.mubr.bf16.gmra.mrb[0].mxu0 %v864
  %v1843 = vpop.f32.mrb[0].mxu0
  %v1844 = vadd.f32 %v1491, %v1843
  %v1845 = vpop.f32.mrb[0].mxu0
  %v1846 = vadd.f32 %v1493, %v1845
  %v1847 = vpop.f32.mrb[0].mxu0
  %v1848 = vadd.f32 %v1495, %v1847
  %v1849 = vpop.f32.mrb[0].mxu0
  %v1850 = vadd.f32 %v1497, %v1849
  %1851 = vmatprep.mubr.bf16.mxu0 %v869
  %1852 = vmatmul.mubr.bf16.gmra.mrb[0].mxu0 %v868
  %v1853 = vpop.f32.mrb[0].mxu0
  %v1854 = vadd.f32 %v1501, %v1853
  %v1855 = vpop.f32.mrb[0].mxu0
  %v1856 = vadd.f32 %v1503, %v1855
  %v1857 = vpop.f32.mrb[0].mxu0
  %v1858 = vadd.f32 %v1505, %v1857
  %v1859 = vpop.f32.mrb[0].mxu0
  %v1860 = vadd.f32 %v1507, %v1859
  %1861 = vmatprep.mubr.bf16.mxu0 %v873
  %1862 = vmatmul.mubr.bf16.gmra.mrb[0].mxu0 %v872
  %v1863 = vpop.f32.mrb[0].mxu0
  %v1864 = vadd.f32 %v1511, %v1863
  %v1865 = vpop.f32.mrb[0].mxu0
  %v1866 = vadd.f32 %v1513, %v1865
  %v1867 = vpop.f32.mrb[0].mxu0
  %v1868 = vadd.f32 %v1515, %v1867
  %v1869 = vpop.f32.mrb[0].mxu0
  %v1870 = vadd.f32 %v1517, %v1869
  %1871 = vmatprep.mubr.bf16.mxu0 %v877
  %1872 = vmatmul.mubr.bf16.gmra.mrb[0].mxu0 %v876
  %v1873 = vpop.f32.mrb[0].mxu0
  %v1874 = vadd.f32 %v1521, %v1873
  %v1875 = vpop.f32.mrb[0].mxu0
  %v1876 = vadd.f32 %v1523, %v1875
  %v1877 = vpop.f32.mrb[0].mxu0
  %v1878 = vadd.f32 %v1525, %v1877
  %v1879 = vpop.f32.mrb[0].mxu0
  %v1880 = vadd.f32 %v1527, %v1879
  %1881 = vmatprep.mubr.bf16.mxu0 %v881
  %1882 = vmatmul.mubr.bf16.gmra.mrb[0].mxu0 %v880
  %v1883 = vpop.f32.mrb[0].mxu0
  %v1884 = vadd.f32 %v1531, %v1883
  %v1885 = vpop.f32.mrb[0].mxu0
  %v1886 = vadd.f32 %v1533, %v1885
  %v1887 = vpop.f32.mrb[0].mxu0
  %v1888 = vadd.f32 %v1535, %v1887
  %v1889 = vpop.f32.mrb[0].mxu0
  %v1890 = vadd.f32 %v1537, %v1889
  %1891 = vmatprep.mubr.bf16.mxu0 %v885
  %1892 = vmatmul.mubr.bf16.gmra.mrb[0].mxu0 %v884
  %v1893 = vpop.f32.mrb[0].mxu0
  %v1894 = vadd.f32 %v1541, %v1893
  %v1895 = vpop.f32.mrb[0].mxu0
  %v1896 = vadd.f32 %v1543, %v1895
  %v1897 = vpop.f32.mrb[0].mxu0
  %v1898 = vadd.f32 %v1545, %v1897
  %v1899 = vpop.f32.mrb[0].mxu0
  %v1900 = vadd.f32 %v1547, %v1899
  %1901 = vmatprep.mubr.bf16.mxu0 %v889
  %1902 = vmatmul.mubr.bf16.gmra.mrb[0].mxu0 %v888
  %v1903 = vpop.f32.mrb[0].mxu0
  %v1904 = vadd.f32 %v1551, %v1903
  %v1905 = vpop.f32.mrb[0].mxu0
  %v1906 = vadd.f32 %v1553, %v1905
  %v1907 = vpop.f32.mrb[0].mxu0
  %v1908 = vadd.f32 %v1555, %v1907
  %v1909 = vpop.f32.mrb[0].mxu0
  %v1910 = vadd.f32 %v1557, %v1909
  %1911 = vmatprep.mubr.bf16.mxu0 %v893
  %1912 = vmatmul.mubr.bf16.gmra.mrb[0].mxu0 %v892
  %v1913 = vpop.f32.mrb[0].mxu0
  %v1914 = vadd.f32 %v1561, %v1913
  %v1915 = vpop.f32.mrb[0].mxu0
  %v1916 = vadd.f32 %v1563, %v1915
  %v1917 = vpop.f32.mrb[0].mxu0
  %v1918 = vadd.f32 %v1565, %v1917
  %v1919 = vpop.f32.mrb[0].mxu0
  %v1920 = vadd.f32 %v1567, %v1919
  %1921 = vmatprep.mubr.bf16.mxu0 %v897
  %1922 = vmatmul.mubr.bf16.gmra.mrb[0].mxu0 %v896
  %v1923 = vpop.f32.mrb[0].mxu0
  %v1924 = vadd.f32 %v1571, %v1923
  %v1925 = vpop.f32.mrb[0].mxu0
  %v1926 = vadd.f32 %v1573, %v1925
  %v1927 = vpop.f32.mrb[0].mxu0
  %v1928 = vadd.f32 %v1575, %v1927
  %v1929 = vpop.f32.mrb[0].mxu0
  %v1930 = vadd.f32 %v1577, %v1929
  %1931 = vmatprep.mubr.bf16.mxu0 %v901
  %1932 = vmatmul.mubr.bf16.gmra.mrb[0].mxu0 %v900
  %v1933 = vpop.f32.mrb[0].mxu0
  %v1934 = vadd.f32 %v1581, %v1933
  %v1935 = vpop.f32.mrb[0].mxu0
  %v1936 = vadd.f32 %v1583, %v1935
  %v1937 = vpop.f32.mrb[0].mxu0
  %v1938 = vadd.f32 %v1585, %v1937
  %v1939 = vpop.f32.mrb[0].mxu0
  %v1940 = vadd.f32 %v1587, %v1939
  %1941 = vmatprep.mubr.bf16.mxu0 %v905
  %1942 = vmatmul.mubr.bf16.gmra.mrb[0].mxu0 %v904
  %v1943 = vpop.f32.mrb[0].mxu0
  %v1944 = vadd.f32 %v1591, %v1943
  %v1945 = vpop.f32.mrb[0].mxu0
  %v1946 = vadd.f32 %v1593, %v1945
  %v1947 = vpop.f32.mrb[0].mxu0
  %v1948 = vadd.f32 %v1595, %v1947
  %v1949 = vpop.f32.mrb[0].mxu0
  %v1950 = vadd.f32 %v1597, %v1949
  %1951 = vmatprep.mubr.bf16.mxu0 %v909
  %1952 = vmatmul.mubr.bf16.gmra.mrb[0].mxu0 %v908
  %v1953 = vpop.f32.mrb[0].mxu0
  %v1954 = vadd.f32 %v1601, %v1953
  %v1955 = vpop.f32.mrb[0].mxu0
  %v1956 = vadd.f32 %v1603, %v1955
  %v1957 = vpop.f32.mrb[0].mxu0
  %v1958 = vadd.f32 %v1605, %v1957
  %v1959 = vpop.f32.mrb[0].mxu0
  %v1960 = vadd.f32 %v1607, %v1959
  %1961 = vmatprep.mubr.bf16.mxu0 %v913
  %1962 = vmatmul.mubr.bf16.gmra.mrb[0].mxu0 %v912
  %v1963 = vpop.f32.mrb[0].mxu0
  %v1964 = vadd.f32 %v1611, %v1963
  %v1965 = vpop.f32.mrb[0].mxu0
  %v1966 = vadd.f32 %v1613, %v1965
  %v1967 = vpop.f32.mrb[0].mxu0
  %v1968 = vadd.f32 %v1615, %v1967
  %v1969 = vpop.f32.mrb[0].mxu0
  %v1970 = vadd.f32 %v1617, %v1969
  %1971 = vmatprep.mubr.bf16.mxu0 %v917
  %1972 = vmatmul.mubr.bf16.gmra.mrb[0].mxu0 %v916
  %v1973 = vpop.f32.mrb[0].mxu0
  %v1974 = vadd.f32 %v1621, %v1973
  %v1975 = vpop.f32.mrb[0].mxu0
  %v1976 = vadd.f32 %v1623, %v1975
  %v1977 = vpop.f32.mrb[0].mxu0
  %v1978 = vadd.f32 %v1625, %v1977
  %v1979 = vpop.f32.mrb[0].mxu0
  %v1980 = vadd.f32 %v1627, %v1979
  %1981 = vmatprep.mubr.bf16.mxu0 %v921
  %1982 = vmatmul.mubr.bf16.gmra.mrb[0].mxu0 %v920
  %v1983 = vpop.f32.mrb[0].mxu0
  %v1984 = vadd.f32 %v1631, %v1983
  %v1985 = vpop.f32.mrb[0].mxu0
  %v1986 = vadd.f32 %v1633, %v1985
  %v1987 = vpop.f32.mrb[0].mxu0
  %v1988 = vadd.f32 %v1635, %v1987
  %v1989 = vpop.f32.mrb[0].mxu0
  %v1990 = vadd.f32 %v1637, %v1989
  %1991 = vmatprep.mubr.bf16.mxu0 %v925
  %1992 = vmatmul.mubr.bf16.gmra.mrb[0].mxu0 %v924
  %v1993 = vpop.f32.mrb[0].mxu0
  %v1994 = vadd.f32 %v1641, %v1993
  %v1995 = vpop.f32.mrb[0].mxu0
  %v1996 = vadd.f32 %v1643, %v1995
  %v1997 = vpop.f32.mrb[0].mxu0
  %v1998 = vadd.f32 %v1645, %v1997
  %v1999 = vpop.f32.mrb[0].mxu0
  %v2000 = vadd.f32 %v1647, %v1999
  %2001 = vmatprep.mubr.bf16.mxu0 %v929
  %2002 = vmatmul.mubr.bf16.gmra.mrb[0].mxu0 %v928
  %v2003 = vpop.f32.mrb[0].mxu0
  %v2004 = vadd.f32 %v1651, %v2003
  %v2005 = vpop.f32.mrb[0].mxu0
  %v2006 = vadd.f32 %v1653, %v2005
  %v2007 = vpop.f32.mrb[0].mxu0
  %v2008 = vadd.f32 %v1655, %v2007
  %v2009 = vpop.f32.mrb[0].mxu0
  %v2010 = vadd.f32 %v1657, %v2009
  %2011 = vmatprep.mubr.bf16.mxu0 %v933
  %2012 = vmatmul.mubr.bf16.gmra.mrb[0].mxu0 %v932
  %v2013 = vpop.f32.mrb[0].mxu0
  %v2014 = vadd.f32 %v1661, %v2013
  %v2015 = vpop.f32.mrb[0].mxu0
  %v2016 = vadd.f32 %v1663, %v2015
  %v2017 = vpop.f32.mrb[0].mxu0
  %v2018 = vadd.f32 %v1665, %v2017
  %v2019 = vpop.f32.mrb[0].mxu0
  %v2020 = vadd.f32 %v1667, %v2019
  %2021 = vmatprep.mubr.bf16.mxu0 %v937
  %2022 = vmatmul.mubr.bf16.gmra.mrb[0].mxu0 %v936
  %v2023 = vpop.f32.mrb[0].mxu0
  %v2024 = vadd.f32 %v1671, %v2023
  %v2025 = vpop.f32.mrb[0].mxu0
  %v2026 = vadd.f32 %v1673, %v2025
  %v2027 = vpop.f32.mrb[0].mxu0
  %v2028 = vadd.f32 %v1675, %v2027
  %v2029 = vpop.f32.mrb[0].mxu0
  %v2030 = vadd.f32 %v1677, %v2029
  %2031 = vmatprep.mubr.bf16.mxu0 %v941
  %2032 = vmatmul.mubr.bf16.gmra.mrb[0].mxu0 %v940
  %v2033 = vpop.f32.mrb[0].mxu0
  %v2034 = vadd.f32 %v1681, %v2033
  %v2035 = vpop.f32.mrb[0].mxu0
  %v2036 = vadd.f32 %v1683, %v2035
  %v2037 = vpop.f32.mrb[0].mxu0
  %v2038 = vadd.f32 %v1685, %v2037
  %v2039 = vpop.f32.mrb[0].mxu0
  %v2040 = vadd.f32 %v1687, %v2039
  %2041 = vmatprep.mubr.bf16.mxu0 %v945
  %2042 = vmatmul.mubr.bf16.gmra.mrb[0].mxu0 %v944
  %v2043 = vpop.f32.mrb[0].mxu0
  %v2044 = vadd.f32 %v1691, %v2043
  %v2045 = vpop.f32.mrb[0].mxu0
  %v2046 = vadd.f32 %v1693, %v2045
  %v2047 = vpop.f32.mrb[0].mxu0
  %v2048 = vadd.f32 %v1695, %v2047
  %v2049 = vpop.f32.mrb[0].mxu0
  %v2050 = vadd.f32 %v1697, %v2049
  %2051 = vmatprep.mubr.bf16.mxu0 %v949
  %2052 = vmatmul.mubr.bf16.gmra.mrb[0].mxu0 %v948
  %v2053 = vpop.f32.mrb[0].mxu0
  %v2054 = vadd.f32 %v1701, %v2053
  %v2055 = vpop.f32.mrb[0].mxu0
  %v2056 = vadd.f32 %v1703, %v2055
  %v2057 = vpop.f32.mrb[0].mxu0
  %v2058 = vadd.f32 %v1705, %v2057
  %v2059 = vpop.f32.mrb[0].mxu0
  %v2060 = vadd.f32 %v1707, %v2059
  %2061 = vmatprep.mubr.bf16.mxu0 %v953
  %2062 = vmatmul.mubr.bf16.gmra.mrb[0].mxu0 %v952
  %v2063 = vpop.f32.mrb[0].mxu0
  %v2064 = vadd.f32 %v1711, %v2063
  %v2065 = vpop.f32.mrb[0].mxu0
  %v2066 = vadd.f32 %v1713, %v2065
  %v2067 = vpop.f32.mrb[0].mxu0
  %v2068 = vadd.f32 %v1715, %v2067
  %v2069 = vpop.f32.mrb[0].mxu0
  %v2070 = vadd.f32 %v1717, %v2069
  %2071 = vmatprep.mubr.bf16.mxu0 %v957
  %2072 = vmatmul.mubr.bf16.gmra.mrb[0].mxu0 %v956
  %v2073 = vpop.f32.mrb[0].mxu0
  %v2074 = vadd.f32 %v1721, %v2073
  %v2075 = vpop.f32.mrb[0].mxu0
  %v2076 = vadd.f32 %v1723, %v2075
  %v2077 = vpop.f32.mrb[0].mxu0
  %v2078 = vadd.f32 %v1725, %v2077
  %v2079 = vpop.f32.mrb[0].mxu0
  %v2080 = vadd.f32 %v1727, %v2079
  %2081 = vmatprep.mubr.bf16.mxu0 %v961
  %2082 = vmatmul.mubr.bf16.gmra.mrb[0].mxu0 %v960
  %v2083 = vpop.f32.mrb[0].mxu0
  %v2084 = vadd.f32 %v1731, %v2083
  %v2085 = vpop.f32.mrb[0].mxu0
  %v2086 = vadd.f32 %v1733, %v2085
  %v2087 = vpop.f32.mrb[0].mxu0
  %v2088 = vadd.f32 %v1735, %v2087
  %v2089 = vpop.f32.mrb[0].mxu0
  %v2090 = vadd.f32 %v1737, %v2089
  %2091 = vmatprep.mubr.bf16.mxu0 %v965
  %2092 = vmatmul.mubr.bf16.gmra.mrb[0].mxu0 %v964
  %v2093 = vpop.f32.mrb[0].mxu0
  %v2094 = vadd.f32 %v1741, %v2093
  %v2095 = vpop.f32.mrb[0].mxu0
  %v2096 = vadd.f32 %v1743, %v2095
  %v2097 = vpop.f32.mrb[0].mxu0
  %v2098 = vadd.f32 %v1745, %v2097
  %v2099 = vpop.f32.mrb[0].mxu0
  %v2100 = vadd.f32 %v1747, %v2099
  %2101 = vmatprep.mubr.bf16.mxu0 %v969
  %2102 = vmatmul.mubr.bf16.gmra.mrb[0].mxu0 %v968
  %v2103 = vpop.f32.mrb[0].mxu0
  %v2104 = vadd.f32 %v1751, %v2103
  %v2105 = vpop.f32.mrb[0].mxu0
  %v2106 = vadd.f32 %v1753, %v2105
  %v2107 = vpop.f32.mrb[0].mxu0
  %v2108 = vadd.f32 %v1755, %v2107
  %v2109 = vpop.f32.mrb[0].mxu0
  %v2110 = vadd.f32 %v1757, %v2109
  %2111 = vmatprep.mubr.bf16.mxu0 %v973
  %2112 = vmatmul.mubr.bf16.gmra.mrb[0].mxu0 %v972
  %v2113 = vpop.f32.mrb[0].mxu0
  %v2114 = vadd.f32 %v1761, %v2113
  %v2115 = vpop.f32.mrb[0].mxu0
  %v2116 = vadd.f32 %v1763, %v2115
  %v2117 = vpop.f32.mrb[0].mxu0
  %v2118 = vadd.f32 %v1765, %v2117
  %v2119 = vpop.f32.mrb[0].mxu0
  %v2120 = vadd.f32 %v1767, %v2119
  %2121 = vmatprep.mubr.bf16.mxu0 %v977
  %2122 = vmatmul.mubr.bf16.gmra.mrb[0].mxu0 %v976
  %v2123 = vpop.f32.mrb[0].mxu0
  %v2124 = vadd.f32 %v1771, %v2123
  %v2125 = vpop.f32.mrb[0].mxu0
  %v2126 = vadd.f32 %v1773, %v2125
  %v2127 = vpop.f32.mrb[0].mxu0
  %v2128 = vadd.f32 %v1775, %v2127
  %v2129 = vpop.f32.mrb[0].mxu0
  %v2130 = vadd.f32 %v1777, %v2129
  %2131 = vdwg.mxu0
  %v2132 = vadd.f32 %v146, %v1814
  %v2133 = vadd.f32 %v147, %v1816
  %v2134 = vadd.f32 %v148, %v1818
  %v2135 = vadd.f32 %v149, %v1820
  %v2136 = vadd.f32 %v150, %v1824
  %v2137 = vadd.f32 %v151, %v1826
  %v2138 = vadd.f32 %v152, %v1828
  %v2139 = vadd.f32 %v153, %v1830
  %v2140 = vadd.f32 %v154, %v1834
  %v2141 = vadd.f32 %v155, %v1836
  %v2142 = vadd.f32 %v156, %v1838
  %v2143 = vadd.f32 %v157, %v1840
  %v2144 = vadd.f32 %v158, %v1844
  %v2145 = vadd.f32 %v159, %v1846
  %v2146 = vadd.f32 %v160, %v1848
  %v2147 = vadd.f32 %v161, %v1850
  %v2148 = vadd.f32 %v162, %v1854
  %v2149 = vadd.f32 %v163, %v1856
  %v2150 = vadd.f32 %v164, %v1858
  %v2151 = vadd.f32 %v165, %v1860
  %v2152 = vadd.f32 %v166, %v1864
  %v2153 = vadd.f32 %v167, %v1866
  %v2154 = vadd.f32 %v168, %v1868
  %v2155 = vadd.f32 %v169, %v1870
  %v2156 = vadd.f32 %v170, %v1874
  %v2157 = vadd.f32 %v171, %v1876
  %v2158 = vadd.f32 %v172, %v1878
  %v2159 = vadd.f32 %v173, %v1880
  %v2160 = vadd.f32 %v174, %v1884
  %v2161 = vadd.f32 %v175, %v1886
  %v2162 = vadd.f32 %v176, %v1888
  %v2163 = vadd.f32 %v177, %v1890
  %v2164 = vadd.f32 %v178, %v1894
  %v2165 = vadd.f32 %v179, %v1896
  %v2166 = vadd.f32 %v180, %v1898
  %v2167 = vadd.f32 %v181, %v1900
  %v2168 = vadd.f32 %v182, %v1904
  %v2169 = vadd.f32 %v183, %v1906
  %v2170 = vadd.f32 %v184, %v1908
  %v2171 = vadd.f32 %v185, %v1910
  %v2172 = vadd.f32 %v186, %v1914
  %v2173 = vadd.f32 %v187, %v1916
  %v2174 = vadd.f32 %v188, %v1918
  %v2175 = vadd.f32 %v189, %v1920
  %v2176 = vadd.f32 %v190, %v1924
  %v2177 = vadd.f32 %v191, %v1926
  %v2178 = vadd.f32 %v192, %v1928
  %v2179 = vadd.f32 %v193, %v1930
  %v2180 = vadd.f32 %v194, %v1934
  %v2181 = vadd.f32 %v195, %v1936
  %v2182 = vadd.f32 %v196, %v1938
  %v2183 = vadd.f32 %v197, %v1940
  %v2184 = vadd.f32 %v198, %v1944
  %v2185 = vadd.f32 %v199, %v1946
  %v2186 = vadd.f32 %v200, %v1948
  %v2187 = vadd.f32 %v201, %v1950
  %v2188 = vadd.f32 %v202, %v1954
  %v2189 = vadd.f32 %v203, %v1956
  %v2190 = vadd.f32 %v204, %v1958
  %v2191 = vadd.f32 %v205, %v1960
  %v2192 = vadd.f32 %v206, %v1964
  %v2193 = vadd.f32 %v207, %v1966
  %v2194 = vadd.f32 %v208, %v1968
  %v2195 = vadd.f32 %v209, %v1970
  %v2196 = vadd.f32 %v210, %v1974
  %v2197 = vadd.f32 %v211, %v1976
  %v2198 = vadd.f32 %v212, %v1978
  %v2199 = vadd.f32 %v213, %v1980
  %v2200 = vadd.f32 %v214, %v1984
  %v2201 = vadd.f32 %v215, %v1986
  %v2202 = vadd.f32 %v216, %v1988
  %v2203 = vadd.f32 %v217, %v1990
  %v2204 = vadd.f32 %v218, %v1994
  %v2205 = vadd.f32 %v219, %v1996
  %v2206 = vadd.f32 %v220, %v1998
  %v2207 = vadd.f32 %v221, %v2000
  %v2208 = vadd.f32 %v222, %v2004
  %v2209 = vadd.f32 %v223, %v2006
  %v2210 = vadd.f32 %v224, %v2008
  %v2211 = vadd.f32 %v225, %v2010
  %v2212 = vadd.f32 %v226, %v2014
  %v2213 = vadd.f32 %v227, %v2016
  %v2214 = vadd.f32 %v228, %v2018
  %v2215 = vadd.f32 %v229, %v2020
  %v2216 = vadd.f32 %v230, %v2024
  %v2217 = vadd.f32 %v231, %v2026
  %v2218 = vadd.f32 %v232, %v2028
  %v2219 = vadd.f32 %v233, %v2030
  %v2220 = vadd.f32 %v234, %v2034
  %v2221 = vadd.f32 %v235, %v2036
  %v2222 = vadd.f32 %v236, %v2038
  %v2223 = vadd.f32 %v237, %v2040
  %v2224 = vadd.f32 %v238, %v2044
  %v2225 = vadd.f32 %v239, %v2046
  %v2226 = vadd.f32 %v240, %v2048
  %v2227 = vadd.f32 %v241, %v2050
  %v2228 = vadd.f32 %v242, %v2054
  %v2229 = vadd.f32 %v243, %v2056
  %v2230 = vadd.f32 %v244, %v2058
  %v2231 = vadd.f32 %v245, %v2060
  %v2232 = vadd.f32 %v246, %v2064
  %v2233 = vadd.f32 %v247, %v2066
  %v2234 = vadd.f32 %v248, %v2068
  %v2235 = vadd.f32 %v249, %v2070
  %v2236 = vadd.f32 %v250, %v2074
  %v2237 = vadd.f32 %v251, %v2076
  %v2238 = vadd.f32 %v252, %v2078
  %v2239 = vadd.f32 %v253, %v2080
  %v2240 = vadd.f32 %v254, %v2084
  %v2241 = vadd.f32 %v255, %v2086
  %v2242 = vadd.f32 %v256, %v2088
  %v2243 = vadd.f32 %v257, %v2090
  %v2244 = vadd.f32 %v258, %v2094
  %v2245 = vadd.f32 %v259, %v2096
  %v2246 = vadd.f32 %v260, %v2098
  %v2247 = vadd.f32 %v261, %v2100
  %v2248 = vadd.f32 %v262, %v2104
  %v2249 = vadd.f32 %v263, %v2106
  %v2250 = vadd.f32 %v264, %v2108
  %v2251 = vadd.f32 %v265, %v2110
  %v2252 = vadd.f32 %v266, %v2114
  %v2253 = vadd.f32 %v267, %v2116
  %v2254 = vadd.f32 %v268, %v2118
  %v2255 = vadd.f32 %v269, %v2120
  %v2256 = vadd.f32 %v270, %v2124
  %v2257 = vadd.f32 %v271, %v2126
  %v2258 = vadd.f32 %v272, %v2128
  %v2259 = vadd.f32 %v273, %v2130
  %2260 = vst [vmem:[#allocation2] sm:$0xff] %v2132
  %2261 = vst [vmem:[#allocation2 + $0x8] sm:$0xff] %v2133
  %2262 = vst [vmem:[#allocation2 + $0x10] sm:$0xff] %v2134
  %2263 = vst [vmem:[#allocation2 + $0x18] sm:$0xff] %v2135
  %2264 = vst [vmem:[#allocation2 + $0x20] sm:$0xff] %v2136
  %2265 = vst [vmem:[#allocation2 + $0x28] sm:$0xff] %v2137
  %2266 = vst [vmem:[#allocation2 + $0x30] sm:$0xff] %v2138
  %2267 = vst [vmem:[#allocation2 + $0x38] sm:$0xff] %v2139
  %2268 = vst [vmem:[#allocation2 + $0x40] sm:$0xff] %v2140
  %2269 = vst [vmem:[#allocation2 + $0x48] sm:$0xff] %v2141
  %2270 = vst [vmem:[#allocation2 + $0x50] sm:$0xff] %v2142
  %2271 = vst [vmem:[#allocation2 + $0x58] sm:$0xff] %v2143
  %2272 = vst [vmem:[#allocation2 + $0x60] sm:$0xff] %v2144
  %2273 = vst [vmem:[#allocation2 + $0x68] sm:$0xff] %v2145
  %2274 = vst [vmem:[#allocation2 + $0x70] sm:$0xff] %v2146
  %2275 = vst [vmem:[#allocation2 + $0x78] sm:$0xff] %v2147
  %2276 = vst [vmem:[#allocation2 + $0x80] sm:$0xff] %v2148
  %2277 = vst [vmem:[#allocation2 + $0x88] sm:$0xff] %v2149
  %2278 = vst [vmem:[#allocation2 + $0x90] sm:$0xff] %v2150
  %2279 = vst [vmem:[#allocation2 + $0x98] sm:$0xff] %v2151
  %2280 = vst [vmem:[#allocation2 + $0xa0] sm:$0xff] %v2152
  %2281 = vst [vmem:[#allocation2 + $0xa8] sm:$0xff] %v2153
  %2282 = vst [vmem:[#allocation2 + $0xb0] sm:$0xff] %v2154
  %2283 = vst [vmem:[#allocation2 + $0xb8] sm:$0xff] %v2155
  %2284 = vst [vmem:[#allocation2 + $0xc0] sm:$0xff] %v2156
  %2285 = vst [vmem:[#allocation2 + $0xc8] sm:$0xff] %v2157
  %2286 = vst [vmem:[#allocation2 + $0xd0] sm:$0xff] %v2158
  %2287 = vst [vmem:[#allocation2 + $0xd8] sm:$0xff] %v2159
  %2288 = vst [vmem:[#allocation2 + $0xe0] sm:$0xff] %v2160
  %2289 = vst [vmem:[#allocation2 + $0xe8] sm:$0xff] %v2161
  %2290 = vst [vmem:[#allocation2 + $0xf0] sm:$0xff] %v2162
  %2291 = vst [vmem:[#allocation2 + $0xf8] sm:$0xff] %v2163
  %2292 = vst [vmem:[#allocation2 + $0x100] sm:$0xff] %v2164
  %2293 = vst [vmem:[#allocation2 + $0x108] sm:$0xff] %v2165
  %2294 = vst [vmem:[#allocation2 + $0x110] sm:$0xff] %v2166
  %2295 = vst [vmem:[#allocation2 + $0x118] sm:$0xff] %v2167
  %2296 = vst [vmem:[#allocation2 + $0x120] sm:$0xff] %v2168
  %2297 = vst [vmem:[#allocation2 + $0x128] sm:$0xff] %v2169
  %2298 = vst [vmem:[#allocation2 + $0x130] sm:$0xff] %v2170
  %2299 = vst [vmem:[#allocation2 + $0x138] sm:$0xff] %v2171
  %2300 = vst [vmem:[#allocation2 + $0x140] sm:$0xff] %v2172
  %2301 = vst [vmem:[#allocation2 + $0x148] sm:$0xff] %v2173
  %2302 = vst [vmem:[#allocation2 + $0x150] sm:$0xff] %v2174
  %2303 = vst [vmem:[#allocation2 + $0x158] sm:$0xff] %v2175
  %2304 = vst [vmem:[#allocation2 + $0x160] sm:$0xff] %v2176
  %2305 = vst [vmem:[#allocation2 + $0x168] sm:$0xff] %v2177
  %2306 = vst [vmem:[#allocation2 + $0x170] sm:$0xff] %v2178
  %2307 = vst [vmem:[#allocation2 + $0x178] sm:$0xff] %v2179
  %2308 = vst [vmem:[#allocation2 + $0x180] sm:$0xff] %v2180
  %2309 = vst [vmem:[#allocation2 + $0x188] sm:$0xff] %v2181
  %2310 = vst [vmem:[#allocation2 + $0x190] sm:$0xff] %v2182
  %2311 = vst [vmem:[#allocation2 + $0x198] sm:$0xff] %v2183
  %2312 = vst [vmem:[#allocation2 + $0x1a0] sm:$0xff] %v2184
  %2313 = vst [vmem:[#allocation2 + $0x1a8] sm:$0xff] %v2185
  %2314 = vst [vmem:[#allocation2 + $0x1b0] sm:$0xff] %v2186
  %2315 = vst [vmem:[#allocation2 + $0x1b8] sm:$0xff] %v2187
  %2316 = vst [vmem:[#allocation2 + $0x1c0] sm:$0xff] %v2188
  %2317 = vst [vmem:[#allocation2 + $0x1c8] sm:$0xff] %v2189
  %2318 = vst [vmem:[#allocation2 + $0x1d0] sm:$0xff] %v2190
  %2319 = vst [vmem:[#allocation2 + $0x1d8] sm:$0xff] %v2191
  %2320 = vst [vmem:[#allocation2 + $0x1e0] sm:$0xff] %v2192
  %2321 = vst [vmem:[#allocation2 + $0x1e8] sm:$0xff] %v2193
  %2322 = vst [vmem:[#allocation2 + $0x1f0] sm:$0xff] %v2194
  %2323 = vst [vmem:[#allocation2 + $0x1f8] sm:$0xff] %v2195
  %2324 = vst [vmem:[#allocation2 + $0x200] sm:$0xff] %v2196
  %2325 = vst [vmem:[#allocation2 + $0x208] sm:$0xff] %v2197
  %2326 = vst [vmem:[#allocation2 + $0x210] sm:$0xff] %v2198
  %2327 = vst [vmem:[#allocation2 + $0x218] sm:$0xff] %v2199
  %2328 = vst [vmem:[#allocation2 + $0x220] sm:$0xff] %v2200
  %2329 = vst [vmem:[#allocation2 + $0x228] sm:$0xff] %v2201
  %2330 = vst [vmem:[#allocation2 + $0x230] sm:$0xff] %v2202
  %2331 = vst [vmem:[#allocation2 + $0x238] sm:$0xff] %v2203
  %2332 = vst [vmem:[#allocation2 + $0x240] sm:$0xff] %v2204
  %2333 = vst [vmem:[#allocation2 + $0x248] sm:$0xff] %v2205
  %2334 = vst [vmem:[#allocation2 + $0x250] sm:$0xff] %v2206
  %2335 = vst [vmem:[#allocation2 + $0x258] sm:$0xff] %v2207
  %2336 = vst [vmem:[#allocation2 + $0x260] sm:$0xff] %v2208
  %2337 = vst [vmem:[#allocation2 + $0x268] sm:$0xff] %v2209
  %2338 = vst [vmem:[#allocation2 + $0x270] sm:$0xff] %v2210
  %2339 = vst [vmem:[#allocation2 + $0x278] sm:$0xff] %v2211
  %2340 = vst [vmem:[#allocation2 + $0x280] sm:$0xff] %v2212
  %2341 = vst [vmem:[#allocation2 + $0x288] sm:$0xff] %v2213
  %2342 = vst [vmem:[#allocation2 + $0x290] sm:$0xff] %v2214
  %2343 = vst [vmem:[#allocation2 + $0x298] sm:$0xff] %v2215
  %2344 = vst [vmem:[#allocation2 + $0x2a0] sm:$0xff] %v2216
  %2345 = vst [vmem:[#allocation2 + $0x2a8] sm:$0xff] %v2217
  %2346 = vst [vmem:[#allocation2 + $0x2b0] sm:$0xff] %v2218
  %2347 = vst [vmem:[#allocation2 + $0x2b8] sm:$0xff] %v2219
  %2348 = vst [vmem:[#allocation2 + $0x2c0] sm:$0xff] %v2220
  %2349 = vst [vmem:[#allocation2 + $0x2c8] sm:$0xff] %v2221
  %2350 = vst [vmem:[#allocation2 + $0x2d0] sm:$0xff] %v2222
  %2351 = vst [vmem:[#allocation2 + $0x2d8] sm:$0xff] %v2223
  %2352 = vst [vmem:[#allocation2 + $0x2e0] sm:$0xff] %v2224
  %2353 = vst [vmem:[#allocation2 + $0x2e8] sm:$0xff] %v2225
  %2354 = vst [vmem:[#allocation2 + $0x2f0] sm:$0xff] %v2226
  %2355 = vst [vmem:[#allocation2 + $0x2f8] sm:$0xff] %v2227
  %2356 = vst [vmem:[#allocation2 + $0x300] sm:$0xff] %v2228
  %2357 = vst [vmem:[#allocation2 + $0x308] sm:$0xff] %v2229
  %2358 = vst [vmem:[#allocation2 + $0x310] sm:$0xff] %v2230
  %2359 = vst [vmem:[#allocation2 + $0x318] sm:$0xff] %v2231
  %2360 = vst [vmem:[#allocation2 + $0x320] sm:$0xff] %v2232
  %2361 = vst [vmem:[#allocation2 + $0x328] sm:$0xff] %v2233
  %2362 = vst [vmem:[#allocation2 + $0x330] sm:$0xff] %v2234
  %2363 = vst [vmem:[#allocation2 + $0x338] sm:$0xff] %v2235
  %2364 = vst [vmem:[#allocation2 + $0x340] sm:$0xff] %v2236
  %2365 = vst [vmem:[#allocation2 + $0x348] sm:$0xff] %v2237
  %2366 = vst [vmem:[#allocation2 + $0x350] sm:$0xff] %v2238
  %2367 = vst [vmem:[#allocation2 + $0x358] sm:$0xff] %v2239
  %2368 = vst [vmem:[#allocation2 + $0x360] sm:$0xff] %v2240
  %2369 = vst [vmem:[#allocation2 + $0x368] sm:$0xff] %v2241
  %2370 = vst [vmem:[#allocation2 + $0x370] sm:$0xff] %v2242
  %2371 = vst [vmem:[#allocation2 + $0x378] sm:$0xff] %v2243
  %2372 = vst [vmem:[#allocation2 + $0x380] sm:$0xff] %v2244
  %2373 = vst [vmem:[#allocation2 + $0x388] sm:$0xff] %v2245
  %2374 = vst [vmem:[#allocation2 + $0x390] sm:$0xff] %v2246
  %2375 = vst [vmem:[#allocation2 + $0x398] sm:$0xff] %v2247
  %2376 = vst [vmem:[#allocation2 + $0x3a0] sm:$0xff] %v2248
  %2377 = vst [vmem:[#allocation2 + $0x3a8] sm:$0xff] %v2249
  %2378 = vst [vmem:[#allocation2 + $0x3b0] sm:$0xff] %v2250
  %2379 = vst [vmem:[#allocation2 + $0x3b8] sm:$0xff] %v2251
  %2380 = vst [vmem:[#allocation2 + $0x3c0] sm:$0xff] %v2252
  %2381 = vst [vmem:[#allocation2 + $0x3c8] sm:$0xff] %v2253
  %2382 = vst [vmem:[#allocation2 + $0x3d0] sm:$0xff] %v2254
  %2383 = vst [vmem:[#allocation2 + $0x3d8] sm:$0xff] %v2255
  %2384 = vst [vmem:[#allocation2 + $0x3e0] sm:$0xff] %v2256
  %2385 = vst [vmem:[#allocation2 + $0x3e8] sm:$0xff] %v2257
  %2386 = vst [vmem:[#allocation2 + $0x3f0] sm:$0xff] %v2258
  %2387 = vst [vmem:[#allocation2 + $0x3f8] sm:$0xff] %v2259
  // Predicated region
  $region18: #{dgi_ind_forward.3} parent=0 // pred_check
    %p2388 = pneg %p14
  $region19: #{dgi_ind_forward.3} parent=0 // pred_check_branch
    %2390 = sbr.rel (%p2388) target = $region21
  $region20: #{dgi_ind_forward.3} parent=0 // pred_region
    %v2391 = vld [vmem:[#allocation2] sm:$0xff]
    %v2392 = vld [vmem:[#allocation2 + $0x8] sm:$0xff]
    %v2393 = vld [vmem:[#allocation2 + $0x10] sm:$0xff]
    %v2394 = vld [vmem:[#allocation2 + $0x18] sm:$0xff]
    %v2395 = vld [vmem:[#allocation2 + $0x20] sm:$0xff]
    %v2396 = vld [vmem:[#allocation2 + $0x28] sm:$0xff]
    %v2397 = vld [vmem:[#allocation2 + $0x30] sm:$0xff]
    %v2398 = vld [vmem:[#allocation2 + $0x38] sm:$0xff]
    %v2399 = vld [vmem:[#allocation2 + $0x40] sm:$0xff]
    %v2400 = vld [vmem:[#allocation2 + $0x48] sm:$0xff]
    %v2401 = vld [vmem:[#allocation2 + $0x50] sm:$0xff]
    %v2402 = vld [vmem:[#allocation2 + $0x58] sm:$0xff]
    %v2403 = vld [vmem:[#allocation2 + $0x60] sm:$0xff]
    %v2404 = vld [vmem:[#allocation2 + $0x68] sm:$0xff]
    %v2405 = vld [vmem:[#allocation2 + $0x70] sm:$0xff]
    %v2406 = vld [vmem:[#allocation2 + $0x78] sm:$0xff]
    %v2407 = vld [vmem:[#allocation2 + $0x80] sm:$0xff]
    %v2408 = vld [vmem:[#allocation2 + $0x88] sm:$0xff]
    %v2409 = vld [vmem:[#allocation2 + $0x90] sm:$0xff]
    %v2410 = vld [vmem:[#allocation2 + $0x98] sm:$0xff]
    %v2411 = vld [vmem:[#allocation2 + $0xa0] sm:$0xff]
    %v2412 = vld [vmem:[#allocation2 + $0xa8] sm:$0xff]
    %v2413 = vld [vmem:[#allocation2 + $0xb0] sm:$0xff]
    %v2414 = vld [vmem:[#allocation2 + $0xb8] sm:$0xff]
    %v2415 = vld [vmem:[#allocation2 + $0xc0] sm:$0xff]
    %v2416 = vld [vmem:[#allocation2 + $0xc8] sm:$0xff]
    %v2417 = vld [vmem:[#allocation2 + $0xd0] sm:$0xff]
    %v2418 = vld [vmem:[#allocation2 + $0xd8] sm:$0xff]
    %v2419 = vld [vmem:[#allocation2 + $0xe0] sm:$0xff]
    %v2420 = vld [vmem:[#allocation2 + $0xe8] sm:$0xff]
    %v2421 = vld [vmem:[#allocation2 + $0xf0] sm:$0xff]
    %v2422 = vld [vmem:[#allocation2 + $0xf8] sm:$0xff]
    %v2423 = vld [vmem:[#allocation2 + $0x100] sm:$0xff]
    %v2424 = vld [vmem:[#allocation2 + $0x108] sm:$0xff]
    %v2425 = vld [vmem:[#allocation2 + $0x110] sm:$0xff]
    %v2426 = vld [vmem:[#allocation2 + $0x118] sm:$0xff]
    %v2427 = vld [vmem:[#allocation2 + $0x120] sm:$0xff]
    %v2428 = vld [vmem:[#allocation2 + $0x128] sm:$0xff]
    %v2429 = vld [vmem:[#allocation2 + $0x130] sm:$0xff]
    %v2430 = vld [vmem:[#allocation2 + $0x138] sm:$0xff]
    %v2431 = vld [vmem:[#allocation2 + $0x140] sm:$0xff]
    %v2432 = vld [vmem:[#allocation2 + $0x148] sm:$0xff]
    %v2433 = vld [vmem:[#allocation2 + $0x150] sm:$0xff]
    %v2434 = vld [vmem:[#allocation2 + $0x158] sm:$0xff]
    %v2435 = vld [vmem:[#allocation2 + $0x160] sm:$0xff]
    %v2436 = vld [vmem:[#allocation2 + $0x168] sm:$0xff]
    %v2437 = vld [vmem:[#allocation2 + $0x170] sm:$0xff]
    %v2438 = vld [vmem:[#allocation2 + $0x178] sm:$0xff]
    %v2439 = vld [vmem:[#allocation2 + $0x180] sm:$0xff]
    %v2440 = vld [vmem:[#allocation2 + $0x188] sm:$0xff]
    %v2441 = vld [vmem:[#allocation2 + $0x190] sm:$0xff]
    %v2442 = vld [vmem:[#allocation2 + $0x198] sm:$0xff]
    %v2443 = vld [vmem:[#allocation2 + $0x1a0] sm:$0xff]
    %v2444 = vld [vmem:[#allocation2 + $0x1a8] sm:$0xff]
    %v2445 = vld [vmem:[#allocation2 + $0x1b0] sm:$0xff]
    %v2446 = vld [vmem:[#allocation2 + $0x1b8] sm:$0xff]
    %v2447 = vld [vmem:[#allocation2 + $0x1c0] sm:$0xff]
    %v2448 = vld [vmem:[#allocation2 + $0x1c8] sm:$0xff]
    %v2449 = vld [vmem:[#allocation2 + $0x1d0] sm:$0xff]
    %v2450 = vld [vmem:[#allocation2 + $0x1d8] sm:$0xff]
    %v2451 = vld [vmem:[#allocation2 + $0x1e0] sm:$0xff]
    %v2452 = vld [vmem:[#allocation2 + $0x1e8] sm:$0xff]
    %v2453 = vld [vmem:[#allocation2 + $0x1f0] sm:$0xff]
    %v2454 = vld [vmem:[#allocation2 + $0x1f8] sm:$0xff]
    %v2455 = vld [vmem:[#allocation2 + $0x200] sm:$0xff]
    %v2456 = vld [vmem:[#allocation2 + $0x208] sm:$0xff]
    %v2457 = vld [vmem:[#allocation2 + $0x210] sm:$0xff]
    %v2458 = vld [vmem:[#allocation2 + $0x218] sm:$0xff]
    %v2459 = vld [vmem:[#allocation2 + $0x220] sm:$0xff]
    %v2460 = vld [vmem:[#allocation2 + $0x228] sm:$0xff]
    %v2461 = vld [vmem:[#allocation2 + $0x230] sm:$0xff]
    %v2462 = vld [vmem:[#allocation2 + $0x238] sm:$0xff]
    %v2463 = vld [vmem:[#allocation2 + $0x240] sm:$0xff]
    %v2464 = vld [vmem:[#allocation2 + $0x248] sm:$0xff]
    %v2465 = vld [vmem:[#allocation2 + $0x250] sm:$0xff]
    %v2466 = vld [vmem:[#allocation2 + $0x258] sm:$0xff]
    %v2467 = vld [vmem:[#allocation2 + $0x260] sm:$0xff]
    %v2468 = vld [vmem:[#allocation2 + $0x268] sm:$0xff]
    %v2469 = vld [vmem:[#allocation2 + $0x270] sm:$0xff]
    %v2470 = vld [vmem:[#allocation2 + $0x278] sm:$0xff]
    %v2471 = vld [vmem:[#allocation2 + $0x280] sm:$0xff]
    %v2472 = vld [vmem:[#allocation2 + $0x288] sm:$0xff]
    %v2473 = vld [vmem:[#allocation2 + $0x290] sm:$0xff]
    %v2474 = vld [vmem:[#allocation2 + $0x298] sm:$0xff]
    %v2475 = vld [vmem:[#allocation2 + $0x2a0] sm:$0xff]
    %v2476 = vld [vmem:[#allocation2 + $0x2a8] sm:$0xff]
    %v2477 = vld [vmem:[#allocation2 + $0x2b0] sm:$0xff]
    %v2478 = vld [vmem:[#allocation2 + $0x2b8] sm:$0xff]
    %v2479 = vld [vmem:[#allocation2 + $0x2c0] sm:$0xff]
    %v2480 = vld [vmem:[#allocation2 + $0x2c8] sm:$0xff]
    %v2481 = vld [vmem:[#allocation2 + $0x2d0] sm:$0xff]
    %v2482 = vld [vmem:[#allocation2 + $0x2d8] sm:$0xff]
    %v2483 = vld [vmem:[#allocation2 + $0x2e0] sm:$0xff]
    %v2484 = vld [vmem:[#allocation2 + $0x2e8] sm:$0xff]
    %v2485 = vld [vmem:[#allocation2 + $0x2f0] sm:$0xff]
    %v2486 = vld [vmem:[#allocation2 + $0x2f8] sm:$0xff]
    %v2487 = vld [vmem:[#allocation2 + $0x300] sm:$0xff]
    %v2488 = vld [vmem:[#allocation2 + $0x308] sm:$0xff]
    %v2489 = vld [vmem:[#allocation2 + $0x310] sm:$0xff]
    %v2490 = vld [vmem:[#allocation2 + $0x318] sm:$0xff]
    %v2491 = vld [vmem:[#allocation2 + $0x320] sm:$0xff]
    %v2492 = vld [vmem:[#allocation2 + $0x328] sm:$0xff]
    %v2493 = vld [vmem:[#allocation2 + $0x330] sm:$0xff]
    %v2494 = vld [vmem:[#allocation2 + $0x338] sm:$0xff]
    %v2495 = vld [vmem:[#allocation2 + $0x340] sm:$0xff]
    %v2496 = vld [vmem:[#allocation2 + $0x348] sm:$0xff]
    %v2497 = vld [vmem:[#allocation2 + $0x350] sm:$0xff]
    %v2498 = vld [vmem:[#allocation2 + $0x358] sm:$0xff]
    %v2499 = vld [vmem:[#allocation2 + $0x360] sm:$0xff]
    %v2500 = vld [vmem:[#allocation2 + $0x368] sm:$0xff]
    %v2501 = vld [vmem:[#allocation2 + $0x370] sm:$0xff]
    %v2502 = vld [vmem:[#allocation2 + $0x378] sm:$0xff]
    %v2503 = vld [vmem:[#allocation2 + $0x380] sm:$0xff]
    %v2504 = vld [vmem:[#allocation2 + $0x388] sm:$0xff]
    %v2505 = vld [vmem:[#allocation2 + $0x390] sm:$0xff]
    %v2506 = vld [vmem:[#allocation2 + $0x398] sm:$0xff]
    %v2507 = vld [vmem:[#allocation2 + $0x3a0] sm:$0xff]
    %v2508 = vld [vmem:[#allocation2 + $0x3a8] sm:$0xff]
    %v2509 = vld [vmem:[#allocation2 + $0x3b0] sm:$0xff]
    %v2510 = vld [vmem:[#allocation2 + $0x3b8] sm:$0xff]
    %v2511 = vld [vmem:[#allocation2 + $0x3c0] sm:$0xff]
    %v2512 = vld [vmem:[#allocation2 + $0x3c8] sm:$0xff]
    %v2513 = vld [vmem:[#allocation2 + $0x3d0] sm:$0xff]
    %v2514 = vld [vmem:[#allocation2 + $0x3d8] sm:$0xff]
    %v2515 = vld [vmem:[#allocation2 + $0x3e0] sm:$0xff]
    %v2516 = vld [vmem:[#allocation2 + $0x3e8] sm:$0xff]
    %v2517 = vld [vmem:[#allocation2 + $0x3f0] sm:$0xff]
    %v2518 = vld [vmem:[#allocation2 + $0x3f8] sm:$0xff]
    %v2519 = vpack.c.bf16 %v2393, %v2391
    %v2520 = vpack.c.bf16 %v2394, %v2392
    %v2521 = vpack.c.bf16 %v2397, %v2395
    %v2522 = vpack.c.bf16 %v2398, %v2396
    %v2523 = vpack.c.bf16 %v2401, %v2399
    %v2524 = vpack.c.bf16 %v2402, %v2400
    %v2525 = vpack.c.bf16 %v2405, %v2403
    %v2526 = vpack.c.bf16 %v2406, %v2404
    %v2527 = vpack.c.bf16 %v2409, %v2407
    %v2528 = vpack.c.bf16 %v2410, %v2408
    %v2529 = vpack.c.bf16 %v2413, %v2411
    %v2530 = vpack.c.bf16 %v2414, %v2412
    %v2531 = vpack.c.bf16 %v2417, %v2415
    %v2532 = vpack.c.bf16 %v2418, %v2416
    %v2533 = vpack.c.bf16 %v2421, %v2419
    %v2534 = vpack.c.bf16 %v2422, %v2420
    %v2535 = vpack.c.bf16 %v2425, %v2423
    %v2536 = vpack.c.bf16 %v2426, %v2424
    %v2537 = vpack.c.bf16 %v2429, %v2427
    %v2538 = vpack.c.bf16 %v2430, %v2428
    %v2539 = vpack.c.bf16 %v2433, %v2431
    %v2540 = vpack.c.bf16 %v2434, %v2432
    %v2541 = vpack.c.bf16 %v2437, %v2435
    %v2542 = vpack.c.bf16 %v2438, %v2436
    %v2543 = vpack.c.bf16 %v2441, %v2439
    %v2544 = vpack.c.bf16 %v2442, %v2440
    %v2545 = vpack.c.bf16 %v2445, %v2443
    %v2546 = vpack.c.bf16 %v2446, %v2444
    %v2547 = vpack.c.bf16 %v2449, %v2447
    %v2548 = vpack.c.bf16 %v2450, %v2448
    %v2549 = vpack.c.bf16 %v2453, %v2451
    %v2550 = vpack.c.bf16 %v2454, %v2452
    %v2551 = vpack.c.bf16 %v2457, %v2455
    %v2552 = vpack.c.bf16 %v2458, %v2456
    %v2553 = vpack.c.bf16 %v2461, %v2459
    %v2554 = vpack.c.bf16 %v2462, %v2460
    %v2555 = vpack.c.bf16 %v2465, %v2463
    %v2556 = vpack.c.bf16 %v2466, %v2464
    %v2557 = vpack.c.bf16 %v2469, %v2467
    %v2558 = vpack.c.bf16 %v2470, %v2468
    %v2559 = vpack.c.bf16 %v2473, %v2471
    %v2560 = vpack.c.bf16 %v2474, %v2472
    %v2561 = vpack.c.bf16 %v2477, %v2475
    %v2562 = vpack.c.bf16 %v2478, %v2476
    %v2563 = vpack.c.bf16 %v2481, %v2479
    %v2564 = vpack.c.bf16 %v2482, %v2480
    %v2565 = vpack.c.bf16 %v2485, %v2483
    %v2566 = vpack.c.bf16 %v2486, %v2484
    %v2567 = vpack.c.bf16 %v2489, %v2487
    %v2568 = vpack.c.bf16 %v2490, %v2488
    %v2569 = vpack.c.bf16 %v2493, %v2491
    %v2570 = vpack.c.bf16 %v2494, %v2492
    %v2571 = vpack.c.bf16 %v2497, %v2495
    %v2572 = vpack.c.bf16 %v2498, %v2496
    %v2573 = vpack.c.bf16 %v2501, %v2499
    %v2574 = vpack.c.bf16 %v2502, %v2500
    %v2575 = vpack.c.bf16 %v2505, %v2503
    %v2576 = vpack.c.bf16 %v2506, %v2504
    %v2577 = vpack.c.bf16 %v2509, %v2507
    %v2578 = vpack.c.bf16 %v2510, %v2508
    %v2579 = vpack.c.bf16 %v2513, %v2511
    %v2580 = vpack.c.bf16 %v2514, %v2512
    %v2581 = vpack.c.bf16 %v2517, %v2515
    %v2582 = vpack.c.bf16 %v2518, %v2516
    %v2583 = vld [vmem:[%s2] sm:$0xff]
    %v2584 = vld [vmem:[%s2 + $0x8] sm:$0xff]
    %v2585 = vld [vmem:[%s2 + $0x10] sm:$0xff]
    %v2586 = vld [vmem:[%s2 + $0x18] sm:$0xff]
    %v2587 = vld [vmem:[%s2 + $0x20] sm:$0xff]
    %v2588 = vld [vmem:[%s2 + $0x28] sm:$0xff]
    %v2589 = vld [vmem:[%s2 + $0x30] sm:$0xff]
    %v2590 = vld [vmem:[%s2 + $0x38] sm:$0xff]
    %v2591 = vld [vmem:[%s2 + $0x40] sm:$0xff]
    %v2592 = vld [vmem:[%s2 + $0x48] sm:$0xff]
    %v2593 = vld [vmem:[%s2 + $0x50] sm:$0xff]
    %v2594 = vld [vmem:[%s2 + $0x58] sm:$0xff]
    %v2595 = vld [vmem:[%s2 + $0x60] sm:$0xff]
    %v2596 = vld [vmem:[%s2 + $0x68] sm:$0xff]
    %v2597 = vld [vmem:[%s2 + $0x70] sm:$0xff]
    %v2598 = vld [vmem:[%s2 + $0x78] sm:$0xff]
    %v2599 = vld [vmem:[%s2 + $0x80] sm:$0xff]
    %v2600 = vld [vmem:[%s2 + $0x88] sm:$0xff]
    %v2601 = vld [vmem:[%s2 + $0x90] sm:$0xff]
    %v2602 = vld [vmem:[%s2 + $0x98] sm:$0xff]
    %v2603 = vld [vmem:[%s2 + $0xa0] sm:$0xff]
    %v2604 = vld [vmem:[%s2 + $0xa8] sm:$0xff]
    %v2605 = vld [vmem:[%s2 + $0xb0] sm:$0xff]
    %v2606 = vld [vmem:[%s2 + $0xb8] sm:$0xff]
    %v2607 = vld [vmem:[%s2 + $0xc0] sm:$0xff]
    %v2608 = vld [vmem:[%s2 + $0xc8] sm:$0xff]
    %v2609 = vld [vmem:[%s2 + $0xd0] sm:$0xff]
    %v2610 = vld [vmem:[%s2 + $0xd8] sm:$0xff]
    %v2611 = vld [vmem:[%s2 + $0xe0] sm:$0xff]
    %v2612 = vld [vmem:[%s2 + $0xe8] sm:$0xff]
    %v2613 = vld [vmem:[%s2 + $0xf0] sm:$0xff]
    %v2614 = vld [vmem:[%s2 + $0xf8] sm:$0xff]
    %v2647 = vunpack.c.l.b16 %v2583
    %v2648 = vunpack.c.h.b16 %v2583
    %v2649 = vunpack.c.l.b16 %v2584
    %v2650 = vunpack.c.h.b16 %v2584
    %v2651 = vunpack.c.l.b16 %v2585
    %v2652 = vunpack.c.h.b16 %v2585
    %v2653 = vunpack.c.l.b16 %v2586
    %v2654 = vunpack.c.h.b16 %v2586
    %v2655 = vunpack.c.l.b16 %v2587
    %v2656 = vunpack.c.h.b16 %v2587
    %v2657 = vunpack.c.l.b16 %v2588
    %v2658 = vunpack.c.h.b16 %v2588
    %v2659 = vunpack.c.l.b16 %v2589
    %v2660 = vunpack.c.h.b16 %v2589
    %v2661 = vunpack.c.l.b16 %v2590
    %v2662 = vunpack.c.h.b16 %v2590
    %v2663 = vunpack.c.l.b16 %v2591
    %v2664 = vunpack.c.h.b16 %v2591
    %v2665 = vunpack.c.l.b16 %v2592
    %v2666 = vunpack.c.h.b16 %v2592
    %v2667 = vunpack.c.l.b16 %v2593
    %v2668 = vunpack.c.h.b16 %v2593
    %v2669 = vunpack.c.l.b16 %v2594
    %v2670 = vunpack.c.h.b16 %v2594
    %v2671 = vunpack.c.l.b16 %v2595
    %v2672 = vunpack.c.h.b16 %v2595
    %v2673 = vunpack.c.l.b16 %v2596
    %v2674 = vunpack.c.h.b16 %v2596
    %v2675 = vunpack.c.l.b16 %v2597
    %v2676 = vunpack.c.h.b16 %v2597
    %v2677 = vunpack.c.l.b16 %v2598
    %v2678 = vunpack.c.h.b16 %v2598
    %v2679 = vunpack.c.l.b16 %v2599
    %v2680 = vunpack.c.h.b16 %v2599
    %v2681 = vunpack.c.l.b16 %v2600
    %v2682 = vunpack.c.h.b16 %v2600
    %v2683 = vunpack.c.l.b16 %v2601
    %v2684 = vunpack.c.h.b16 %v2601
    %v2685 = vunpack.c.l.b16 %v2602
    %v2686 = vunpack.c.h.b16 %v2602
    %v2687 = vunpack.c.l.b16 %v2603
    %v2688 = vunpack.c.h.b16 %v2603
    %v2689 = vunpack.c.l.b16 %v2604
    %v2690 = vunpack.c.h.b16 %v2604
    %v2691 = vunpack.c.l.b16 %v2605
    %v2692 = vunpack.c.h.b16 %v2605
    %v2693 = vunpack.c.l.b16 %v2606
    %v2694 = vunpack.c.h.b16 %v2606
    %v2695 = vunpack.c.l.b16 %v2607
    %v2696 = vunpack.c.h.b16 %v2607
    %v2697 = vunpack.c.l.b16 %v2608
    %v2698 = vunpack.c.h.b16 %v2608
    %v2699 = vunpack.c.l.b16 %v2609
    %v2700 = vunpack.c.h.b16 %v2609
    %v2701 = vunpack.c.l.b16 %v2610
    %v2702 = vunpack.c.h.b16 %v2610
    %v2703 = vunpack.c.l.b16 %v2611
    %v2704 = vunpack.c.h.b16 %v2611
    %v2705 = vunpack.c.l.b16 %v2612
    %v2706 = vunpack.c.h.b16 %v2612
    %v2707 = vunpack.c.l.b16 %v2613
    %v2708 = vunpack.c.h.b16 %v2613
    %v2709 = vunpack.c.l.b16 %v2614
    %v2710 = vunpack.c.h.b16 %v2614
    %v2711 = vpack.c.b16 %v2649, %v2647
    %v2712 = vpack.c.b16 %v2650, %v2648
    %v2713 = vpack.c.b16 %v2653, %v2651
    %v2714 = vpack.c.b16 %v2654, %v2652
    %v2715 = vpack.c.b16 %v2657, %v2655
    %v2716 = vpack.c.b16 %v2658, %v2656
    %v2717 = vpack.c.b16 %v2661, %v2659
    %v2718 = vpack.c.b16 %v2662, %v2660
    %v2719 = vpack.c.b16 %v2665, %v2663
    %v2720 = vpack.c.b16 %v2666, %v2664
    %v2721 = vpack.c.b16 %v2669, %v2667
    %v2722 = vpack.c.b16 %v2670, %v2668
    %v2723 = vpack.c.b16 %v2673, %v2671
    %v2724 = vpack.c.b16 %v2674, %v2672
    %v2725 = vpack.c.b16 %v2677, %v2675
    %v2726 = vpack.c.b16 %v2678, %v2676
    %v2727 = vpack.c.b16 %v2681, %v2679
    %v2728 = vpack.c.b16 %v2682, %v2680
    %v2729 = vpack.c.b16 %v2685, %v2683
    %v2730 = vpack.c.b16 %v2686, %v2684
    %v2731 = vpack.c.b16 %v2689, %v2687
    %v2732 = vpack.c.b16 %v2690, %v2688
    %v2733 = vpack.c.b16 %v2693, %v2691
    %v2734 = vpack.c.b16 %v2694, %v2692
    %v2735 = vpack.c.b16 %v2697, %v2695
    %v2736 = vpack.c.b16 %v2698, %v2696
    %v2737 = vpack.c.b16 %v2701, %v2699
    %v2738 = vpack.c.b16 %v2702, %v2700
    %v2739 = vpack.c.b16 %v2705, %v2703
    %v2740 = vpack.c.b16 %v2706, %v2704
    %v2741 = vpack.c.b16 %v2709, %v2707
    %v2742 = vpack.c.b16 %v2710, %v2708
    %2775 = vmatprep.subr.bf16.mxu0 %v2712
    %2776 = vmatpush1.bf16.msra.mxu0 %v2711
    %2777 = vmatprep.subr.bf16.mxu0 %v2714
    %2778 = vmatpush1.bf16.msra.mxu0 %v2713
    %2779 = vmatprep.subr.bf16.mxu0 %v2716
    %2780 = vmatpush1.bf16.msra.mxu0 %v2715
    %2781 = vmatprep.subr.bf16.mxu0 %v2718
    %2782 = vmatpush1.bf16.msra.mxu0 %v2717
    %2783 = vmatprep.subr.bf16.mxu0 %v2720
    %2784 = vmatpush1.bf16.msra.mxu0 %v2719
    %2785 = vmatprep.subr.bf16.mxu0 %v2722
    %2786 = vmatpush1.bf16.msra.mxu0 %v2721
    %2787 = vmatprep.subr.bf16.mxu0 %v2724
    %2788 = vmatpush1.bf16.msra.mxu0 %v2723
    %2789 = vmatprep.subr.bf16.mxu0 %v2726
    %2790 = vmatpush1.bf16.msra.mxu0 %v2725
    %2791 = vmatprep.subr.bf16.mxu0 %v2728
    %2792 = vmatpush1.bf16.msra.mxu0 %v2727
    %2793 = vmatprep.subr.bf16.mxu0 %v2730
    %2794 = vmatpush1.bf16.msra.mxu0 %v2729
    %2795 = vmatprep.subr.bf16.mxu0 %v2732
    %2796 = vmatpush1.bf16.msra.mxu0 %v2731
    %2797 = vmatprep.subr.bf16.mxu0 %v2734
    %2798 = vmatpush1.bf16.msra.mxu0 %v2733
    %2799 = vmatprep.subr.bf16.mxu0 %v2736
    %2800 = vmatpush1.bf16.msra.mxu0 %v2735
    %2801 = vmatprep.subr.bf16.mxu0 %v2738
    %2802 = vmatpush1.bf16.msra.mxu0 %v2737
    %2803 = vmatprep.subr.bf16.mxu0 %v2740
    %2804 = vmatpush1.bf16.msra.mxu0 %v2739
    %2805 = vmatprep.subr.bf16.mxu0 %v2742
    %2806 = vmatpush1.bf16.msra.mxu0 %v2741
    %2807 = vmatprep.mubr.bf16.mxu0 %v2520
    %2808 = vmatmul.mubr.bf16.gmra.mrb[0].mxu0 %v2519
    %v2809 = vpop.f32.mrb[0].mxu0
    %v2810 = vadd.f32 0.0, %v2809
    %v2811 = vpop.f32.mrb[0].mxu0
    %v2812 = vadd.f32 0.0, %v2811
    %v2813 = vpop.f32.mrb[0].mxu0
    %v2814 = vadd.f32 0.0, %v2813
    %v2815 = vpop.f32.mrb[0].mxu0
    %v2816 = vadd.f32 0.0, %v2815
    %2817 = vmatprep.mubr.bf16.mxu0 %v2522
    %2818 = vmatmul.mubr.bf16.gmra.mrb[0].mxu0 %v2521
    %v2819 = vpop.f32.mrb[0].mxu0
    %v2820 = vadd.f32 0.0, %v2819
    %v2821 = vpop.f32.mrb[0].mxu0
    %v2822 = vadd.f32 0.0, %v2821
    %v2823 = vpop.f32.mrb[0].mxu0
    %v2824 = vadd.f32 0.0, %v2823
    %v2825 = vpop.f32.mrb[0].mxu0
    %v2826 = vadd.f32 0.0, %v2825
    %2827 = vmatprep.mubr.bf16.mxu0 %v2524
    %2828 = vmatmul.mubr.bf16.gmra.mrb[0].mxu0 %v2523
    %v2829 = vpop.f32.mrb[0].mxu0
    %v2830 = vadd.f32 0.0, %v2829
    %v2831 = vpop.f32.mrb[0].mxu0
    %v2832 = vadd.f32 0.0, %v2831
    %v2833 = vpop.f32.mrb[0].mxu0
    %v2834 = vadd.f32 0.0, %v2833
    %v2835 = vpop.f32.mrb[0].mxu0
    %v2836 = vadd.f32 0.0, %v2835
    %2837 = vmatprep.mubr.bf16.mxu0 %v2526
    %2838 = vmatmul.mubr.bf16.gmra.mrb[0].mxu0 %v2525
    %v2839 = vpop.f32.mrb[0].mxu0
    %v2840 = vadd.f32 0.0, %v2839
    %v2841 = vpop.f32.mrb[0].mxu0
    %v2842 = vadd.f32 0.0, %v2841
    %v2843 = vpop.f32.mrb[0].mxu0
    %v2844 = vadd.f32 0.0, %v2843
    %v2845 = vpop.f32.mrb[0].mxu0
    %v2846 = vadd.f32 0.0, %v2845
    %2847 = vmatprep.mubr.bf16.mxu0 %v2528
    %2848 = vmatmul.mubr.bf16.gmra.mrb[0].mxu0 %v2527
    %v2849 = vpop.f32.mrb[0].mxu0
    %v2850 = vadd.f32 0.0, %v2849
    %v2851 = vpop.f32.mrb[0].mxu0
    %v2852 = vadd.f32 0.0, %v2851
    %v2853 = vpop.f32.mrb[0].mxu0
    %v2854 = vadd.f32 0.0, %v2853
    %v2855 = vpop.f32.mrb[0].mxu0
    %v2856 = vadd.f32 0.0, %v2855
    %2857 = vmatprep.mubr.bf16.mxu0 %v2530
    %2858 = vmatmul.mubr.bf16.gmra.mrb[0].mxu0 %v2529
    %v2859 = vpop.f32.mrb[0].mxu0
    %v2860 = vadd.f32 0.0, %v2859
    %v2861 = vpop.f32.mrb[0].mxu0
    %v2862 = vadd.f32 0.0, %v2861
    %v2863 = vpop.f32.mrb[0].mxu0
    %v2864 = vadd.f32 0.0, %v2863
    %v2865 = vpop.f32.mrb[0].mxu0
    %v2866 = vadd.f32 0.0, %v2865
    %2867 = vmatprep.mubr.bf16.mxu0 %v2532
    %2868 = vmatmul.mubr.bf16.gmra.mrb[0].mxu0 %v2531
    %v2869 = vpop.f32.mrb[0].mxu0
    %v2870 = vadd.f32 0.0, %v2869
    %v2871 = vpop.f32.mrb[0].mxu0
    %v2872 = vadd.f32 0.0, %v2871
    %v2873 = vpop.f32.mrb[0].mxu0
    %v2874 = vadd.f32 0.0, %v2873
    %v2875 = vpop.f32.mrb[0].mxu0
    %v2876 = vadd.f32 0.0, %v2875
    %2877 = vmatprep.mubr.bf16.mxu0 %v2534
    %2878 = vmatmul.mubr.bf16.gmra.mrb[0].mxu0 %v2533
    %v2879 = vpop.f32.mrb[0].mxu0
    %v2880 = vadd.f32 0.0, %v2879
    %v2881 = vpop.f32.mrb[0].mxu0
    %v2882 = vadd.f32 0.0, %v2881
    %v2883 = vpop.f32.mrb[0].mxu0
    %v2884 = vadd.f32 0.0, %v2883
    %v2885 = vpop.f32.mrb[0].mxu0
    %v2886 = vadd.f32 0.0, %v2885
    %2887 = vmatprep.mubr.bf16.mxu0 %v2536
    %2888 = vmatmul.mubr.bf16.gmra.mrb[0].mxu0 %v2535
    %v2889 = vpop.f32.mrb[0].mxu0
    %v2890 = vadd.f32 0.0, %v2889
    %v2891 = vpop.f32.mrb[0].mxu0
    %v2892 = vadd.f32 0.0, %v2891
    %v2893 = vpop.f32.mrb[0].mxu0
    %v2894 = vadd.f32 0.0, %v2893
    %v2895 = vpop.f32.mrb[0].mxu0
    %v2896 = vadd.f32 0.0, %v2895
    %2897 = vmatprep.mubr.bf16.mxu0 %v2538
    %2898 = vmatmul.mubr.bf16.gmra.mrb[0].mxu0 %v2537
    %v2899 = vpop.f32.mrb[0].mxu0
    %v2900 = vadd.f32 0.0, %v2899
    %v2901 = vpop.f32.mrb[0].mxu0
    %v2902 = vadd.f32 0.0, %v2901
    %v2903 = vpop.f32.mrb[0].mxu0
    %v2904 = vadd.f32 0.0, %v2903
    %v2905 = vpop.f32.mrb[0].mxu0
    %v2906 = vadd.f32 0.0, %v2905
    %2907 = vmatprep.mubr.bf16.mxu0 %v2540
    %2908 = vmatmul.mubr.bf16.gmra.mrb[0].mxu0 %v2539
    %v2909 = vpop.f32.mrb[0].mxu0
    %v2910 = vadd.f32 0.0, %v2909
    %v2911 = vpop.f32.mrb[0].mxu0
    %v2912 = vadd.f32 0.0, %v2911
    %v2913 = vpop.f32.mrb[0].mxu0
    %v2914 = vadd.f32 0.0, %v2913
    %v2915 = vpop.f32.mrb[0].mxu0
    %v2916 = vadd.f32 0.0, %v2915
    %2917 = vmatprep.mubr.bf16.mxu0 %v2542
    %2918 = vmatmul.mubr.bf16.gmra.mrb[0].mxu0 %v2541
    %v2919 = vpop.f32.mrb[0].mxu0
    %v2920 = vadd.f32 0.0, %v2919
    %v2921 = vpop.f32.mrb[0].mxu0
    %v2922 = vadd.f32 0.0, %v2921
    %v2923 = vpop.f32.mrb[0].mxu0
    %v2924 = vadd.f32 0.0, %v2923
    %v2925 = vpop.f32.mrb[0].mxu0
    %v2926 = vadd.f32 0.0, %v2925
    %2927 = vmatprep.mubr.bf16.mxu0 %v2544
    %2928 = vmatmul.mubr.bf16.gmra.mrb[0].mxu0 %v2543
    %v2929 = vpop.f32.mrb[0].mxu0
    %v2930 = vadd.f32 0.0, %v2929
    %v2931 = vpop.f32.mrb[0].mxu0
    %v2932 = vadd.f32 0.0, %v2931
    %v2933 = vpop.f32.mrb[0].mxu0
    %v2934 = vadd.f32 0.0, %v2933
    %v2935 = vpop.f32.mrb[0].mxu0
    %v2936 = vadd.f32 0.0, %v2935
    %2937 = vmatprep.mubr.bf16.mxu0 %v2546
    %2938 = vmatmul.mubr.bf16.gmra.mrb[0].mxu0 %v2545
    %v2939 = vpop.f32.mrb[0].mxu0
    %v2940 = vadd.f32 0.0, %v2939
    %v2941 = vpop.f32.mrb[0].mxu0
    %v2942 = vadd.f32 0.0, %v2941
    %v2943 = vpop.f32.mrb[0].mxu0
    %v2944 = vadd.f32 0.0, %v2943
    %v2945 = vpop.f32.mrb[0].mxu0
    %v2946 = vadd.f32 0.0, %v2945
    %2947 = vmatprep.mubr.bf16.mxu0 %v2548
    %2948 = vmatmul.mubr.bf16.gmra.mrb[0].mxu0 %v2547
    %v2949 = vpop.f32.mrb[0].mxu0
    %v2950 = vadd.f32 0.0, %v2949
    %v2951 = vpop.f32.mrb[0].mxu0
    %v2952 = vadd.f32 0.0, %v2951
    %v2953 = vpop.f32.mrb[0].mxu0
    %v2954 = vadd.f32 0.0, %v2953
    %v2955 = vpop.f32.mrb[0].mxu0
    %v2956 = vadd.f32 0.0, %v2955
    %2957 = vmatprep.mubr.bf16.mxu0 %v2550
    %2958 = vmatmul.mubr.bf16.gmra.mrb[0].mxu0 %v2549
    %v2959 = vpop.f32.mrb[0].mxu0
    %v2960 = vadd.f32 0.0, %v2959
    %v2961 = vpop.f32.mrb[0].mxu0
    %v2962 = vadd.f32 0.0, %v2961
    %v2963 = vpop.f32.mrb[0].mxu0
    %v2964 = vadd.f32 0.0, %v2963
    %v2965 = vpop.f32.mrb[0].mxu0
    %v2966 = vadd.f32 0.0, %v2965
    %2967 = vmatprep.mubr.bf16.mxu0 %v2552
    %2968 = vmatmul.mubr.bf16.gmra.mrb[0].mxu0 %v2551
    %v2969 = vpop.f32.mrb[0].mxu0
    %v2970 = vadd.f32 0.0, %v2969
    %v2971 = vpop.f32.mrb[0].mxu0
    %v2972 = vadd.f32 0.0, %v2971
    %v2973 = vpop.f32.mrb[0].mxu0
    %v2974 = vadd.f32 0.0, %v2973
    %v2975 = vpop.f32.mrb[0].mxu0
    %v2976 = vadd.f32 0.0, %v2975
    %2977 = vmatprep.mubr.bf16.mxu0 %v2554
    %2978 = vmatmul.mubr.bf16.gmra.mrb[0].mxu0 %v2553
    %v2979 = vpop.f32.mrb[0].mxu0
    %v2980 = vadd.f32 0.0, %v2979
    %v2981 = vpop.f32.mrb[0].mxu0
    %v2982 = vadd.f32 0.0, %v2981
    %v2983 = vpop.f32.mrb[0].mxu0
    %v2984 = vadd.f32 0.0, %v2983
    %v2985 = vpop.f32.mrb[0].mxu0
    %v2986 = vadd.f32 0.0, %v2985
    %2987 = vmatprep.mubr.bf16.mxu0 %v2556
    %2988 = vmatmul.mubr.bf16.gmra.mrb[0].mxu0 %v2555
    %v2989 = vpop.f32.mrb[0].mxu0
    %v2990 = vadd.f32 0.0, %v2989
    %v2991 = vpop.f32.mrb[0].mxu0
    %v2992 = vadd.f32 0.0, %v2991
    %v2993 = vpop.f32.mrb[0].mxu0
    %v2994 = vadd.f32 0.0, %v2993
    %v2995 = vpop.f32.mrb[0].mxu0
    %v2996 = vadd.f32 0.0, %v2995
    %2997 = vmatprep.mubr.bf16.mxu0 %v2558
    %2998 = vmatmul.mubr.bf16.gmra.mrb[0].mxu0 %v2557
    %v2999 = vpop.f32.mrb[0].mxu0
    %v3000 = vadd.f32 0.0, %v2999
    %v3001 = vpop.f32.mrb[0].mxu0
    %v3002 = vadd.f32 0.0, %v3001
    %v3003 = vpop.f32.mrb[0].mxu0
    %v3004 = vadd.f32 0.0, %v3003
    %v3005 = vpop.f32.mrb[0].mxu0
    %v3006 = vadd.f32 0.0, %v3005
    %3007 = vmatprep.mubr.bf16.mxu0 %v2560
    %3008 = vmatmul.mubr.bf16.gmra.mrb[0].mxu0 %v2559
    %v3009 = vpop.f32.mrb[0].mxu0
    %v3010 = vadd.f32 0.0, %v3009
    %v3011 = vpop.f32.mrb[0].mxu0
    %v3012 = vadd.f32 0.0, %v3011
    %v3013 = vpop.f32.mrb[0].mxu0
    %v3014 = vadd.f32 0.0, %v3013
    %v3015 = vpop.f32.mrb[0].mxu0
    %v3016 = vadd.f32 0.0, %v3015
    %3017 = vmatprep.mubr.bf16.mxu0 %v2562
    %3018 = vmatmul.mubr.bf16.gmra.mrb[0].mxu0 %v2561
    %v3019 = vpop.f32.mrb[0].mxu0
    %v3020 = vadd.f32 0.0, %v3019
    %v3021 = vpop.f32.mrb[0].mxu0
    %v3022 = vadd.f32 0.0, %v3021
    %v3023 = vpop.f32.mrb[0].mxu0
    %v3024 = vadd.f32 0.0, %v3023
    %v3025 = vpop.f32.mrb[0].mxu0
    %v3026 = vadd.f32 0.0, %v3025
    %3027 = vmatprep.mubr.bf16.mxu0 %v2564
    %3028 = vmatmul.mubr.bf16.gmra.mrb[0].mxu0 %v2563
    %v3029 = vpop.f32.mrb[0].mxu0
    %v3030 = vadd.f32 0.0, %v3029
    %v3031 = vpop.f32.mrb[0].mxu0
    %v3032 = vadd.f32 0.0, %v3031
    %v3033 = vpop.f32.mrb[0].mxu0
    %v3034 = vadd.f32 0.0, %v3033
    %v3035 = vpop.f32.mrb[0].mxu0
    %v3036 = vadd.f32 0.0, %v3035
    %3037 = vmatprep.mubr.bf16.mxu0 %v2566
    %3038 = vmatmul.mubr.bf16.gmra.mrb[0].mxu0 %v2565
    %v3039 = vpop.f32.mrb[0].mxu0
    %v3040 = vadd.f32 0.0, %v3039
    %v3041 = vpop.f32.mrb[0].mxu0
    %v3042 = vadd.f32 0.0, %v3041
    %v3043 = vpop.f32.mrb[0].mxu0
    %v3044 = vadd.f32 0.0, %v3043
    %v3045 = vpop.f32.mrb[0].mxu0
    %v3046 = vadd.f32 0.0, %v3045
    %3047 = vmatprep.mubr.bf16.mxu0 %v2568
    %3048 = vmatmul.mubr.bf16.gmra.mrb[0].mxu0 %v2567
    %v3049 = vpop.f32.mrb[0].mxu0
    %v3050 = vadd.f32 0.0, %v3049
    %v3051 = vpop.f32.mrb[0].mxu0
    %v3052 = vadd.f32 0.0, %v3051
    %v3053 = vpop.f32.mrb[0].mxu0
    %v3054 = vadd.f32 0.0, %v3053
    %v3055 = vpop.f32.mrb[0].mxu0
    %v3056 = vadd.f32 0.0, %v3055
    %3057 = vmatprep.mubr.bf16.mxu0 %v2570
    %3058 = vmatmul.mubr.bf16.gmra.mrb[0].mxu0 %v2569
    %v3059 = vpop.f32.mrb[0].mxu0
    %v3060 = vadd.f32 0.0, %v3059
    %v3061 = vpop.f32.mrb[0].mxu0
    %v3062 = vadd.f32 0.0, %v3061
    %v3063 = vpop.f32.mrb[0].mxu0
    %v3064 = vadd.f32 0.0, %v3063
    %v3065 = vpop.f32.mrb[0].mxu0
    %v3066 = vadd.f32 0.0, %v3065
    %3067 = vmatprep.mubr.bf16.mxu0 %v2572
    %3068 = vmatmul.mubr.bf16.gmra.mrb[0].mxu0 %v2571
    %v3069 = vpop.f32.mrb[0].mxu0
    %v3070 = vadd.f32 0.0, %v3069
    %v3071 = vpop.f32.mrb[0].mxu0
    %v3072 = vadd.f32 0.0, %v3071
    %v3073 = vpop.f32.mrb[0].mxu0
    %v3074 = vadd.f32 0.0, %v3073
    %v3075 = vpop.f32.mrb[0].mxu0
    %v3076 = vadd.f32 0.0, %v3075
    %3077 = vmatprep.mubr.bf16.mxu0 %v2574
    %3078 = vmatmul.mubr.bf16.gmra.mrb[0].mxu0 %v2573
    %v3079 = vpop.f32.mrb[0].mxu0
    %v3080 = vadd.f32 0.0, %v3079
    %v3081 = vpop.f32.mrb[0].mxu0
    %v3082 = vadd.f32 0.0, %v3081
    %v3083 = vpop.f32.mrb[0].mxu0
    %v3084 = vadd.f32 0.0, %v3083
    %v3085 = vpop.f32.mrb[0].mxu0
    %v3086 = vadd.f32 0.0, %v3085
    %3087 = vmatprep.mubr.bf16.mxu0 %v2576
    %3088 = vmatmul.mubr.bf16.gmra.mrb[0].mxu0 %v2575
    %v3089 = vpop.f32.mrb[0].mxu0
    %v3090 = vadd.f32 0.0, %v3089
    %v3091 = vpop.f32.mrb[0].mxu0
    %v3092 = vadd.f32 0.0, %v3091
    %v3093 = vpop.f32.mrb[0].mxu0
    %v3094 = vadd.f32 0.0, %v3093
    %v3095 = vpop.f32.mrb[0].mxu0
    %v3096 = vadd.f32 0.0, %v3095
    %3097 = vmatprep.mubr.bf16.mxu0 %v2578
    %3098 = vmatmul.mubr.bf16.gmra.mrb[0].mxu0 %v2577
    %v3099 = vpop.f32.mrb[0].mxu0
    %v3100 = vadd.f32 0.0, %v3099
    %v3101 = vpop.f32.mrb[0].mxu0
    %v3102 = vadd.f32 0.0, %v3101
    %v3103 = vpop.f32.mrb[0].mxu0
    %v3104 = vadd.f32 0.0, %v3103
    %v3105 = vpop.f32.mrb[0].mxu0
    %v3106 = vadd.f32 0.0, %v3105
    %3107 = vmatprep.mubr.bf16.mxu0 %v2580
    %3108 = vmatmul.mubr.bf16.gmra.mrb[0].mxu0 %v2579
    %v3109 = vpop.f32.mrb[0].mxu0
    %v3110 = vadd.f32 0.0, %v3109
    %v3111 = vpop.f32.mrb[0].mxu0
    %v3112 = vadd.f32 0.0, %v3111
    %v3113 = vpop.f32.mrb[0].mxu0
    %v3114 = vadd.f32 0.0, %v3113
    %v3115 = vpop.f32.mrb[0].mxu0
    %v3116 = vadd.f32 0.0, %v3115
    %3117 = vmatprep.mubr.bf16.mxu0 %v2582
    %3118 = vmatmul.mubr.bf16.gmra.mrb[0].mxu0 %v2581
    %v3119 = vpop.f32.mrb[0].mxu0
    %v3120 = vadd.f32 0.0, %v3119
    %v3121 = vpop.f32.mrb[0].mxu0
    %v3122 = vadd.f32 0.0, %v3121
    %v3123 = vpop.f32.mrb[0].mxu0
    %v3124 = vadd.f32 0.0, %v3123
    %v3125 = vpop.f32.mrb[0].mxu0
    %v3126 = vadd.f32 0.0, %v3125
    %3127 = vdwg.mxu0
    %v3128 = vmax.f32 %v2810, 0.0
    %v3129 = vmax.f32 %v2812, 0.0
    %v3130 = vmax.f32 %v2814, 0.0
    %v3131 = vmax.f32 %v2816, 0.0
    %v3132 = vmax.f32 %v2820, 0.0
    %v3133 = vmax.f32 %v2822, 0.0
    %v3134 = vmax.f32 %v2824, 0.0
    %v3135 = vmax.f32 %v2826, 0.0
    %v3136 = vmax.f32 %v2830, 0.0
    %v3137 = vmax.f32 %v2832, 0.0
    %v3138 = vmax.f32 %v2834, 0.0
    %v3139 = vmax.f32 %v2836, 0.0
    %v3140 = vmax.f32 %v2840, 0.0
    %v3141 = vmax.f32 %v2842, 0.0
    %v3142 = vmax.f32 %v2844, 0.0
    %v3143 = vmax.f32 %v2846, 0.0
    %v3144 = vmax.f32 %v2850, 0.0
    %v3145 = vmax.f32 %v2852, 0.0
    %v3146 = vmax.f32 %v2854, 0.0
    %v3147 = vmax.f32 %v2856, 0.0
    %v3148 = vmax.f32 %v2860, 0.0
    %v3149 = vmax.f32 %v2862, 0.0
    %v3150 = vmax.f32 %v2864, 0.0
    %v3151 = vmax.f32 %v2866, 0.0
    %v3152 = vmax.f32 %v2870, 0.0
    %v3153 = vmax.f32 %v2872, 0.0
    %v3154 = vmax.f32 %v2874, 0.0
    %v3155 = vmax.f32 %v2876, 0.0
    %v3156 = vmax.f32 %v2880, 0.0
    %v3157 = vmax.f32 %v2882, 0.0
    %v3158 = vmax.f32 %v2884, 0.0
    %v3159 = vmax.f32 %v2886, 0.0
    %v3160 = vmax.f32 %v2890, 0.0
    %v3161 = vmax.f32 %v2892, 0.0
    %v3162 = vmax.f32 %v2894, 0.0
    %v3163 = vmax.f32 %v2896, 0.0
    %v3164 = vmax.f32 %v2900, 0.0
    %v3165 = vmax.f32 %v2902, 0.0
    %v3166 = vmax.f32 %v2904, 0.0
    %v3167 = vmax.f32 %v2906, 0.0
    %v3168 = vmax.f32 %v2910, 0.0
    %v3169 = vmax.f32 %v2912, 0.0
    %v3170 = vmax.f32 %v2914, 0.0
    %v3171 = vmax.f32 %v2916, 0.0
    %v3172 = vmax.f32 %v2920, 0.0
    %v3173 = vmax.f32 %v2922, 0.0
    %v3174 = vmax.f32 %v2924, 0.0
    %v3175 = vmax.f32 %v2926, 0.0
    %v3176 = vmax.f32 %v2930, 0.0
    %v3177 = vmax.f32 %v2932, 0.0
    %v3178 = vmax.f32 %v2934, 0.0
    %v3179 = vmax.f32 %v2936, 0.0
    %v3180 = vmax.f32 %v2940, 0.0
    %v3181 = vmax.f32 %v2942, 0.0
    %v3182 = vmax.f32 %v2944, 0.0
    %v3183 = vmax.f32 %v2946, 0.0
    %v3184 = vmax.f32 %v2950, 0.0
    %v3185 = vmax.f32 %v2952, 0.0
    %v3186 = vmax.f32 %v2954, 0.0
    %v3187 = vmax.f32 %v2956, 0.0
    %v3188 = vmax.f32 %v2960, 0.0
    %v3189 = vmax.f32 %v2962, 0.0
    %v3190 = vmax.f32 %v2964, 0.0
    %v3191 = vmax.f32 %v2966, 0.0
    %v3192 = vmax.f32 %v2970, 0.0
    %v3193 = vmax.f32 %v2972, 0.0
    %v3194 = vmax.f32 %v2974, 0.0
    %v3195 = vmax.f32 %v2976, 0.0
    %v3196 = vmax.f32 %v2980, 0.0
    %v3197 = vmax.f32 %v2982, 0.0
    %v3198 = vmax.f32 %v2984, 0.0
    %v3199 = vmax.f32 %v2986, 0.0
    %v3200 = vmax.f32 %v2990, 0.0
    %v3201 = vmax.f32 %v2992, 0.0
    %v3202 = vmax.f32 %v2994, 0.0
    %v3203 = vmax.f32 %v2996, 0.0
    %v3204 = vmax.f32 %v3000, 0.0
    %v3205 = vmax.f32 %v3002, 0.0
    %v3206 = vmax.f32 %v3004, 0.0
    %v3207 = vmax.f32 %v3006, 0.0
    %v3208 = vmax.f32 %v3010, 0.0
    %v3209 = vmax.f32 %v3012, 0.0
    %v3210 = vmax.f32 %v3014, 0.0
    %v3211 = vmax.f32 %v3016, 0.0
    %v3212 = vmax.f32 %v3020, 0.0
    %v3213 = vmax.f32 %v3022, 0.0
    %v3214 = vmax.f32 %v3024, 0.0
    %v3215 = vmax.f32 %v3026, 0.0
    %v3216 = vmax.f32 %v3030, 0.0
    %v3217 = vmax.f32 %v3032, 0.0
    %v3218 = vmax.f32 %v3034, 0.0
    %v3219 = vmax.f32 %v3036, 0.0
    %v3220 = vmax.f32 %v3040, 0.0
    %v3221 = vmax.f32 %v3042, 0.0
    %v3222 = vmax.f32 %v3044, 0.0
    %v3223 = vmax.f32 %v3046, 0.0
    %v3224 = vmax.f32 %v3050, 0.0
    %v3225 = vmax.f32 %v3052, 0.0
    %v3226 = vmax.f32 %v3054, 0.0
    %v3227 = vmax.f32 %v3056, 0.0
    %v3228 = vmax.f32 %v3060, 0.0
    %v3229 = vmax.f32 %v3062, 0.0
    %v3230 = vmax.f32 %v3064, 0.0
    %v3231 = vmax.f32 %v3066, 0.0
    %v3232 = vmax.f32 %v3070, 0.0
    %v3233 = vmax.f32 %v3072, 0.0
    %v3234 = vmax.f32 %v3074, 0.0
    %v3235 = vmax.f32 %v3076, 0.0
    %v3236 = vmax.f32 %v3080, 0.0
    %v3237 = vmax.f32 %v3082, 0.0
    %v3238 = vmax.f32 %v3084, 0.0
    %v3239 = vmax.f32 %v3086, 0.0
    %v3240 = vmax.f32 %v3090, 0.0
    %v3241 = vmax.f32 %v3092, 0.0
    %v3242 = vmax.f32 %v3094, 0.0
    %v3243 = vmax.f32 %v3096, 0.0
    %v3244 = vmax.f32 %v3100, 0.0
    %v3245 = vmax.f32 %v3102, 0.0
    %v3246 = vmax.f32 %v3104, 0.0
    %v3247 = vmax.f32 %v3106, 0.0
    %v3248 = vmax.f32 %v3110, 0.0
    %v3249 = vmax.f32 %v3112, 0.0
    %v3250 = vmax.f32 %v3114, 0.0
    %v3251 = vmax.f32 %v3116, 0.0
    %v3252 = vmax.f32 %v3120, 0.0
    %v3253 = vmax.f32 %v3122, 0.0
    %v3254 = vmax.f32 %v3124, 0.0
    %v3255 = vmax.f32 %v3126, 0.0
    %v3256 = vpack.c.bf16 %v3130, %v3128
    %v3257 = vpack.c.bf16 %v3131, %v3129
    %v3258 = vpack.c.bf16 %v3134, %v3132
    %v3259 = vpack.c.bf16 %v3135, %v3133
    %v3260 = vpack.c.bf16 %v3138, %v3136
    %v3261 = vpack.c.bf16 %v3139, %v3137
    %v3262 = vpack.c.bf16 %v3142, %v3140
    %v3263 = vpack.c.bf16 %v3143, %v3141
    %v3264 = vpack.c.bf16 %v3146, %v3144
    %v3265 = vpack.c.bf16 %v3147, %v3145
    %v3266 = vpack.c.bf16 %v3150, %v3148
    %v3267 = vpack.c.bf16 %v3151, %v3149
    %v3268 = vpack.c.bf16 %v3154, %v3152
    %v3269 = vpack.c.bf16 %v3155, %v3153
    %v3270 = vpack.c.bf16 %v3158, %v3156
    %v3271 = vpack.c.bf16 %v3159, %v3157
    %v3272 = vpack.c.bf16 %v3162, %v3160
    %v3273 = vpack.c.bf16 %v3163, %v3161
    %v3274 = vpack.c.bf16 %v3166, %v3164
    %v3275 = vpack.c.bf16 %v3167, %v3165
    %v3276 = vpack.c.bf16 %v3170, %v3168
    %v3277 = vpack.c.bf16 %v3171, %v3169
    %v3278 = vpack.c.bf16 %v3174, %v3172
    %v3279 = vpack.c.bf16 %v3175, %v3173
    %v3280 = vpack.c.bf16 %v3178, %v3176
    %v3281 = vpack.c.bf16 %v3179, %v3177
    %v3282 = vpack.c.bf16 %v3182, %v3180
    %v3283 = vpack.c.bf16 %v3183, %v3181
    %v3284 = vpack.c.bf16 %v3186, %v3184
    %v3285 = vpack.c.bf16 %v3187, %v3185
    %v3286 = vpack.c.bf16 %v3190, %v3188
    %v3287 = vpack.c.bf16 %v3191, %v3189
    %v3288 = vpack.c.bf16 %v3194, %v3192
    %v3289 = vpack.c.bf16 %v3195, %v3193
    %v3290 = vpack.c.bf16 %v3198, %v3196
    %v3291 = vpack.c.bf16 %v3199, %v3197
    %v3292 = vpack.c.bf16 %v3202, %v3200
    %v3293 = vpack.c.bf16 %v3203, %v3201
    %v3294 = vpack.c.bf16 %v3206, %v3204
    %v3295 = vpack.c.bf16 %v3207, %v3205
    %v3296 = vpack.c.bf16 %v3210, %v3208
    %v3297 = vpack.c.bf16 %v3211, %v3209
    %v3298 = vpack.c.bf16 %v3214, %v3212
    %v3299 = vpack.c.bf16 %v3215, %v3213
    %v3300 = vpack.c.bf16 %v3218, %v3216
    %v3301 = vpack.c.bf16 %v3219, %v3217
    %v3302 = vpack.c.bf16 %v3222, %v3220
    %v3303 = vpack.c.bf16 %v3223, %v3221
    %v3304 = vpack.c.bf16 %v3226, %v3224
    %v3305 = vpack.c.bf16 %v3227, %v3225
    %v3306 = vpack.c.bf16 %v3230, %v3228
    %v3307 = vpack.c.bf16 %v3231, %v3229
    %v3308 = vpack.c.bf16 %v3234, %v3232
    %v3309 = vpack.c.bf16 %v3235, %v3233
    %v3310 = vpack.c.bf16 %v3238, %v3236
    %v3311 = vpack.c.bf16 %v3239, %v3237
    %v3312 = vpack.c.bf16 %v3242, %v3240
    %v3313 = vpack.c.bf16 %v3243, %v3241
    %v3314 = vpack.c.bf16 %v3246, %v3244
    %v3315 = vpack.c.bf16 %v3247, %v3245
    %v3316 = vpack.c.bf16 %v3250, %v3248
    %v3317 = vpack.c.bf16 %v3251, %v3249
    %v3318 = vpack.c.bf16 %v3254, %v3252
    %v3319 = vpack.c.bf16 %v3255, %v3253
    %v3384 = vunpack.c.l.b16 %v3256
    %v3385 = vunpack.c.l.b16 %v3257
    %v3386 = vunpack.c.h.b16 %v3256
    %v3387 = vunpack.c.h.b16 %v3257
    %v3388 = vunpack.c.l.b16 %v3258
    %v3389 = vunpack.c.l.b16 %v3259
    %v3390 = vunpack.c.h.b16 %v3258
    %v3391 = vunpack.c.h.b16 %v3259
    %v3392 = vunpack.c.l.b16 %v3260
    %v3393 = vunpack.c.l.b16 %v3261
    %v3394 = vunpack.c.h.b16 %v3260
    %v3395 = vunpack.c.h.b16 %v3261
    %v3396 = vunpack.c.l.b16 %v3262
    %v3397 = vunpack.c.l.b16 %v3263
    %v3398 = vunpack.c.h.b16 %v3262
    %v3399 = vunpack.c.h.b16 %v3263
    %v3400 = vunpack.c.l.b16 %v3264
    %v3401 = vunpack.c.l.b16 %v3265
    %v3402 = vunpack.c.h.b16 %v3264
    %v3403 = vunpack.c.h.b16 %v3265
    %v3404 = vunpack.c.l.b16 %v3266
    %v3405 = vunpack.c.l.b16 %v3267
    %v3406 = vunpack.c.h.b16 %v3266
    %v3407 = vunpack.c.h.b16 %v3267
    %v3408 = vunpack.c.l.b16 %v3268
    %v3409 = vunpack.c.l.b16 %v3269
    %v3410 = vunpack.c.h.b16 %v3268
    %v3411 = vunpack.c.h.b16 %v3269
    %v3412 = vunpack.c.l.b16 %v3270
    %v3413 = vunpack.c.l.b16 %v3271
    %v3414 = vunpack.c.h.b16 %v3270
    %v3415 = vunpack.c.h.b16 %v3271
    %v3416 = vunpack.c.l.b16 %v3272
    %v3417 = vunpack.c.l.b16 %v3273
    %v3418 = vunpack.c.h.b16 %v3272
    %v3419 = vunpack.c.h.b16 %v3273
    %v3420 = vunpack.c.l.b16 %v3274
    %v3421 = vunpack.c.l.b16 %v3275
    %v3422 = vunpack.c.h.b16 %v3274
    %v3423 = vunpack.c.h.b16 %v3275
    %v3424 = vunpack.c.l.b16 %v3276
    %v3425 = vunpack.c.l.b16 %v3277
    %v3426 = vunpack.c.h.b16 %v3276
    %v3427 = vunpack.c.h.b16 %v3277
    %v3428 = vunpack.c.l.b16 %v3278
    %v3429 = vunpack.c.l.b16 %v3279
    %v3430 = vunpack.c.h.b16 %v3278
    %v3431 = vunpack.c.h.b16 %v3279
    %v3432 = vunpack.c.l.b16 %v3280
    %v3433 = vunpack.c.l.b16 %v3281
    %v3434 = vunpack.c.h.b16 %v3280
    %v3435 = vunpack.c.h.b16 %v3281
    %v3436 = vunpack.c.l.b16 %v3282
    %v3437 = vunpack.c.l.b16 %v3283
    %v3438 = vunpack.c.h.b16 %v3282
    %v3439 = vunpack.c.h.b16 %v3283
    %v3440 = vunpack.c.l.b16 %v3284
    %v3441 = vunpack.c.l.b16 %v3285
    %v3442 = vunpack.c.h.b16 %v3284
    %v3443 = vunpack.c.h.b16 %v3285
    %v3444 = vunpack.c.l.b16 %v3286
    %v3445 = vunpack.c.l.b16 %v3287
    %v3446 = vunpack.c.h.b16 %v3286
    %v3447 = vunpack.c.h.b16 %v3287
    %v3448 = vunpack.c.l.b16 %v3288
    %v3449 = vunpack.c.l.b16 %v3289
    %v3450 = vunpack.c.h.b16 %v3288
    %v3451 = vunpack.c.h.b16 %v3289
    %v3452 = vunpack.c.l.b16 %v3290
    %v3453 = vunpack.c.l.b16 %v3291
    %v3454 = vunpack.c.h.b16 %v3290
    %v3455 = vunpack.c.h.b16 %v3291
    %v3456 = vunpack.c.l.b16 %v3292
    %v3457 = vunpack.c.l.b16 %v3293
    %v3458 = vunpack.c.h.b16 %v3292
    %v3459 = vunpack.c.h.b16 %v3293
    %v3460 = vunpack.c.l.b16 %v3294
    %v3461 = vunpack.c.l.b16 %v3295
    %v3462 = vunpack.c.h.b16 %v3294
    %v3463 = vunpack.c.h.b16 %v3295
    %v3464 = vunpack.c.l.b16 %v3296
    %v3465 = vunpack.c.l.b16 %v3297
    %v3466 = vunpack.c.h.b16 %v3296
    %v3467 = vunpack.c.h.b16 %v3297
    %v3468 = vunpack.c.l.b16 %v3298
    %v3469 = vunpack.c.l.b16 %v3299
    %v3470 = vunpack.c.h.b16 %v3298
    %v3471 = vunpack.c.h.b16 %v3299
    %v3472 = vunpack.c.l.b16 %v3300
    %v3473 = vunpack.c.l.b16 %v3301
    %v3474 = vunpack.c.h.b16 %v3300
    %v3475 = vunpack.c.h.b16 %v3301
    %v3476 = vunpack.c.l.b16 %v3302
    %v3477 = vunpack.c.l.b16 %v3303
    %v3478 = vunpack.c.h.b16 %v3302
    %v3479 = vunpack.c.h.b16 %v3303
    %v3480 = vunpack.c.l.b16 %v3304
    %v3481 = vunpack.c.l.b16 %v3305
    %v3482 = vunpack.c.h.b16 %v3304
    %v3483 = vunpack.c.h.b16 %v3305
    %v3484 = vunpack.c.l.b16 %v3306
    %v3485 = vunpack.c.l.b16 %v3307
    %v3486 = vunpack.c.h.b16 %v3306
    %v3487 = vunpack.c.h.b16 %v3307
    %v3488 = vunpack.c.l.b16 %v3308
    %v3489 = vunpack.c.l.b16 %v3309
    %v3490 = vunpack.c.h.b16 %v3308
    %v3491 = vunpack.c.h.b16 %v3309
    %v3492 = vunpack.c.l.b16 %v3310
    %v3493 = vunpack.c.l.b16 %v3311
    %v3494 = vunpack.c.h.b16 %v3310
    %v3495 = vunpack.c.h.b16 %v3311
    %v3496 = vunpack.c.l.b16 %v3312
    %v3497 = vunpack.c.l.b16 %v3313
    %v3498 = vunpack.c.h.b16 %v3312
    %v3499 = vunpack.c.h.b16 %v3313
    %v3500 = vunpack.c.l.b16 %v3314
    %v3501 = vunpack.c.l.b16 %v3315
    %v3502 = vunpack.c.h.b16 %v3314
    %v3503 = vunpack.c.h.b16 %v3315
    %v3504 = vunpack.c.l.b16 %v3316
    %v3505 = vunpack.c.l.b16 %v3317
    %v3506 = vunpack.c.h.b16 %v3316
    %v3507 = vunpack.c.h.b16 %v3317
    %v3508 = vunpack.c.l.b16 %v3318
    %v3509 = vunpack.c.l.b16 %v3319
    %v3510 = vunpack.c.h.b16 %v3318
    %v3511 = vunpack.c.h.b16 %v3319
    %v3512 = vpack.c.b16 %v3385, %v3384
    %v3513 = vpack.c.b16 %v3387, %v3386
    %v3514 = vpack.c.b16 %v3389, %v3388
    %v3515 = vpack.c.b16 %v3391, %v3390
    %v3516 = vpack.c.b16 %v3393, %v3392
    %v3517 = vpack.c.b16 %v3395, %v3394
    %v3518 = vpack.c.b16 %v3397, %v3396
    %v3519 = vpack.c.b16 %v3399, %v3398
    %v3520 = vpack.c.b16 %v3401, %v3400
    %v3521 = vpack.c.b16 %v3403, %v3402
    %v3522 = vpack.c.b16 %v3405, %v3404
    %v3523 = vpack.c.b16 %v3407, %v3406
    %v3524 = vpack.c.b16 %v3409, %v3408
    %v3525 = vpack.c.b16 %v3411, %v3410
    %v3526 = vpack.c.b16 %v3413, %v3412
    %v3527 = vpack.c.b16 %v3415, %v3414
    %v3528 = vpack.c.b16 %v3417, %v3416
    %v3529 = vpack.c.b16 %v3419, %v3418
    %v3530 = vpack.c.b16 %v3421, %v3420
    %v3531 = vpack.c.b16 %v3423, %v3422
    %v3532 = vpack.c.b16 %v3425, %v3424
    %v3533 = vpack.c.b16 %v3427, %v3426
    %v3534 = vpack.c.b16 %v3429, %v3428
    %v3535 = vpack.c.b16 %v3431, %v3430
    %v3536 = vpack.c.b16 %v3433, %v3432
    %v3537 = vpack.c.b16 %v3435, %v3434
    %v3538 = vpack.c.b16 %v3437, %v3436
    %v3539 = vpack.c.b16 %v3439, %v3438
    %v3540 = vpack.c.b16 %v3441, %v3440
    %v3541 = vpack.c.b16 %v3443, %v3442
    %v3542 = vpack.c.b16 %v3445, %v3444
    %v3543 = vpack.c.b16 %v3447, %v3446
    %v3544 = vpack.c.b16 %v3449, %v3448
    %v3545 = vpack.c.b16 %v3451, %v3450
    %v3546 = vpack.c.b16 %v3453, %v3452
    %v3547 = vpack.c.b16 %v3455, %v3454
    %v3548 = vpack.c.b16 %v3457, %v3456
    %v3549 = vpack.c.b16 %v3459, %v3458
    %v3550 = vpack.c.b16 %v3461, %v3460
    %v3551 = vpack.c.b16 %v3463, %v3462
    %v3552 = vpack.c.b16 %v3465, %v3464
    %v3553 = vpack.c.b16 %v3467, %v3466
    %v3554 = vpack.c.b16 %v3469, %v3468
    %v3555 = vpack.c.b16 %v3471, %v3470
    %v3556 = vpack.c.b16 %v3473, %v3472
    %v3557 = vpack.c.b16 %v3475, %v3474
    %v3558 = vpack.c.b16 %v3477, %v3476
    %v3559 = vpack.c.b16 %v3479, %v3478
    %v3560 = vpack.c.b16 %v3481, %v3480
    %v3561 = vpack.c.b16 %v3483, %v3482
    %v3562 = vpack.c.b16 %v3485, %v3484
    %v3563 = vpack.c.b16 %v3487, %v3486
    %v3564 = vpack.c.b16 %v3489, %v3488
    %v3565 = vpack.c.b16 %v3491, %v3490
    %v3566 = vpack.c.b16 %v3493, %v3492
    %v3567 = vpack.c.b16 %v3495, %v3494
    %v3568 = vpack.c.b16 %v3497, %v3496
    %v3569 = vpack.c.b16 %v3499, %v3498
    %v3570 = vpack.c.b16 %v3501, %v3500
    %v3571 = vpack.c.b16 %v3503, %v3502
    %v3572 = vpack.c.b16 %v3505, %v3504
    %v3573 = vpack.c.b16 %v3507, %v3506
    %v3574 = vpack.c.b16 %v3509, %v3508
    %v3575 = vpack.c.b16 %v3511, %v3510
    %3640 = vst [vmem:[%s3] sm:$0xff] %v3512
    %3641 = vst [vmem:[%s3 + $0x8] sm:$0xff] %v3513
    %3642 = vst [vmem:[%s3 + $0x10] sm:$0xff] %v3514
    %3643 = vst [vmem:[%s3 + $0x18] sm:$0xff] %v3515
    %3644 = vst [vmem:[%s3 + $0x20] sm:$0xff] %v3516
    %3645 = vst [vmem:[%s3 + $0x28] sm:$0xff] %v3517
    %3646 = vst [vmem:[%s3 + $0x30] sm:$0xff] %v3518
    %3647 = vst [vmem:[%s3 + $0x38] sm:$0xff] %v3519
    %3648 = vst [vmem:[%s3 + $0x40] sm:$0xff] %v3520
    %3649 = vst [vmem:[%s3 + $0x48] sm:$0xff] %v3521
    %3650 = vst [vmem:[%s3 + $0x50] sm:$0xff] %v3522
    %3651 = vst [vmem:[%s3 + $0x58] sm:$0xff] %v3523
    %3652 = vst [vmem:[%s3 + $0x60] sm:$0xff] %v3524
    %3653 = vst [vmem:[%s3 + $0x68] sm:$0xff] %v3525
    %3654 = vst [vmem:[%s3 + $0x70] sm:$0xff] %v3526
    %3655 = vst [vmem:[%s3 + $0x78] sm:$0xff] %v3527
    %3656 = vst [vmem:[%s3 + $0x80] sm:$0xff] %v3528
    %3657 = vst [vmem:[%s3 + $0x88] sm:$0xff] %v3529
    %3658 = vst [vmem:[%s3 + $0x90] sm:$0xff] %v3530
    %3659 = vst [vmem:[%s3 + $0x98] sm:$0xff] %v3531
    %3660 = vst [vmem:[%s3 + $0xa0] sm:$0xff] %v3532
    %3661 = vst [vmem:[%s3 + $0xa8] sm:$0xff] %v3533
    %3662 = vst [vmem:[%s3 + $0xb0] sm:$0xff] %v3534
    %3663 = vst [vmem:[%s3 + $0xb8] sm:$0xff] %v3535
    %3664 = vst [vmem:[%s3 + $0xc0] sm:$0xff] %v3536
    %3665 = vst [vmem:[%s3 + $0xc8] sm:$0xff] %v3537
    %3666 = vst [vmem:[%s3 + $0xd0] sm:$0xff] %v3538
    %3667 = vst [vmem:[%s3 + $0xd8] sm:$0xff] %v3539
    %3668 = vst [vmem:[%s3 + $0xe0] sm:$0xff] %v3540
    %3669 = vst [vmem:[%s3 + $0xe8] sm:$0xff] %v3541
    %3670 = vst [vmem:[%s3 + $0xf0] sm:$0xff] %v3542
    %3671 = vst [vmem:[%s3 + $0xf8] sm:$0xff] %v3543
    %3672 = vst [vmem:[%s3 + $0x100] sm:$0xff] %v3544
    %3673 = vst [vmem:[%s3 + $0x108] sm:$0xff] %v3545
    %3674 = vst [vmem:[%s3 + $0x110] sm:$0xff] %v3546
    %3675 = vst [vmem:[%s3 + $0x118] sm:$0xff] %v3547
    %3676 = vst [vmem:[%s3 + $0x120] sm:$0xff] %v3548
    %3677 = vst [vmem:[%s3 + $0x128] sm:$0xff] %v3549
    %3678 = vst [vmem:[%s3 + $0x130] sm:$0xff] %v3550
    %3679 = vst [vmem:[%s3 + $0x138] sm:$0xff] %v3551
    %3680 = vst [vmem:[%s3 + $0x140] sm:$0xff] %v3552
    %3681 = vst [vmem:[%s3 + $0x148] sm:$0xff] %v3553
    %3682 = vst [vmem:[%s3 + $0x150] sm:$0xff] %v3554
    %3683 = vst [vmem:[%s3 + $0x158] sm:$0xff] %v3555
    %3684 = vst [vmem:[%s3 + $0x160] sm:$0xff] %v3556
    %3685 = vst [vmem:[%s3 + $0x168] sm:$0xff] %v3557
    %3686 = vst [vmem:[%s3 + $0x170] sm:$0xff] %v3558
    %3687 = vst [vmem:[%s3 + $0x178] sm:$0xff] %v3559
    %3688 = vst [vmem:[%s3 + $0x180] sm:$0xff] %v3560
    %3689 = vst [vmem:[%s3 + $0x188] sm:$0xff] %v3561
    %3690 = vst [vmem:[%s3 + $0x190] sm:$0xff] %v3562
    %3691 = vst [vmem:[%s3 + $0x198] sm:$0xff] %v3563
    %3692 = vst [vmem:[%s3 + $0x1a0] sm:$0xff] %v3564
    %3693 = vst [vmem:[%s3 + $0x1a8] sm:$0xff] %v3565
    %3694 = vst [vmem:[%s3 + $0x1b0] sm:$0xff] %v3566
    %3695 = vst [vmem:[%s3 + $0x1b8] sm:$0xff] %v3567
    %3696 = vst [vmem:[%s3 + $0x1c0] sm:$0xff] %v3568
    %3697 = vst [vmem:[%s3 + $0x1c8] sm:$0xff] %v3569
    %3698 = vst [vmem:[%s3 + $0x1d0] sm:$0xff] %v3570
    %3699 = vst [vmem:[%s3 + $0x1d8] sm:$0xff] %v3571
    %3700 = vst [vmem:[%s3 + $0x1e0] sm:$0xff] %v3572
    %3701 = vst [vmem:[%s3 + $0x1e8] sm:$0xff] %v3573
    %3702 = vst [vmem:[%s3 + $0x1f0] sm:$0xff] %v3574
    %3703 = vst [vmem:[%s3 + $0x1f8] sm:$0xff] %v3575
  $region21: #{dgi_ind_forward.3} parent=0 // pred_fallthru
    _
  // Predicated region
  $region22: #{dgi_ind_forward.3} parent=0 // pred_check
    _
  $region23: #{dgi_ind_forward.3} parent=0 // pred_check_branch
    %3705 = sbr.rel (0) target = $region25
  $region24: #{dgi_ind_forward.3} parent=0 // pred_region
    _
  $region25: #{dgi_ind_forward.3} parent=0 // pred_fallthru
    _
  // Predicated region
  $region26: #{dgi_ind_forward.3} parent=0 // pred_check
    _
  $region27: #{dgi_ind_forward.3} parent=0 // pred_check_branch
    %3707 = sbr.rel (0) target = $region29
  $region28: #{dgi_ind_forward.3} parent=0 // pred_region
    _
  $region29: #{dgi_ind_forward.3} parent=0 // pred_fallthru
    _

</llo_original>
